<compile_context>
chip_gen: v7x
topology: tpu7x:2x2x1
jax: 0.10.0
libtpu: 0.0.40
codegen_flags: <defaults>
</compile_context>

<pallas_src>
import jax
import jax.numpy as jnp
from jax.experimental import pallas as pl
from jax.experimental.pallas import tpu as pltpu

# Layer sizes from the PyTorch module.
DIMS = [784, 512, 256, 128, 64, 10]
OUT_PAD = 128    # 10 padded up to 128 (lane-dense output store)


def _ffn_kernel(x_ref,
                w1_ref, b1_ref,
                w2_ref, b2_ref,
                w3_ref, b3_ref,
                w4_ref, b4_ref,
                w5_ref, b5_ref,
                o_ref):
    # Load the f32 input tile and cast to bf16 on the VPU; all matmuls hit the
    # MXU in bf16 with f32 accumulation; bias add + ReLU run on the VPU in
    # f32, then cast back to bf16 for the next matmul.
    h = x_ref[...].astype(jnp.bfloat16)          # (batch_tile, 784)

    h = jnp.dot(h, w1_ref[...], preferred_element_type=jnp.float32) + b1_ref[...]
    h = jnp.maximum(h, 0.0).astype(jnp.bfloat16)
    # dropout1: identity in eval mode

    h = jnp.dot(h, w2_ref[...], preferred_element_type=jnp.float32) + b2_ref[...]
    h = jnp.maximum(h, 0.0).astype(jnp.bfloat16)
    # dropout2: identity in eval mode

    h = jnp.dot(h, w3_ref[...], preferred_element_type=jnp.float32) + b3_ref[...]
    h = jnp.maximum(h, 0.0).astype(jnp.bfloat16)

    h = jnp.dot(h, w4_ref[...], preferred_element_type=jnp.float32) + b4_ref[...]
    h = jnp.maximum(h, 0.0).astype(jnp.bfloat16)

    h = jnp.dot(h, w5_ref[...], preferred_element_type=jnp.float32) + b5_ref[...]
    o_ref[...] = h.astype(o_ref.dtype)           # (batch_tile, 128) lane-dense


def _prepare_params(params):
    """Cast weights to bf16, keep biases f32; pad W5/b5's N to 128 (lane-dense)."""
    (w1, b1), (w2, b2), (w3, b3), (w4, b4), (w5, b5) = params

    w5p = jnp.zeros((DIMS[4], OUT_PAD), jnp.bfloat16).at[:, :DIMS[5]].set(
        w5.astype(jnp.bfloat16))
    b5p = jnp.zeros((1, OUT_PAD), jnp.float32).at[:, :DIMS[5]].set(
        b5.astype(jnp.float32))

    return [
        (w1.astype(jnp.bfloat16), b1.astype(jnp.float32)),
        (w2.astype(jnp.bfloat16), b2.astype(jnp.float32)),
        (w3.astype(jnp.bfloat16), b3.astype(jnp.float32)),
        (w4.astype(jnp.bfloat16), b4.astype(jnp.float32)),
        (w5p, b5p),
    ]


def _pick_batch_tile(B, cap=2048):
    """Batch tile: multiple of 256, >= 2 grid steps when B allows, capped so
    the f32 input tile (cap x 784 x 4B, double-buffered) + intermediates fit
    v7x's tighter VMEM budget."""
    tile = pl.cdiv(B, 2)                    # aim for >= 2 "parallel" steps (v7x: 2 TCs)
    tile = ((tile + 255) // 256) * 256      # MXU-row multiple
    return max(256, min(cap, tile))


def feed_forward_reg(x, params, *, batch_tile=None):
    """x: [B, 784] float32.  params: list of (W:(in,out), b:(1,out)) f32 pairs."""
    B, D_in = x.shape
    assert D_in == DIMS[0]

    if batch_tile is None:
        batch_tile = _pick_batch_tile(B)
    grid = (pl.cdiv(B, batch_tile),)        # ragged last block handled by masking

    prepped = _prepare_params(params)

    # x is tiled over the batch only (last dim 784 == full dim, so no lane
    # padding needed on the BlockSpec); each weight/bias block is the whole
    # array with a constant index_map, so the pipeline does not re-fetch it
    # across grid steps.
    in_specs = [pl.BlockSpec((batch_tile, D_in), lambda i: (i, 0))]
    flat_params = []
    for (w, b) in prepped:
        in_specs.append(pl.BlockSpec(w.shape, lambda i: (0, 0)))
        in_specs.append(pl.BlockSpec(b.shape, lambda i: (0, 0)))
        flat_params += [w, b]

    out_spec = pl.BlockSpec((batch_tile, OUT_PAD), lambda i: (i, 0))

    # Advisory cost estimate for XLA's scheduler.
    flops = 2 * B * (DIMS[0] * DIMS[1] + DIMS[1] * DIMS[2] + DIMS[2] * DIMS[3]
                     + DIMS[3] * DIMS[4] + DIMS[4] * OUT_PAD)
    bytes_accessed = (B * D_in * 4                              # f32 input
                      + sum(w.size * 2 + b.size * 4 for (w, b) in prepped)
                      + B * OUT_PAD * 4)                        # f32 output
    cost = pl.CostEstimate(flops=int(flops), transcendentals=0,
                           bytes_accessed=int(bytes_accessed))

    out_padded = pl.pallas_call(
        _ffn_kernel,
        out_shape=jax.ShapeDtypeStruct((B, OUT_PAD), jnp.float32),
        grid_spec=pltpu.PrefetchScalarGridSpec(
            num_scalar_prefetch=0,
            grid=grid,
            in_specs=in_specs,
            out_specs=out_spec,
        ),
        compiler_params=pltpu.CompilerParams(
            dimension_semantics=("parallel",),
            vmem_limit_bytes=48 * 1024 * 1024,
        ),
        cost_estimate=cost,
    )(x, *flat_params)

    return out_padded[:, :DIMS[-1]]


def init_params(key):
    """Deterministic init mimicking nn.Linear's default U(-1/sqrt(fan_in), +)."""
    params = []
    for fan_in, fan_out in zip(DIMS[:-1], DIMS[1:]):
        key, kw, kb = jax.random.split(key, 3)
        bound = 1.0 / (fan_in ** 0.5)
        w = jax.random.uniform(kw, (fan_in, fan_out), jnp.float32, -bound, bound)
        b = jax.random.uniform(kb, (1, fan_out), jnp.float32, -bound, bound)
        params.append((w, b))
    return params


def reference_bf16(x, params):
    """Same math as the kernel: bf16 operands, f32 accumulation."""
    h = x.astype(jnp.bfloat16)
    for i, (w, b) in enumerate(params):
        h = jnp.dot(h, w.astype(jnp.bfloat16),
                    preferred_element_type=jnp.float32) + b
        if i < len(params) - 1:
            h = jnp.maximum(h, 0.0).astype(jnp.bfloat16)
    return h


if __name__ == "__main__":
    key = jax.random.PRNGKey(0)
    key, kx = jax.random.split(key)

    # Small batch, not a multiple of the batch tile: picks batch_tile=256 and
    # grid=2, exercising both the multi-step parallel grid and the ragged
    # (masked) last block.
    B = 300
    x = jax.random.normal(kx, (B, DIMS[0]), jnp.float32)
    params = init_params(key)

    out = feed_forward_reg(x, params)
    out = jax.block_until_ready(out)

    ref = reference_bf16(x, params)
    assert out.shape == (B, DIMS[-1])
    assert jnp.allclose(out, ref, atol=5e-3, rtol=5e-3), "mismatch vs reference"

    print("KERNEL_OK")
</pallas_src>

<mosaic_0001>
module attributes {stable_mosaic.version = 11 : i64} {
  func.func @_ffn_kernel(%arg0: i32, %arg1: memref<256x784xf32, #tpu.memory_space<vmem>>, %arg2: memref<784x512xbf16, #tpu.memory_space<vmem>>, %arg3: memref<1x512xf32, #tpu.memory_space<vmem>>, %arg4: memref<512x256xbf16, #tpu.memory_space<vmem>>, %arg5: memref<1x256xf32, #tpu.memory_space<vmem>>, %arg6: memref<256x128xbf16, #tpu.memory_space<vmem>>, %arg7: memref<1x128xf32, #tpu.memory_space<vmem>>, %arg8: memref<128x64xbf16, #tpu.memory_space<vmem>>, %arg9: memref<1x64xf32, #tpu.memory_space<vmem>>, %arg10: memref<64x128xbf16, #tpu.memory_space<vmem>>, %arg11: memref<1x128xf32, #tpu.memory_space<vmem>>, %arg12: memref<256x128xf32, #tpu.memory_space<vmem>>) attributes {dimension_semantics = [#tpu.dimension_semantics<parallel>], iteration_bounds = array<i64: 2>, scalar_prefetch = 0 : i64, scratch_operands = 0 : i64, tpu.core_type = #tpu.core_type<tc>, window_params = [{transform_indices = @transform_0, window_bounds = array<i64: 256, 784>}, {pipeline_mode = #tpu.pipeline_mode<synchronous>, transform_indices = @transform_1, window_bounds = array<i64: 784, 512>}, {pipeline_mode = #tpu.pipeline_mode<synchronous>, transform_indices = @transform_2, window_bounds = array<i64: 1, 512>}, {pipeline_mode = #tpu.pipeline_mode<synchronous>, transform_indices = @transform_3, window_bounds = array<i64: 512, 256>}, {pipeline_mode = #tpu.pipeline_mode<synchronous>, transform_indices = @transform_4, window_bounds = array<i64: 1, 256>}, {pipeline_mode = #tpu.pipeline_mode<synchronous>, transform_indices = @transform_5, window_bounds = array<i64: 256, 128>}, {pipeline_mode = #tpu.pipeline_mode<synchronous>, transform_indices = @transform_6, window_bounds = array<i64: 1, 128>}, {pipeline_mode = #tpu.pipeline_mode<synchronous>, transform_indices = @transform_7, window_bounds = array<i64: 128, 64>}, {pipeline_mode = #tpu.pipeline_mode<synchronous>, transform_indices = @transform_8, window_bounds = array<i64: 1, 64>}, {pipeline_mode = #tpu.pipeline_mode<synchronous>, transform_indices = @transform_9, window_bounds = array<i64: 64, 128>}, {pipeline_mode = #tpu.pipeline_mode<synchronous>, transform_indices = @transform_10, window_bounds = array<i64: 1, 128>}, {transform_indices = @transform_11, window_bounds = array<i64: 256, 128>}]} {
    %c0 = arith.constant 0 : index
    %c0_0 = arith.constant 0 : index
    %0 = vector.load %arg1[%c0, %c0_0] : memref<256x784xf32, #tpu.memory_space<vmem>>, vector<256x784xf32>
    %1 = arith.truncf %0 : vector<256x784xf32> to vector<256x784xbf16>
    %c0_1 = arith.constant 0 : index
    %c0_2 = arith.constant 0 : index
    %2 = vector.load %arg2[%c0_1, %c0_2] : memref<784x512xbf16, #tpu.memory_space<vmem>>, vector<784x512xbf16>
    %cst = arith.constant dense<0.000000e+00> : vector<256x512xf32>
    %3 = tpu.matmul %1, %2, %cst {dimension_numbers = #tpu.dot_dimension_numbers<[1], [0], [0], [1], [0, 0, 1, 1], [], []>} : vector<256x784xbf16>, vector<784x512xbf16>, vector<256x512xf32> -> vector<256x512xf32>
    %c0_3 = arith.constant 0 : index
    %c0_4 = arith.constant 0 : index
    %4 = vector.load %arg3[%c0_3, %c0_4] : memref<1x512xf32, #tpu.memory_space<vmem>>, vector<1x512xf32>
    %5 = vector.broadcast %4 : vector<1x512xf32> to vector<256x512xf32>
    %6 = arith.addf %3, %5 : vector<256x512xf32>
    %cst_5 = arith.constant 0.000000e+00 : f32
    %7 = vector.broadcast %cst_5 : f32 to vector<256x512xf32>
    %8 = arith.maximumf %6, %7 : vector<256x512xf32>
    %9 = arith.truncf %8 : vector<256x512xf32> to vector<256x512xbf16>
    %c0_6 = arith.constant 0 : index
    %c0_7 = arith.constant 0 : index
    %10 = vector.load %arg4[%c0_6, %c0_7] : memref<512x256xbf16, #tpu.memory_space<vmem>>, vector<512x256xbf16>
    %cst_8 = arith.constant dense<0.000000e+00> : vector<256x256xf32>
    %11 = tpu.matmul %9, %10, %cst_8 {dimension_numbers = #tpu.dot_dimension_numbers<[1], [0], [0], [1], [0, 0, 1, 1], [], []>} : vector<256x512xbf16>, vector<512x256xbf16>, vector<256x256xf32> -> vector<256x256xf32>
    %c0_9 = arith.constant 0 : index
    %c0_10 = arith.constant 0 : index
    %12 = vector.load %arg5[%c0_9, %c0_10] : memref<1x256xf32, #tpu.memory_space<vmem>>, vector<1x256xf32>
    %13 = vector.broadcast %12 : vector<1x256xf32> to vector<256x256xf32>
    %14 = arith.addf %11, %13 : vector<256x256xf32>
    %cst_11 = arith.constant 0.000000e+00 : f32
    %15 = vector.broadcast %cst_11 : f32 to vector<256x256xf32>
    %16 = arith.maximumf %14, %15 : vector<256x256xf32>
    %17 = arith.truncf %16 : vector<256x256xf32> to vector<256x256xbf16>
    %c0_12 = arith.constant 0 : index
    %c0_13 = arith.constant 0 : index
    %18 = vector.load %arg6[%c0_12, %c0_13] : memref<256x128xbf16, #tpu.memory_space<vmem>>, vector<256x128xbf16>
    %cst_14 = arith.constant dense<0.000000e+00> : vector<256x128xf32>
    %19 = tpu.matmul %17, %18, %cst_14 {dimension_numbers = #tpu.dot_dimension_numbers<[1], [0], [0], [1], [0, 0, 1, 1], [], []>} : vector<256x256xbf16>, vector<256x128xbf16>, vector<256x128xf32> -> vector<256x128xf32>
    %c0_15 = arith.constant 0 : index
    %c0_16 = arith.constant 0 : index
    %20 = vector.load %arg7[%c0_15, %c0_16] : memref<1x128xf32, #tpu.memory_space<vmem>>, vector<1x128xf32>
    %21 = vector.broadcast %20 : vector<1x128xf32> to vector<256x128xf32>
    %22 = arith.addf %19, %21 : vector<256x128xf32>
    %cst_17 = arith.constant 0.000000e+00 : f32
    %23 = vector.broadcast %cst_17 : f32 to vector<256x128xf32>
    %24 = arith.maximumf %22, %23 : vector<256x128xf32>
    %25 = arith.truncf %24 : vector<256x128xf32> to vector<256x128xbf16>
    %c0_18 = arith.constant 0 : index
    %c0_19 = arith.constant 0 : index
    %26 = vector.load %arg8[%c0_18, %c0_19] : memref<128x64xbf16, #tpu.memory_space<vmem>>, vector<128x64xbf16>
    %cst_20 = arith.constant dense<0.000000e+00> : vector<256x64xf32>
    %27 = tpu.matmul %25, %26, %cst_20 {dimension_numbers = #tpu.dot_dimension_numbers<[1], [0], [0], [1], [0, 0, 1, 1], [], []>} : vector<256x128xbf16>, vector<128x64xbf16>, vector<256x64xf32> -> vector<256x64xf32>
    %c0_21 = arith.constant 0 : index
    %c0_22 = arith.constant 0 : index
    %28 = vector.load %arg9[%c0_21, %c0_22] : memref<1x64xf32, #tpu.memory_space<vmem>>, vector<1x64xf32>
    %29 = vector.broadcast %28 : vector<1x64xf32> to vector<256x64xf32>
    %30 = arith.addf %27, %29 : vector<256x64xf32>
    %cst_23 = arith.constant 0.000000e+00 : f32
    %31 = vector.broadcast %cst_23 : f32 to vector<256x64xf32>
    %32 = arith.maximumf %30, %31 : vector<256x64xf32>
    %33 = arith.truncf %32 : vector<256x64xf32> to vector<256x64xbf16>
    %c0_24 = arith.constant 0 : index
    %c0_25 = arith.constant 0 : index
    %34 = vector.load %arg10[%c0_24, %c0_25] : memref<64x128xbf16, #tpu.memory_space<vmem>>, vector<64x128xbf16>
    %cst_26 = arith.constant dense<0.000000e+00> : vector<256x128xf32>
    %35 = tpu.matmul %33, %34, %cst_26 {dimension_numbers = #tpu.dot_dimension_numbers<[1], [0], [0], [1], [0, 0, 1, 1], [], []>} : vector<256x64xbf16>, vector<64x128xbf16>, vector<256x128xf32> -> vector<256x128xf32>
    %c0_27 = arith.constant 0 : index
    %c0_28 = arith.constant 0 : index
    %36 = vector.load %arg11[%c0_27, %c0_28] : memref<1x128xf32, #tpu.memory_space<vmem>>, vector<1x128xf32>
    %37 = vector.broadcast %36 : vector<1x128xf32> to vector<256x128xf32>
    %38 = arith.addf %35, %37 : vector<256x128xf32>
    %c0_29 = arith.constant 0 : index
    %c0_30 = arith.constant 0 : index
    %39 = vector.load %arg12[%c0_29, %c0_30] : memref<256x128xf32, #tpu.memory_space<vmem>>, vector<256x128xf32>
    tpu.vector_store %arg12[%c0_29, %c0_30], %38 {strides = array<i32>} : memref<256x128xf32, #tpu.memory_space<vmem>>, vector<256x128xf32>,
    return
  }
  func.func @transform_0(%arg0: i32) -> (i32, i32) {
    %c0_i32 = arith.constant 0 : i32
    %c0_i32_0 = arith.constant 0 : i32
    return %arg0, %c0_i32 : i32, i32
  }
  func.func @transform_1(%arg0: i32) -> (i32, i32) {
    %c0_i32 = arith.constant 0 : i32
    %c0_i32_0 = arith.constant 0 : i32
    %c0_i32_1 = arith.constant 0 : i32
    return %c0_i32, %c0_i32_0 : i32, i32
  }
  func.func @transform_2(%arg0: i32) -> (i32, i32) {
    %c0_i32 = arith.constant 0 : i32
    %c0_i32_0 = arith.constant 0 : i32
    %c0_i32_1 = arith.constant 0 : i32
    return %c0_i32, %c0_i32_0 : i32, i32
  }
  func.func @transform_3(%arg0: i32) -> (i32, i32) {
    %c0_i32 = arith.constant 0 : i32
    %c0_i32_0 = arith.constant 0 : i32
    %c0_i32_1 = arith.constant 0 : i32
    return %c0_i32, %c0_i32_0 : i32, i32
  }
  func.func @transform_4(%arg0: i32) -> (i32, i32) {
    %c0_i32 = arith.constant 0 : i32
    %c0_i32_0 = arith.constant 0 : i32
    %c0_i32_1 = arith.constant 0 : i32
    return %c0_i32, %c0_i32_0 : i32, i32
  }
  func.func @transform_5(%arg0: i32) -> (i32, i32) {
    %c0_i32 = arith.constant 0 : i32
    %c0_i32_0 = arith.constant 0 : i32
    %c0_i32_1 = arith.constant 0 : i32
    return %c0_i32, %c0_i32_0 : i32, i32
  }
  func.func @transform_6(%arg0: i32) -> (i32, i32) {
    %c0_i32 = arith.constant 0 : i32
    %c0_i32_0 = arith.constant 0 : i32
    %c0_i32_1 = arith.constant 0 : i32
    return %c0_i32, %c0_i32_0 : i32, i32
  }
  func.func @transform_7(%arg0: i32) -> (i32, i32) {
    %c0_i32 = arith.constant 0 : i32
    %c0_i32_0 = arith.constant 0 : i32
    %c0_i32_1 = arith.constant 0 : i32
    return %c0_i32, %c0_i32_0 : i32, i32
  }
  func.func @transform_8(%arg0: i32) -> (i32, i32) {
    %c0_i32 = arith.constant 0 : i32
    %c0_i32_0 = arith.constant 0 : i32
    %c0_i32_1 = arith.constant 0 : i32
    return %c0_i32, %c0_i32_0 : i32, i32
  }
  func.func @transform_9(%arg0: i32) -> (i32, i32) {
    %c0_i32 = arith.constant 0 : i32
    %c0_i32_0 = arith.constant 0 : i32
    %c0_i32_1 = arith.constant 0 : i32
    return %c0_i32, %c0_i32_0 : i32, i32
  }
  func.func @transform_10(%arg0: i32) -> (i32, i32) {
    %c0_i32 = arith.constant 0 : i32
    %c0_i32_0 = arith.constant 0 : i32
    %c0_i32_1 = arith.constant 0 : i32
    return %c0_i32, %c0_i32_0 : i32, i32
  }
  func.func @transform_11(%arg0: i32) -> (i32, i32) {
    %c0_i32 = arith.constant 0 : i32
    %c0_i32_0 = arith.constant 0 : i32
    return %arg0, %c0_i32 : i32, i32
  }
}

</mosaic_0001>

<llo_original>
// kernel: tpu_custom_call.1
$region0: #{tpu_custom_call.1}
  #allocation0 [shape = 'u32[]', space=smem, size = 0x4, offset = 0x4, fixed_abs, tag = 'smem constant byte address 0x4 - core index']
  #allocation1 [shape = 'u32[144,128]{1,0:T(1,128)}', space=vmem, size = 0x12000, scoped, tag = 'internal scratch']
  %s0 = inlined_call_operand.hbm [shape: f32[300,784], index: 0, kind: input, shape index: {}]
  %s1 = inlined_call_operand.hbm [shape: bf16[784,512], index: 1, kind: input, shape index: {}]
  %s2 = inlined_call_operand.hbm [shape: f32[1,512], index: 2, kind: input, shape index: {}]
  %s3 = inlined_call_operand.hbm [shape: bf16[512,256], index: 3, kind: input, shape index: {}]
  %s4 = inlined_call_operand.hbm [shape: f32[1,256], index: 4, kind: input, shape index: {}]
  %s5 = inlined_call_operand.hbm [shape: bf16[256,128], index: 5, kind: input, shape index: {}]
  %s6 = inlined_call_operand.hbm [shape: f32[1,128], index: 6, kind: input, shape index: {}]
  %s7 = inlined_call_operand.vmem [shape: bf16[128,64], index: 7, kind: input, shape index: {}]
  %s8 = inlined_call_operand.hbm [shape: f32[1,64], index: 8, kind: input, shape index: {}]
  %s9 = inlined_call_operand.hbm [shape: bf16[64,128], index: 9, kind: input, shape index: {}]
  %s10 = inlined_call_operand.hbm [shape: f32[1,128], index: 10, kind: input, shape index: {}]
  %s11 = inlined_call_operand.hbm [shape: f32[300,128], index: 11, kind: output, shape index: {}]
  %s12 = sld [smem:[#allocation0]]
  $region117: #{tpu_custom_call.1} parent=0
    _
  %s14 = ssub.s32 1, %s12
  %s15 = scalar_select 0, %s14, %s12
  $region1: #{tpu_custom_call.1} parent=0
    #allocation2 [shape = 'u8[1835008]{0}', space=vmem, size = 0x1c0000, scoped, tag = 'input window, operand 0']
    #allocation3 [shape = 's32[2]{0}', space=sflag, size = 0x8, scoped, tag = 'scoped memory for tpu_custom_call.1']
    #allocation4 [shape = 's32[2]{0}', space=sflag, size = 0x8, scoped, tag = 'scoped memory for tpu_custom_call.1']
    #allocation5 [shape = 'u8[802816]{0}', space=vmem, size = 0xc4000, scoped, tag = 'input window, operand 1, single buffered']
    #allocation6 [shape = 's32[1]{0}', space=sflag, size = 0x4, scoped, tag = 'scoped memory for tpu_custom_call.1']
    #allocation7 [shape = 'u8[2048]{0}', space=vmem, size = 0x800, scoped, tag = 'input window, operand 2, single buffered']
    #allocation8 [shape = 'u8[262144]{0}', space=vmem, size = 0x40000, scoped, tag = 'input window, operand 3, single buffered']
    #allocation9 [shape = 's32[1]{0}', space=sflag, size = 0x4, scoped, tag = 'scoped memory for tpu_custom_call.1']
    #allocation10 [shape = 'u8[1024]{0}', space=vmem, size = 0x400, scoped, tag = 'input window, operand 4, single buffered']
    #allocation11 [shape = 'u8[65536]{0}', space=vmem, size = 0x10000, scoped, tag = 'input window, operand 5, single buffered']
    #allocation12 [shape = 's32[1]{0}', space=sflag, size = 0x4, scoped, tag = 'scoped memory for tpu_custom_call.1']
    #allocation13 [shape = 'u8[512]{0}', space=vmem, size = 0x400, scoped, tag = 'input window, operand 6, single buffered']
    #allocation14 [shape = 'u8[512]{0}', space=vmem, size = 0x400, scoped, tag = 'input window, operand 8, single buffered']
    #allocation15 [shape = 's32[1]{0}', space=sflag, size = 0x4, scoped, tag = 'scoped memory for tpu_custom_call.1']
    #allocation16 [shape = 'u8[16384]{0}', space=vmem, size = 0x4000, scoped, tag = 'input window, operand 9, single buffered']
    #allocation17 [shape = 'u8[512]{0}', space=vmem, size = 0x400, scoped, tag = 'input window, operand 10, single buffered']
    #allocation18 [shape = 's32[1]{0}', space=sflag, size = 0x4, scoped, tag = 'scoped memory for tpu_custom_call.1']
    #allocation19 [shape = 'u8[262144]{0}', space=vmem, size = 0x40000, scoped, tag = 'output window, operand 0']
    %16 = vsyncpa [#allocation3], 0
    %s17 = scalar_lea.sflag [#allocation3], 1
    %18 = vsyncpa %s17, 0
    %19 = vsyncpa [#allocation6], 0
    %20 = vsyncpa [#allocation9], 0
    %21 = vsyncpa [#allocation12], 0
    %22 = vsyncpa [#allocation15], 0
    %23 = vsyncpa [#allocation18], 0
    %24 = vsyncpa [#allocation4], 0
    %s25 = scalar_lea.sflag [#allocation4], 1
    %26 = vsyncpa %s25, 0
    loop: start=0, step=1, limit=4
    $region2: #{tpu_custom_call.1} parent=1 // loop_pre_header
      _
    $region3: #{tpu_custom_call.1} parent=1 // loop_header
      %s28 = sphi 0, %s32
      %p29 = scmp.ge.s32.totalorder %s28, 4
      %s38 = sphi 0, %s40
      %s41 = sphi 0, %s38
      %s42 = sphi 0, %s41
      %s58 = sphi 0, %s42
      %s62 = sphi 0, %s62
      %s64 = sphi 0, %s62
      %s65 = sphi 0, %s64
      %s79 = sphi 0, %s65
      %s83 = sphi 0, %s83
      %s85 = sphi 0, %s83
      %s86 = sphi 0, %s85
      %s100 = sphi 0, %s86
      %s104 = sphi 0, %s104
      %s106 = sphi 0, %s104
      %s107 = sphi 0, %s106
      %s121 = sphi 0, %s107
      %s125 = sphi 0, %s125
      %s127 = sphi 0, %s125
      %s128 = sphi 0, %s127
      %s142 = sphi 0, %s128
      %s146 = sphi 0, %s146
      %s148 = sphi 0, %s146
      %s149 = sphi 0, %s148
      %s163 = sphi 0, %s149
      %s167 = sphi 0, %s167
      %s169 = sphi 0, %s167
      %s170 = sphi 0, %s169
      %s184 = sphi 0, %s170
      %s188 = sphi 0, %s188
      %s190 = sphi 0, %s188
      %s191 = sphi 0, %s190
      %s205 = sphi 0, %s191
      %s209 = sphi 0, %s209
      %s211 = sphi 0, %s209
      %s212 = sphi 0, %s211
      %s226 = sphi 0, %s212
      %s230 = sphi 0, %s230
      %s232 = sphi 0, %s230
      %s233 = sphi 0, %s232
      %s247 = sphi 0, %s233
      %s251 = sphi 0, %s251
      %s253 = sphi 0, %s251
      %s254 = sphi 0, %s253
      %s268 = sphi 0, %s254
      %s274 = sphi 0, %s276
      %s277 = sphi 0, %s274
      %s278 = sphi 0, %s277
      %s294 = sphi 0, %s278
    $region4: #{tpu_custom_call.1} parent=1 // loop_header_branch
      %31 = sbr.rel (%p29) target = $region8
    $region5: #{tpu_custom_call.1} parent=1 // loop_body
      %s33 = ssub.s32 %s28, 1
      %s34 = ssub.s32 %s28, 2
      %s35 = sadd.s32 %s28, 1
      %s36 = ssub.s32 %s28, %s35
      %p37 = scmp.eq.s32.totalorder %s36, 0
      %s39 = sadd.s32 %s38, 1
      %s40 = scalar_select %p37, %s38, %s39
      %p43 = pneg %p37
      %p44 = scmp.eq.s32.totalorder %s28, 1
      %p45 = por %p43, %p44
      %p46 = scmp.ne.s32.totalorder %s38, %s41
      %p47 = scmp.eq.s32.totalorder %s28, 0
      %p48 = por %p46, %p47
      %p49 = scmp.ne.s32.totalorder %s38, %s41
      %p50 = scmp.eq.s32.totalorder %s33, 1
      %p51 = por %p49, %p50
      %p52 = scmp.ne.s32.totalorder %s41, %s42
      %p53 = scmp.eq.s32.totalorder %s33, 0
      %p54 = por %p52, %p53
      %p55 = scmp.ne.s32.totalorder %s41, %s42
      %p56 = scmp.eq.s32.totalorder %s34, 1
      %p57 = por %p55, %p56
      %p59 = scmp.ne.s32.totalorder %s42, %s58
      %p60 = scmp.eq.s32.totalorder %s34, 0
      %p61 = por %p59, %p60
      %s63 = sadd.s32 %s62, 1
      %p66 = scmp.eq.s32.totalorder %s28, 1
      %p67 = scmp.ne.s32.totalorder %s62, %s64
      %p68 = scmp.eq.s32.totalorder %s28, 0
      %p69 = por %p67, %p68
      %p70 = scmp.ne.s32.totalorder %s62, %s64
      %p71 = scmp.eq.s32.totalorder %s33, 1
      %p72 = por %p70, %p71
      %p73 = scmp.ne.s32.totalorder %s64, %s65
      %p74 = scmp.eq.s32.totalorder %s33, 0
      %p75 = por %p73, %p74
      %p76 = scmp.ne.s32.totalorder %s64, %s65
      %p77 = scmp.eq.s32.totalorder %s34, 1
      %p78 = por %p76, %p77
      %p80 = scmp.ne.s32.totalorder %s65, %s79
      %p81 = scmp.eq.s32.totalorder %s34, 0
      %p82 = por %p80, %p81
      %s84 = sadd.s32 %s83, 1
      %p87 = scmp.eq.s32.totalorder %s28, 1
      %p88 = scmp.ne.s32.totalorder %s83, %s85
      %p89 = scmp.eq.s32.totalorder %s28, 0
      %p90 = por %p88, %p89
      %p91 = scmp.ne.s32.totalorder %s83, %s85
      %p92 = scmp.eq.s32.totalorder %s33, 1
      %p93 = por %p91, %p92
      %p94 = scmp.ne.s32.totalorder %s85, %s86
      %p95 = scmp.eq.s32.totalorder %s33, 0
      %p96 = por %p94, %p95
      %p97 = scmp.ne.s32.totalorder %s85, %s86
      %p98 = scmp.eq.s32.totalorder %s34, 1
      %p99 = por %p97, %p98
      %p101 = scmp.ne.s32.totalorder %s86, %s100
      %p102 = scmp.eq.s32.totalorder %s34, 0
      %p103 = por %p101, %p102
      %s105 = sadd.s32 %s104, 1
      %p108 = scmp.eq.s32.totalorder %s28, 1
      %p109 = scmp.ne.s32.totalorder %s104, %s106
      %p110 = scmp.eq.s32.totalorder %s28, 0
      %p111 = por %p109, %p110
      %p112 = scmp.ne.s32.totalorder %s104, %s106
      %p113 = scmp.eq.s32.totalorder %s33, 1
      %p114 = por %p112, %p113
      %p115 = scmp.ne.s32.totalorder %s106, %s107
      %p116 = scmp.eq.s32.totalorder %s33, 0
      %p117 = por %p115, %p116
      %p118 = scmp.ne.s32.totalorder %s106, %s107
      %p119 = scmp.eq.s32.totalorder %s34, 1
      %p120 = por %p118, %p119
      %p122 = scmp.ne.s32.totalorder %s107, %s121
      %p123 = scmp.eq.s32.totalorder %s34, 0
      %p124 = por %p122, %p123
      %s126 = sadd.s32 %s125, 1
      %p129 = scmp.eq.s32.totalorder %s28, 1
      %p130 = scmp.ne.s32.totalorder %s125, %s127
      %p131 = scmp.eq.s32.totalorder %s28, 0
      %p132 = por %p130, %p131
      %p133 = scmp.ne.s32.totalorder %s125, %s127
      %p134 = scmp.eq.s32.totalorder %s33, 1
      %p135 = por %p133, %p134
      %p136 = scmp.ne.s32.totalorder %s127, %s128
      %p137 = scmp.eq.s32.totalorder %s33, 0
      %p138 = por %p136, %p137
      %p139 = scmp.ne.s32.totalorder %s127, %s128
      %p140 = scmp.eq.s32.totalorder %s34, 1
      %p141 = por %p139, %p140
      %p143 = scmp.ne.s32.totalorder %s128, %s142
      %p144 = scmp.eq.s32.totalorder %s34, 0
      %p145 = por %p143, %p144
      %s147 = sadd.s32 %s146, 1
      %p150 = scmp.eq.s32.totalorder %s28, 1
      %p151 = scmp.ne.s32.totalorder %s146, %s148
      %p152 = scmp.eq.s32.totalorder %s28, 0
      %p153 = por %p151, %p152
      %p154 = scmp.ne.s32.totalorder %s146, %s148
      %p155 = scmp.eq.s32.totalorder %s33, 1
      %p156 = por %p154, %p155
      %p157 = scmp.ne.s32.totalorder %s148, %s149
      %p158 = scmp.eq.s32.totalorder %s33, 0
      %p159 = por %p157, %p158
      %p160 = scmp.ne.s32.totalorder %s148, %s149
      %p161 = scmp.eq.s32.totalorder %s34, 1
      %p162 = por %p160, %p161
      %p164 = scmp.ne.s32.totalorder %s149, %s163
      %p165 = scmp.eq.s32.totalorder %s34, 0
      %p166 = por %p164, %p165
      %s168 = sadd.s32 %s167, 1
      %p171 = scmp.eq.s32.totalorder %s28, 1
      %p172 = scmp.ne.s32.totalorder %s167, %s169
      %p173 = scmp.eq.s32.totalorder %s28, 0
      %p174 = por %p172, %p173
      %p175 = scmp.ne.s32.totalorder %s167, %s169
      %p176 = scmp.eq.s32.totalorder %s33, 1
      %p177 = por %p175, %p176
      %p178 = scmp.ne.s32.totalorder %s169, %s170
      %p179 = scmp.eq.s32.totalorder %s33, 0
      %p180 = por %p178, %p179
      %p181 = scmp.ne.s32.totalorder %s169, %s170
      %p182 = scmp.eq.s32.totalorder %s34, 1
      %p183 = por %p181, %p182
      %p185 = scmp.ne.s32.totalorder %s170, %s184
      %p186 = scmp.eq.s32.totalorder %s34, 0
      %p187 = por %p185, %p186
      %s189 = sadd.s32 %s188, 1
      %p192 = scmp.eq.s32.totalorder %s28, 1
      %p193 = scmp.ne.s32.totalorder %s188, %s190
      %p194 = scmp.eq.s32.totalorder %s28, 0
      %p195 = por %p193, %p194
      %p196 = scmp.ne.s32.totalorder %s188, %s190
      %p197 = scmp.eq.s32.totalorder %s33, 1
      %p198 = por %p196, %p197
      %p199 = scmp.ne.s32.totalorder %s190, %s191
      %p200 = scmp.eq.s32.totalorder %s33, 0
      %p201 = por %p199, %p200
      %p202 = scmp.ne.s32.totalorder %s190, %s191
      %p203 = scmp.eq.s32.totalorder %s34, 1
      %p204 = por %p202, %p203
      %p206 = scmp.ne.s32.totalorder %s191, %s205
      %p207 = scmp.eq.s32.totalorder %s34, 0
      %p208 = por %p206, %p207
      %s210 = sadd.s32 %s209, 1
      %p213 = scmp.eq.s32.totalorder %s28, 1
      %p214 = scmp.ne.s32.totalorder %s209, %s211
      %p215 = scmp.eq.s32.totalorder %s28, 0
      %p216 = por %p214, %p215
      %p217 = scmp.ne.s32.totalorder %s209, %s211
      %p218 = scmp.eq.s32.totalorder %s33, 1
      %p219 = por %p217, %p218
      %p220 = scmp.ne.s32.totalorder %s211, %s212
      %p221 = scmp.eq.s32.totalorder %s33, 0
      %p222 = por %p220, %p221
      %p223 = scmp.ne.s32.totalorder %s211, %s212
      %p224 = scmp.eq.s32.totalorder %s34, 1
      %p225 = por %p223, %p224
      %p227 = scmp.ne.s32.totalorder %s212, %s226
      %p228 = scmp.eq.s32.totalorder %s34, 0
      %p229 = por %p227, %p228
      %s231 = sadd.s32 %s230, 1
      %p234 = scmp.eq.s32.totalorder %s28, 1
      %p235 = scmp.ne.s32.totalorder %s230, %s232
      %p236 = scmp.eq.s32.totalorder %s28, 0
      %p237 = por %p235, %p236
      %p238 = scmp.ne.s32.totalorder %s230, %s232
      %p239 = scmp.eq.s32.totalorder %s33, 1
      %p240 = por %p238, %p239
      %p241 = scmp.ne.s32.totalorder %s232, %s233
      %p242 = scmp.eq.s32.totalorder %s33, 0
      %p243 = por %p241, %p242
      %p244 = scmp.ne.s32.totalorder %s232, %s233
      %p245 = scmp.eq.s32.totalorder %s34, 1
      %p246 = por %p244, %p245
      %p248 = scmp.ne.s32.totalorder %s233, %s247
      %p249 = scmp.eq.s32.totalorder %s34, 0
      %p250 = por %p248, %p249
      %s252 = sadd.s32 %s251, 1
      %p255 = scmp.eq.s32.totalorder %s28, 1
      %p256 = scmp.ne.s32.totalorder %s251, %s253
      %p257 = scmp.eq.s32.totalorder %s28, 0
      %p258 = por %p256, %p257
      %p259 = scmp.ne.s32.totalorder %s251, %s253
      %p260 = scmp.eq.s32.totalorder %s33, 1
      %p261 = por %p259, %p260
      %p262 = scmp.ne.s32.totalorder %s253, %s254
      %p263 = scmp.eq.s32.totalorder %s33, 0
      %p264 = por %p262, %p263
      %p265 = scmp.ne.s32.totalorder %s253, %s254
      %p266 = scmp.eq.s32.totalorder %s34, 1
      %p267 = por %p265, %p266
      %p269 = scmp.ne.s32.totalorder %s254, %s268
      %p270 = scmp.eq.s32.totalorder %s34, 0
      %p271 = por %p269, %p270
      %s272 = ssub.s32 %s28, %s35
      %p273 = scmp.eq.s32.totalorder %s272, 0
      %s275 = sadd.s32 %s274, 1
      %s276 = scalar_select %p273, %s274, %s275
      %p279 = pneg %p273
      %p280 = scmp.eq.s32.totalorder %s28, 1
      %p281 = por %p279, %p280
      %p282 = scmp.ne.s32.totalorder %s274, %s277
      %p283 = scmp.eq.s32.totalorder %s28, 0
      %p284 = por %p282, %p283
      %p285 = scmp.ne.s32.totalorder %s274, %s277
      %p286 = scmp.eq.s32.totalorder %s33, 1
      %p287 = por %p285, %p286
      %p288 = scmp.ne.s32.totalorder %s277, %s278
      %p289 = scmp.eq.s32.totalorder %s33, 0
      %p290 = por %p288, %p289
      %p291 = scmp.ne.s32.totalorder %s277, %s278
      %p292 = scmp.eq.s32.totalorder %s34, 1
      %p293 = por %p291, %p292
      %p295 = scmp.ne.s32.totalorder %s278, %s294
      %p296 = scmp.eq.s32.totalorder %s34, 0
      %p297 = por %p295, %p296
      %p298 = scmp.le.s32.totalorder 1, %s28
      %p299 = scmp.lt.s32.totalorder %s28, 3
      %p300 = pnand %p298, %p299
      %p301 = pneg %p300
      // Predicated region
      $region9: #{tpu_custom_call.1} parent=5 // pred_check
        _
      $region10: #{tpu_custom_call.1} parent=5 // pred_check_branch
        %303 = sbr.rel (%p300) target = $region12
      $region11: #{tpu_custom_call.1} parent=5 // pred_region
        %s304 = ssub.s32 %s28, 1
        // Predicated region
        $region13: #{tpu_custom_call.1} parent=11 // pred_check
          %p305 = pneg %p75
        $region14: #{tpu_custom_call.1} parent=11 // pred_check_branch
          %307 = sbr.rel (%p305) target = $region16
        $region15: #{tpu_custom_call.1} parent=11 // pred_region
          %s309 = ssub.s32 25088, 25088
          %310 = vsyncadd [#allocation6], %s309
          %s311 = sshll.u32 [#allocation5], 4
          %s312 = int_to_ptr.vmem [resolvable:$true] %s311
          %317 = dma.hbm_to_vmem [thread:$0]  %s1, 25088, %s312, [#allocation6], 256, 256, 16
        $region16: #{tpu_custom_call.1} parent=11 // pred_fallthru
          _
        // Predicated region
        $region17: #{tpu_custom_call.1} parent=11 // pred_check
          %p318 = pneg %p96
        $region18: #{tpu_custom_call.1} parent=11 // pred_check_branch
          %320 = sbr.rel (%p318) target = $region20
        $region19: #{tpu_custom_call.1} parent=11 // pred_region
          %s322 = ssub.s32 64, 64
          %323 = vsyncadd [#allocation6], %s322
          %s325 = sshll.u32 [#allocation7], 4
          %s326 = int_to_ptr.vmem [resolvable:$true] %s325
          %328 = dma.hbm_to_vmem [thread:$0]  %s2, 64, %s326, [#allocation6]
        $region20: #{tpu_custom_call.1} parent=11 // pred_fallthru
          _
        // Predicated region
        $region21: #{tpu_custom_call.1} parent=11 // pred_check
          %p329 = pneg %p117
        $region22: #{tpu_custom_call.1} parent=11 // pred_check_branch
          %331 = sbr.rel (%p329) target = $region24
        $region23: #{tpu_custom_call.1} parent=11 // pred_region
          %s333 = ssub.s32 8192, 8192
          %334 = vsyncadd [#allocation9], %s333
          %s335 = sshll.u32 [#allocation8], 4
          %s336 = int_to_ptr.vmem [resolvable:$true] %s335
          %341 = dma.hbm_to_vmem [thread:$0]  %s3, 8192, %s336, [#allocation9], 128, 128, 8
        $region24: #{tpu_custom_call.1} parent=11 // pred_fallthru
          _
        // Predicated region
        $region25: #{tpu_custom_call.1} parent=11 // pred_check
          %p342 = pneg %p138
        $region26: #{tpu_custom_call.1} parent=11 // pred_check_branch
          %344 = sbr.rel (%p342) target = $region28
        $region27: #{tpu_custom_call.1} parent=11 // pred_region
          %s346 = ssub.s32 32, 32
          %347 = vsyncadd [#allocation9], %s346
          %s349 = sshll.u32 [#allocation10], 4
          %s350 = int_to_ptr.vmem [resolvable:$true] %s349
          %352 = dma.hbm_to_vmem [thread:$0]  %s4, 32, %s350, [#allocation9]
        $region28: #{tpu_custom_call.1} parent=11 // pred_fallthru
          _
        // Predicated region
        $region29: #{tpu_custom_call.1} parent=11 // pred_check
          %p353 = pneg %p159
        $region30: #{tpu_custom_call.1} parent=11 // pred_check_branch
          %355 = sbr.rel (%p353) target = $region32
        $region31: #{tpu_custom_call.1} parent=11 // pred_region
          %s357 = ssub.s32 2048, 2048
          %358 = vsyncadd [#allocation12], %s357
          %s359 = sshll.u32 [#allocation11], 4
          %s360 = int_to_ptr.vmem [resolvable:$true] %s359
          %365 = dma.hbm_to_vmem [thread:$0]  %s5, 2048, %s360, [#allocation12], 64, 64, 4
        $region32: #{tpu_custom_call.1} parent=11 // pred_fallthru
          _
        // Predicated region
        $region33: #{tpu_custom_call.1} parent=11 // pred_check
          %p366 = pneg %p180
        $region34: #{tpu_custom_call.1} parent=11 // pred_check_branch
          %368 = sbr.rel (%p366) target = $region36
        $region35: #{tpu_custom_call.1} parent=11 // pred_region
          %s370 = ssub.s32 16, 16
          %371 = vsyncadd [#allocation12], %s370
          %s373 = sshll.u32 [#allocation13], 4
          %s374 = int_to_ptr.vmem [resolvable:$true] %s373
          %376 = dma.hbm_to_vmem [thread:$0]  %s6, 16, %s374, [#allocation12]
        $region36: #{tpu_custom_call.1} parent=11 // pred_fallthru
          _
        // Predicated region
        $region37: #{tpu_custom_call.1} parent=11 // pred_check
          %p377 = pneg %p201
        $region38: #{tpu_custom_call.1} parent=11 // pred_check_branch
          %379 = sbr.rel (%p377) target = $region40
        $region39: #{tpu_custom_call.1} parent=11 // pred_region
          _
        $region40: #{tpu_custom_call.1} parent=11 // pred_fallthru
          _
        // Predicated region
        $region41: #{tpu_custom_call.1} parent=11 // pred_check
          %p380 = pneg %p222
        $region42: #{tpu_custom_call.1} parent=11 // pred_check_branch
          %382 = sbr.rel (%p380) target = $region44
        $region43: #{tpu_custom_call.1} parent=11 // pred_region
          %s384 = ssub.s32 16, 16
          %385 = vsyncadd [#allocation15], %s384
          %s387 = sshll.u32 [#allocation14], 4
          %s388 = int_to_ptr.vmem [resolvable:$true] %s387
          %390 = dma.hbm_to_vmem [thread:$0]  %s8, 16, %s388, [#allocation15]
        $region44: #{tpu_custom_call.1} parent=11 // pred_fallthru
          _
        // Predicated region
        $region45: #{tpu_custom_call.1} parent=11 // pred_check
          %p391 = pneg %p243
        $region46: #{tpu_custom_call.1} parent=11 // pred_check_branch
          %393 = sbr.rel (%p391) target = $region48
        $region47: #{tpu_custom_call.1} parent=11 // pred_region
          %s395 = ssub.s32 512, 512
          %396 = vsyncadd [#allocation15], %s395
          %s397 = sshll.u32 [#allocation16], 4
          %s398 = int_to_ptr.vmem [resolvable:$true] %s397
          %403 = dma.hbm_to_vmem [thread:$0]  %s9, 512, %s398, [#allocation15], 64, 64, 4
        $region48: #{tpu_custom_call.1} parent=11 // pred_fallthru
          _
        // Predicated region
        $region49: #{tpu_custom_call.1} parent=11 // pred_check
          %p404 = pneg %p264
        $region50: #{tpu_custom_call.1} parent=11 // pred_check_branch
          %406 = sbr.rel (%p404) target = $region52
        $region51: #{tpu_custom_call.1} parent=11 // pred_region
          %s408 = ssub.s32 16, 16
          %409 = vsyncadd [#allocation18], %s408
          %s411 = sshll.u32 [#allocation17], 4
          %s412 = int_to_ptr.vmem [resolvable:$true] %s411
          %414 = dma.hbm_to_vmem [thread:$0]  %s10, 16, %s412, [#allocation18]
        $region52: #{tpu_custom_call.1} parent=11 // pred_fallthru
          _
      $region12: #{tpu_custom_call.1} parent=5 // pred_fallthru
        _
      %p415 = scmp.lt.s32.totalorder %s28, 2
      // Predicated region
      $region53: #{tpu_custom_call.1} parent=5 // pred_check
        %p416 = pneg %p415
      $region54: #{tpu_custom_call.1} parent=5 // pred_check_branch
        %418 = sbr.rel (%p416) target = $region56
      $region55: #{tpu_custom_call.1} parent=5 // pred_region
        // Predicated region
        $region57: #{tpu_custom_call.1} parent=55 // pred_check
          %p419 = pneg %p48
        $region58: #{tpu_custom_call.1} parent=55 // pred_check_branch
          %421 = sbr.rel (%p419) target = $region60
        $region59: #{tpu_custom_call.1} parent=55 // pred_region
          %s422 = sand.u32 %s38, 1
          %s423 = scalar_lea.sflag [#allocation3], %s422
          %s424 = sand.u32 %s38, 1
          %s425 = smul.addr %s424, 1792
          %s426 = scalar_lea.vmem [#allocation2], %s425
          %s427 = smul.u32 32, %s28
          %s428 = ssub.s32 38, %s427
          %p429 = scmp.lt.s32.totalorder %s428, 32
          %s430 = scalar_select %p429, %s428, 32
          %s431 = smul.u32 128, %s430
          %s432 = smul.u32 %s431, 7
          %s434 = ssub.s32 28672, %s432
          %435 = vsyncadd %s423, %s434
          %p436 = scmp.ne.s32.totalorder 0, %s432
          %s437 = smul.addr %s427, 7
          %s438 = smul.addr %s437, 128
          %s439 = scalar_lea.hbm %s0, %s438
          %s440 = smul.u32 56, %s430
          %s441 = sshll.u32 %s426, 4
          %s442 = int_to_ptr.vmem [resolvable:$true] %s441
          %s443 = sshll.u32 %s440, 4
          %447 = dma.hbm_to_vmem [thread:$0]  (%p436), %s439, %s443, %s442, %s423, 896, 896, 56
        $region60: #{tpu_custom_call.1} parent=55 // pred_fallthru
          _
      $region56: #{tpu_custom_call.1} parent=5 // pred_fallthru
        _
      %p448 = scmp.le.s32.totalorder 1, %s28
      %p449 = scmp.lt.s32.totalorder %s28, 3
      %p450 = pnand %p448, %p449
      %p451 = pneg %p450
      // Predicated region
      $region61: #{tpu_custom_call.1} parent=5 // pred_check
        _
      $region62: #{tpu_custom_call.1} parent=5 // pred_check_branch
        %453 = sbr.rel (%p450) target = $region64
      $region63: #{tpu_custom_call.1} parent=5 // pred_region
        %s454 = ssub.s32 %s28, 1
        %s455 = sand.u32 %s41, 1
        %s456 = scalar_lea.sflag [#allocation3], %s455
        %s457 = sand.u32 %s41, 1
        %s458 = smul.addr %s457, 1792
        %s459 = scalar_lea.vmem [#allocation2], %s458
        // Predicated region
        $region65: #{tpu_custom_call.1} parent=63 // pred_check
          %p460 = pneg %p54
        $region66: #{tpu_custom_call.1} parent=63 // pred_check_branch
          %462 = sbr.rel (%p460) target = $region68
        $region67: #{tpu_custom_call.1} parent=63 // pred_region
          %463 = dma.done %s456, 28672
        $region68: #{tpu_custom_call.1} parent=63 // pred_fallthru
          _
        // Predicated region
        $region69: #{tpu_custom_call.1} parent=63 // pred_check
          %p464 = pneg %p75
        $region70: #{tpu_custom_call.1} parent=63 // pred_check_branch
          %466 = sbr.rel (%p464) target = $region72
        $region71: #{tpu_custom_call.1} parent=63 // pred_region
          %467 = dma.done [#allocation6], 25088
        $region72: #{tpu_custom_call.1} parent=63 // pred_fallthru
          _
        // Predicated region
        $region73: #{tpu_custom_call.1} parent=63 // pred_check
          %p468 = pneg %p96
        $region74: #{tpu_custom_call.1} parent=63 // pred_check_branch
          %470 = sbr.rel (%p468) target = $region76
        $region75: #{tpu_custom_call.1} parent=63 // pred_region
          %471 = dma.done [#allocation6], 64
        $region76: #{tpu_custom_call.1} parent=63 // pred_fallthru
          _
        // Predicated region
        $region77: #{tpu_custom_call.1} parent=63 // pred_check
          %p472 = pneg %p117
        $region78: #{tpu_custom_call.1} parent=63 // pred_check_branch
          %474 = sbr.rel (%p472) target = $region80
        $region79: #{tpu_custom_call.1} parent=63 // pred_region
          %475 = dma.done [#allocation9], 8192
        $region80: #{tpu_custom_call.1} parent=63 // pred_fallthru
          _
        // Predicated region
        $region81: #{tpu_custom_call.1} parent=63 // pred_check
          %p476 = pneg %p138
        $region82: #{tpu_custom_call.1} parent=63 // pred_check_branch
          %478 = sbr.rel (%p476) target = $region84
        $region83: #{tpu_custom_call.1} parent=63 // pred_region
          %479 = dma.done [#allocation9], 32
        $region84: #{tpu_custom_call.1} parent=63 // pred_fallthru
          _
        // Predicated region
        $region85: #{tpu_custom_call.1} parent=63 // pred_check
          %p480 = pneg %p159
        $region86: #{tpu_custom_call.1} parent=63 // pred_check_branch
          %482 = sbr.rel (%p480) target = $region88
        $region87: #{tpu_custom_call.1} parent=63 // pred_region
          %483 = dma.done [#allocation12], 2048
        $region88: #{tpu_custom_call.1} parent=63 // pred_fallthru
          _
        // Predicated region
        $region89: #{tpu_custom_call.1} parent=63 // pred_check
          %p484 = pneg %p180
        $region90: #{tpu_custom_call.1} parent=63 // pred_check_branch
          %486 = sbr.rel (%p484) target = $region92
        $region91: #{tpu_custom_call.1} parent=63 // pred_region
          %487 = dma.done [#allocation12], 16
        $region92: #{tpu_custom_call.1} parent=63 // pred_fallthru
          _
        // Predicated region
        $region93: #{tpu_custom_call.1} parent=63 // pred_check
          %p488 = pneg %p222
        $region94: #{tpu_custom_call.1} parent=63 // pred_check_branch
          %490 = sbr.rel (%p488) target = $region96
        $region95: #{tpu_custom_call.1} parent=63 // pred_region
          %491 = dma.done [#allocation15], 16
        $region96: #{tpu_custom_call.1} parent=63 // pred_fallthru
          _
        // Predicated region
        $region97: #{tpu_custom_call.1} parent=63 // pred_check
          %p492 = pneg %p243
        $region98: #{tpu_custom_call.1} parent=63 // pred_check_branch
          %494 = sbr.rel (%p492) target = $region100
        $region99: #{tpu_custom_call.1} parent=63 // pred_region
          %495 = dma.done [#allocation15], 512
        $region100: #{tpu_custom_call.1} parent=63 // pred_fallthru
          _
        // Predicated region
        $region101: #{tpu_custom_call.1} parent=63 // pred_check
          %p496 = pneg %p264
        $region102: #{tpu_custom_call.1} parent=63 // pred_check_branch
          %498 = sbr.rel (%p496) target = $region104
        $region103: #{tpu_custom_call.1} parent=63 // pred_region
          %499 = dma.done [#allocation18], 16
        $region104: #{tpu_custom_call.1} parent=63 // pred_fallthru
          _
        %s500 = sand.u32 %s41, 1
        %s501 = scalar_lea.sflag [#allocation3], %s500
        %s502 = sand.u32 %s41, 1
        %s503 = smul.addr %s502, 1792
        %s504 = scalar_lea.vmem [#allocation2], %s503
        %p505 = pneg %p54
        %p506 = pneg %p51
        %p507 = pneg %p75
        %p508 = pneg %p72
        %p509 = pneg %p96
        %p510 = pneg %p93
        %p511 = pneg %p117
        %p512 = pneg %p114
        %p513 = pneg %p138
        %p514 = pneg %p135
        %p515 = pneg %p159
        %p516 = pneg %p156
        %p517 = pneg %p180
        %p518 = pneg %p177
        %p519 = pneg %p201
        %p520 = pneg %p198
        %p521 = pneg %p222
        %p522 = pneg %p219
        %p523 = pneg %p243
        %p524 = pneg %p240
        %p525 = pneg %p264
        %p526 = pneg %p261
        %p527 = pneg %p290
        %p528 = pneg %p287
        %s529 = sand.u32 %s277, 1
        %s530 = scalar_lea.sflag [#allocation4], %s529
        %s531 = sand.u32 %s277, 1
        %s532 = smul.addr %s531, 256
        %s533 = scalar_lea.vmem [#allocation19], %s532
        %s534 = smul.u32 32, %s33
        %s535 = ssub.s32 38, %s534
        %p536 = scmp.lt.s32.totalorder %s535, 32
        %s537 = scalar_select %p536, %s535, 32
        %s538 = smul.u32 128, %s537
        %s539 = smul.u32 %s538, 7
        %s540 = smul.u32 32, %s33
        %s541 = ssub.s32 38, %s540
        %p542 = scmp.lt.s32.totalorder %s541, 32
        %s543 = scalar_select %p542, %s541, 32
        %s544 = smul.u32 128, %s543
        %v546 = vld [vmem:[%s459] sm:$0xff]
        %v547 = vld [vmem:[%s459 + $0x8] sm:$0xff]
        %v548 = vld [vmem:[%s459 + $0x10] sm:$0xff]
        %v549 = vld [vmem:[%s459 + $0x18] sm:$0xff]
        %v550 = vld [vmem:[%s459 + $0x20] sm:$0xff]
        %v551 = vld [vmem:[%s459 + $0x28] sm:$0xff]
        %v552 = vld [vmem:[%s459 + $0x30] sm:$0xff]
        %v553 = vld [vmem:[%s459 + $0x38] sm:$0xff]
        %v554 = vld [vmem:[%s459 + $0x40] sm:$0xff]
        %v555 = vld [vmem:[%s459 + $0x48] sm:$0xff]
        %v556 = vld [vmem:[%s459 + $0x50] sm:$0xff]
        %v557 = vld [vmem:[%s459 + $0x58] sm:$0xff]
        %v558 = vld [vmem:[%s459 + $0x60] sm:$0xff]
        %v559 = vld [vmem:[%s459 + $0x68] sm:$0xff]
        %v560 = vld [vmem:[%s459 + $0x70] sm:$0xff]
        %v561 = vld [vmem:[%s459 + $0x78] sm:$0xff]
        %v562 = vld [vmem:[%s459 + $0x80] sm:$0xff]
        %v563 = vld [vmem:[%s459 + $0x88] sm:$0xff]
        %v564 = vld [vmem:[%s459 + $0x90] sm:$0xff]
        %v565 = vld [vmem:[%s459 + $0x98] sm:$0xff]
        %v566 = vld [vmem:[%s459 + $0xa0] sm:$0xff]
        %v567 = vld [vmem:[%s459 + $0xa8] sm:$0xff]
        %v568 = vld [vmem:[%s459 + $0xb0] sm:$0xff]
        %v569 = vld [vmem:[%s459 + $0xb8] sm:$0xff]
        %v570 = vld [vmem:[%s459 + $0xc0] sm:$0xff]
        %v571 = vld [vmem:[%s459 + $0xc8] sm:$0xff]
        %v572 = vld [vmem:[%s459 + $0xd0] sm:$0xff]
        %v573 = vld [vmem:[%s459 + $0xd8] sm:$0xff]
        %v574 = vld [vmem:[%s459 + $0xe0] sm:$0xff]
        %v575 = vld [vmem:[%s459 + $0xe8] sm:$0xff]
        %v576 = vld [vmem:[%s459 + $0xf0] sm:$0xff]
        %v577 = vld [vmem:[%s459 + $0xf8] sm:$0xff]
        %v578 = vld [vmem:[%s459 + $0x100] sm:$0xff]
        %v579 = vld [vmem:[%s459 + $0x108] sm:$0xff]
        %v580 = vld [vmem:[%s459 + $0x110] sm:$0xff]
        %v581 = vld [vmem:[%s459 + $0x118] sm:$0xff]
        %v582 = vld [vmem:[%s459 + $0x120] sm:$0xff]
        %v583 = vld [vmem:[%s459 + $0x128] sm:$0xff]
        %v584 = vld [vmem:[%s459 + $0x130] sm:$0xff]
        %v585 = vld [vmem:[%s459 + $0x138] sm:$0xff]
        %v586 = vld [vmem:[%s459 + $0x140] sm:$0xff]
        %v587 = vld [vmem:[%s459 + $0x148] sm:$0xff]
        %v588 = vld [vmem:[%s459 + $0x150] sm:$0xff]
        %v589 = vld [vmem:[%s459 + $0x158] sm:$0xff]
        %v590 = vld [vmem:[%s459 + $0x160] sm:$0xff]
        %v591 = vld [vmem:[%s459 + $0x168] sm:$0xff]
        %v592 = vld [vmem:[%s459 + $0x170] sm:$0xff]
        %v593 = vld [vmem:[%s459 + $0x178] sm:$0xff]
        %v594 = vld [vmem:[%s459 + $0x180] sm:$0xff]
        %v595 = vld [vmem:[%s459 + $0x188] sm:$0xff]
        %v596 = vld [vmem:[%s459 + $0x190] sm:$0xff]
        %v597 = vld [vmem:[%s459 + $0x198] sm:$0xff]
        %v598 = vld [vmem:[%s459 + $0x1a0] sm:$0xff]
        %v599 = vld [vmem:[%s459 + $0x1a8] sm:$0xff]
        %v600 = vld [vmem:[%s459 + $0x1b0] sm:$0xff]
        %v601 = vld [vmem:[%s459 + $0x1b8] sm:$0xff]
        %v602 = vld [vmem:[%s459 + $0x1c0] sm:$0xff]
        %v603 = vld [vmem:[%s459 + $0x1c8] sm:$0xff]
        %v604 = vld [vmem:[%s459 + $0x1d0] sm:$0xff]
        %v605 = vld [vmem:[%s459 + $0x1d8] sm:$0xff]
        %v606 = vld [vmem:[%s459 + $0x1e0] sm:$0xff]
        %v607 = vld [vmem:[%s459 + $0x1e8] sm:$0xff]
        %v608 = vld [vmem:[%s459 + $0x1f0] sm:$0xff]
        %v609 = vld [vmem:[%s459 + $0x1f8] sm:$0xff]
        %v610 = vld [vmem:[%s459 + $0x200] sm:$0xff]
        %v611 = vld [vmem:[%s459 + $0x208] sm:$0xff]
        %v612 = vld [vmem:[%s459 + $0x210] sm:$0xff]
        %v613 = vld [vmem:[%s459 + $0x218] sm:$0xff]
        %v614 = vld [vmem:[%s459 + $0x220] sm:$0xff]
        %v615 = vld [vmem:[%s459 + $0x228] sm:$0xff]
        %v616 = vld [vmem:[%s459 + $0x230] sm:$0xff]
        %v617 = vld [vmem:[%s459 + $0x238] sm:$0xff]
        %v618 = vld [vmem:[%s459 + $0x240] sm:$0xff]
        %v619 = vld [vmem:[%s459 + $0x248] sm:$0xff]
        %v620 = vld [vmem:[%s459 + $0x250] sm:$0xff]
        %v621 = vld [vmem:[%s459 + $0x258] sm:$0xff]
        %v622 = vld [vmem:[%s459 + $0x260] sm:$0xff]
        %v623 = vld [vmem:[%s459 + $0x268] sm:$0xff]
        %v624 = vld [vmem:[%s459 + $0x270] sm:$0xff]
        %v625 = vld [vmem:[%s459 + $0x278] sm:$0xff]
        %v626 = vld [vmem:[%s459 + $0x280] sm:$0xff]
        %v627 = vld [vmem:[%s459 + $0x288] sm:$0xff]
        %v628 = vld [vmem:[%s459 + $0x290] sm:$0xff]
        %v629 = vld [vmem:[%s459 + $0x298] sm:$0xff]
        %v630 = vld [vmem:[%s459 + $0x2a0] sm:$0xff]
        %v631 = vld [vmem:[%s459 + $0x2a8] sm:$0xff]
        %v632 = vld [vmem:[%s459 + $0x2b0] sm:$0xff]
        %v633 = vld [vmem:[%s459 + $0x2b8] sm:$0xff]
        %v634 = vld [vmem:[%s459 + $0x2c0] sm:$0xff]
        %v635 = vld [vmem:[%s459 + $0x2c8] sm:$0xff]
        %v636 = vld [vmem:[%s459 + $0x2d0] sm:$0xff]
        %v637 = vld [vmem:[%s459 + $0x2d8] sm:$0xff]
        %v638 = vld [vmem:[%s459 + $0x2e0] sm:$0xff]
        %v639 = vld [vmem:[%s459 + $0x2e8] sm:$0xff]
        %v640 = vld [vmem:[%s459 + $0x2f0] sm:$0xff]
        %v641 = vld [vmem:[%s459 + $0x2f8] sm:$0xff]
        %v642 = vld [vmem:[%s459 + $0x300] sm:$0xff]
        %v643 = vld [vmem:[%s459 + $0x308] sm:$0xff]
        %v644 = vld [vmem:[%s459 + $0x310] sm:$0xff]
        %v645 = vld [vmem:[%s459 + $0x318] sm:$0xff]
        %v646 = vld [vmem:[%s459 + $0x320] sm:$0xff]
        %v647 = vld [vmem:[%s459 + $0x328] sm:$0xff]
        %v648 = vld [vmem:[%s459 + $0x330] sm:$0xff]
        %v649 = vld [vmem:[%s459 + $0x338] sm:$0xff]
        %v650 = vld [vmem:[%s459 + $0x340] sm:$0xff]
        %v651 = vld [vmem:[%s459 + $0x348] sm:$0xff]
        %v652 = vld [vmem:[%s459 + $0x350] sm:$0xff]
        %v653 = vld [vmem:[%s459 + $0x358] sm:$0xff]
        %v654 = vld [vmem:[%s459 + $0x360] sm:$0xff]
        %v655 = vld [vmem:[%s459 + $0x368] sm:$0xff]
        %v656 = vld [vmem:[%s459 + $0x370] sm:$0xff]
        %v657 = vld [vmem:[%s459 + $0x378] sm:$0xff]
        %v658 = vld [vmem:[%s459 + $0x380] sm:$0xff]
        %v659 = vld [vmem:[%s459 + $0x388] sm:$0xff]
        %v660 = vld [vmem:[%s459 + $0x390] sm:$0xff]
        %v661 = vld [vmem:[%s459 + $0x398] sm:$0xff]
        %v662 = vld [vmem:[%s459 + $0x3a0] sm:$0xff]
        %v663 = vld [vmem:[%s459 + $0x3a8] sm:$0xff]
        %v664 = vld [vmem:[%s459 + $0x3b0] sm:$0xff]
        %v665 = vld [vmem:[%s459 + $0x3b8] sm:$0xff]
        %v666 = vld [vmem:[%s459 + $0x3c0] sm:$0xff]
        %v667 = vld [vmem:[%s459 + $0x3c8] sm:$0xff]
        %v668 = vld [vmem:[%s459 + $0x3d0] sm:$0xff]
        %v669 = vld [vmem:[%s459 + $0x3d8] sm:$0xff]
        %v670 = vld [vmem:[%s459 + $0x3e0] sm:$0xff]
        %v671 = vld [vmem:[%s459 + $0x3e8] sm:$0xff]
        %v672 = vld [vmem:[%s459 + $0x3f0] sm:$0xff]
        %v673 = vld [vmem:[%s459 + $0x3f8] sm:$0xff]
        %v674 = vld [vmem:[%s459 + $0x400] sm:$0xff]
        %v675 = vld [vmem:[%s459 + $0x408] sm:$0xff]
        %v676 = vld [vmem:[%s459 + $0x410] sm:$0xff]
        %v677 = vld [vmem:[%s459 + $0x418] sm:$0xff]
        %v678 = vld [vmem:[%s459 + $0x420] sm:$0xff]
        %v679 = vld [vmem:[%s459 + $0x428] sm:$0xff]
        %v680 = vld [vmem:[%s459 + $0x430] sm:$0xff]
        %v681 = vld [vmem:[%s459 + $0x438] sm:$0xff]
        %v682 = vld [vmem:[%s459 + $0x440] sm:$0xff]
        %v683 = vld [vmem:[%s459 + $0x448] sm:$0xff]
        %v684 = vld [vmem:[%s459 + $0x450] sm:$0xff]
        %v685 = vld [vmem:[%s459 + $0x458] sm:$0xff]
        %v686 = vld [vmem:[%s459 + $0x460] sm:$0xff]
        %v687 = vld [vmem:[%s459 + $0x468] sm:$0xff]
        %v688 = vld [vmem:[%s459 + $0x470] sm:$0xff]
        %v689 = vld [vmem:[%s459 + $0x478] sm:$0xff]
        %v690 = vld [vmem:[%s459 + $0x480] sm:$0xff]
        %v691 = vld [vmem:[%s459 + $0x488] sm:$0xff]
        %v692 = vld [vmem:[%s459 + $0x490] sm:$0xff]
        %v693 = vld [vmem:[%s459 + $0x498] sm:$0xff]
        %v694 = vld [vmem:[%s459 + $0x4a0] sm:$0xff]
        %v695 = vld [vmem:[%s459 + $0x4a8] sm:$0xff]
        %v696 = vld [vmem:[%s459 + $0x4b0] sm:$0xff]
        %v697 = vld [vmem:[%s459 + $0x4b8] sm:$0xff]
        %v698 = vld [vmem:[%s459 + $0x4c0] sm:$0xff]
        %v699 = vld [vmem:[%s459 + $0x4c8] sm:$0xff]
        %v700 = vld [vmem:[%s459 + $0x4d0] sm:$0xff]
        %v701 = vld [vmem:[%s459 + $0x4d8] sm:$0xff]
        %v702 = vld [vmem:[%s459 + $0x4e0] sm:$0xff]
        %v703 = vld [vmem:[%s459 + $0x4e8] sm:$0xff]
        %v704 = vld [vmem:[%s459 + $0x4f0] sm:$0xff]
        %v705 = vld [vmem:[%s459 + $0x4f8] sm:$0xff]
        %v706 = vld [vmem:[%s459 + $0x500] sm:$0xff]
        %v707 = vld [vmem:[%s459 + $0x508] sm:$0xff]
        %v708 = vld [vmem:[%s459 + $0x510] sm:$0xff]
        %v709 = vld [vmem:[%s459 + $0x518] sm:$0xff]
        %v710 = vld [vmem:[%s459 + $0x520] sm:$0xff]
        %v711 = vld [vmem:[%s459 + $0x528] sm:$0xff]
        %v712 = vld [vmem:[%s459 + $0x530] sm:$0xff]
        %v713 = vld [vmem:[%s459 + $0x538] sm:$0xff]
        %v714 = vld [vmem:[%s459 + $0x540] sm:$0xff]
        %v715 = vld [vmem:[%s459 + $0x548] sm:$0xff]
        %v716 = vld [vmem:[%s459 + $0x550] sm:$0xff]
        %v717 = vld [vmem:[%s459 + $0x558] sm:$0xff]
        %v718 = vld [vmem:[%s459 + $0x560] sm:$0xff]
        %v719 = vld [vmem:[%s459 + $0x568] sm:$0xff]
        %v720 = vld [vmem:[%s459 + $0x570] sm:$0xff]
        %v721 = vld [vmem:[%s459 + $0x578] sm:$0xff]
        %v722 = vld [vmem:[%s459 + $0x580] sm:$0xff]
        %v723 = vld [vmem:[%s459 + $0x588] sm:$0xff]
        %v724 = vld [vmem:[%s459 + $0x590] sm:$0xff]
        %v725 = vld [vmem:[%s459 + $0x598] sm:$0xff]
        %v726 = vld [vmem:[%s459 + $0x5a0] sm:$0xff]
        %v727 = vld [vmem:[%s459 + $0x5a8] sm:$0xff]
        %v728 = vld [vmem:[%s459 + $0x5b0] sm:$0xff]
        %v729 = vld [vmem:[%s459 + $0x5b8] sm:$0xff]
        %v730 = vld [vmem:[%s459 + $0x5c0] sm:$0xff]
        %v731 = vld [vmem:[%s459 + $0x5c8] sm:$0xff]
        %v732 = vld [vmem:[%s459 + $0x5d0] sm:$0xff]
        %v733 = vld [vmem:[%s459 + $0x5d8] sm:$0xff]
        %v734 = vld [vmem:[%s459 + $0x5e0] sm:$0xff]
        %v735 = vld [vmem:[%s459 + $0x5e8] sm:$0xff]
        %v736 = vld [vmem:[%s459 + $0x5f0] sm:$0xff]
        %v737 = vld [vmem:[%s459 + $0x5f8] sm:$0xff]
        %v738 = vld [vmem:[%s459 + $0x600] sm:$0xff]
        %v739 = vld [vmem:[%s459 + $0x608] sm:$0xff]
        %v740 = vld [vmem:[%s459 + $0x610] sm:$0xff]
        %v741 = vld [vmem:[%s459 + $0x618] sm:$0xff]
        %v742 = vld [vmem:[%s459 + $0x620] sm:$0xff]
        %v743 = vld [vmem:[%s459 + $0x628] sm:$0xff]
        %v744 = vld [vmem:[%s459 + $0x630] sm:$0xff]
        %v745 = vld [vmem:[%s459 + $0x638] sm:$0xff]
        %v746 = vld [vmem:[%s459 + $0x640] sm:$0xff]
        %v747 = vld [vmem:[%s459 + $0x648] sm:$0xff]
        %v748 = vld [vmem:[%s459 + $0x650] sm:$0xff]
        %v749 = vld [vmem:[%s459 + $0x658] sm:$0xff]
        %v750 = vld [vmem:[%s459 + $0x660] sm:$0xff]
        %v751 = vld [vmem:[%s459 + $0x668] sm:$0xff]
        %v752 = vld [vmem:[%s459 + $0x670] sm:$0xff]
        %v753 = vld [vmem:[%s459 + $0x678] sm:$0xff]
        %v754 = vld [vmem:[%s459 + $0x680] sm:$0xff]
        %v755 = vld [vmem:[%s459 + $0x688] sm:$0xff]
        %v756 = vld [vmem:[%s459 + $0x690] sm:$0xff]
        %v757 = vld [vmem:[%s459 + $0x698] sm:$0xff]
        %v758 = vld [vmem:[%s459 + $0x6a0] sm:$0xff]
        %v759 = vld [vmem:[%s459 + $0x6a8] sm:$0xff]
        %v760 = vld [vmem:[%s459 + $0x6b0] sm:$0xff]
        %v761 = vld [vmem:[%s459 + $0x6b8] sm:$0xff]
        %v762 = vld [vmem:[%s459 + $0x6c0] sm:$0xff]
        %v763 = vld [vmem:[%s459 + $0x6c8] sm:$0xff]
        %v764 = vld [vmem:[%s459 + $0x6d0] sm:$0xff]
        %v765 = vld [vmem:[%s459 + $0x6d8] sm:$0xff]
        %v766 = vld [vmem:[%s459 + $0x6e0] sm:$0xff]
        %v767 = vld [vmem:[%s459 + $0x6e8] sm:$0xff]
        %v768 = vld [vmem:[%s459 + $0x6f0] sm:$0xff]
        %v769 = vld [vmem:[%s459 + $0x6f8] sm:$0xff]
        %v770 = vpack.c.bf16 %v553, %v546
        %v771 = vpack.c.bf16 %v554, %v547
        %v772 = vpack.c.bf16 %v555, %v548
        %v773 = vpack.c.bf16 %v556, %v549
        %v774 = vpack.c.bf16 %v557, %v550
        %v775 = vpack.c.bf16 %v558, %v551
        %v776 = vpack.c.bf16 %v559, %v552
        %v777 = vpack.c.bf16 %v567, %v560
        %v778 = vpack.c.bf16 %v568, %v561
        %v779 = vpack.c.bf16 %v569, %v562
        %v780 = vpack.c.bf16 %v570, %v563
        %v781 = vpack.c.bf16 %v571, %v564
        %v782 = vpack.c.bf16 %v572, %v565
        %v783 = vpack.c.bf16 %v573, %v566
        %v784 = vpack.c.bf16 %v581, %v574
        %v785 = vpack.c.bf16 %v582, %v575
        %v786 = vpack.c.bf16 %v583, %v576
        %v787 = vpack.c.bf16 %v584, %v577
        %v788 = vpack.c.bf16 %v585, %v578
        %v789 = vpack.c.bf16 %v586, %v579
        %v790 = vpack.c.bf16 %v587, %v580
        %v791 = vpack.c.bf16 %v595, %v588
        %v792 = vpack.c.bf16 %v596, %v589
        %v793 = vpack.c.bf16 %v597, %v590
        %v794 = vpack.c.bf16 %v598, %v591
        %v795 = vpack.c.bf16 %v599, %v592
        %v796 = vpack.c.bf16 %v600, %v593
        %v797 = vpack.c.bf16 %v601, %v594
        %v798 = vpack.c.bf16 %v609, %v602
        %v799 = vpack.c.bf16 %v610, %v603
        %v800 = vpack.c.bf16 %v611, %v604
        %v801 = vpack.c.bf16 %v612, %v605
        %v802 = vpack.c.bf16 %v613, %v606
        %v803 = vpack.c.bf16 %v614, %v607
        %v804 = vpack.c.bf16 %v615, %v608
        %v805 = vpack.c.bf16 %v623, %v616
        %v806 = vpack.c.bf16 %v624, %v617
        %v807 = vpack.c.bf16 %v625, %v618
        %v808 = vpack.c.bf16 %v626, %v619
        %v809 = vpack.c.bf16 %v627, %v620
        %v810 = vpack.c.bf16 %v628, %v621
        %v811 = vpack.c.bf16 %v629, %v622
        %v812 = vpack.c.bf16 %v637, %v630
        %v813 = vpack.c.bf16 %v638, %v631
        %v814 = vpack.c.bf16 %v639, %v632
        %v815 = vpack.c.bf16 %v640, %v633
        %v816 = vpack.c.bf16 %v641, %v634
        %v817 = vpack.c.bf16 %v642, %v635
        %v818 = vpack.c.bf16 %v643, %v636
        %v819 = vpack.c.bf16 %v651, %v644
        %v820 = vpack.c.bf16 %v652, %v645
        %v821 = vpack.c.bf16 %v653, %v646
        %v822 = vpack.c.bf16 %v654, %v647
        %v823 = vpack.c.bf16 %v655, %v648
        %v824 = vpack.c.bf16 %v656, %v649
        %v825 = vpack.c.bf16 %v657, %v650
        %v826 = vpack.c.bf16 %v665, %v658
        %v827 = vpack.c.bf16 %v666, %v659
        %v828 = vpack.c.bf16 %v667, %v660
        %v829 = vpack.c.bf16 %v668, %v661
        %v830 = vpack.c.bf16 %v669, %v662
        %v831 = vpack.c.bf16 %v670, %v663
        %v832 = vpack.c.bf16 %v671, %v664
        %v833 = vpack.c.bf16 %v679, %v672
        %v834 = vpack.c.bf16 %v680, %v673
        %v835 = vpack.c.bf16 %v681, %v674
        %v836 = vpack.c.bf16 %v682, %v675
        %v837 = vpack.c.bf16 %v683, %v676
        %v838 = vpack.c.bf16 %v684, %v677
        %v839 = vpack.c.bf16 %v685, %v678
        %v840 = vpack.c.bf16 %v693, %v686
        %v841 = vpack.c.bf16 %v694, %v687
        %v842 = vpack.c.bf16 %v695, %v688
        %v843 = vpack.c.bf16 %v696, %v689
        %v844 = vpack.c.bf16 %v697, %v690
        %v845 = vpack.c.bf16 %v698, %v691
        %v846 = vpack.c.bf16 %v699, %v692
        %v847 = vpack.c.bf16 %v707, %v700
        %v848 = vpack.c.bf16 %v708, %v701
        %v849 = vpack.c.bf16 %v709, %v702
        %v850 = vpack.c.bf16 %v710, %v703
        %v851 = vpack.c.bf16 %v711, %v704
        %v852 = vpack.c.bf16 %v712, %v705
        %v853 = vpack.c.bf16 %v713, %v706
        %v854 = vpack.c.bf16 %v721, %v714
        %v855 = vpack.c.bf16 %v722, %v715
        %v856 = vpack.c.bf16 %v723, %v716
        %v857 = vpack.c.bf16 %v724, %v717
        %v858 = vpack.c.bf16 %v725, %v718
        %v859 = vpack.c.bf16 %v726, %v719
        %v860 = vpack.c.bf16 %v727, %v720
        %v861 = vpack.c.bf16 %v735, %v728
        %v862 = vpack.c.bf16 %v736, %v729
        %v863 = vpack.c.bf16 %v737, %v730
        %v864 = vpack.c.bf16 %v738, %v731
        %v865 = vpack.c.bf16 %v739, %v732
        %v866 = vpack.c.bf16 %v740, %v733
        %v867 = vpack.c.bf16 %v741, %v734
        %v868 = vpack.c.bf16 %v749, %v742
        %v869 = vpack.c.bf16 %v750, %v743
        %v870 = vpack.c.bf16 %v751, %v744
        %v871 = vpack.c.bf16 %v752, %v745
        %v872 = vpack.c.bf16 %v753, %v746
        %v873 = vpack.c.bf16 %v754, %v747
        %v874 = vpack.c.bf16 %v755, %v748
        %v875 = vpack.c.bf16 %v763, %v756
        %v876 = vpack.c.bf16 %v764, %v757
        %v877 = vpack.c.bf16 %v765, %v758
        %v878 = vpack.c.bf16 %v766, %v759
        %v879 = vpack.c.bf16 %v767, %v760
        %v880 = vpack.c.bf16 %v768, %v761
        %v881 = vpack.c.bf16 %v769, %v762
        %v882 = vld [vmem:[#allocation5] sm:$0xff]
        %v883 = vld [vmem:[#allocation5 + $0x8] sm:$0xff]
        %v884 = vld [vmem:[#allocation5 + $0x10] sm:$0xff]
        %v885 = vld [vmem:[#allocation5 + $0x18] sm:$0xff]
        %v886 = vld [vmem:[#allocation5 + $0x20] sm:$0xff]
        %v887 = vld [vmem:[#allocation5 + $0x28] sm:$0xff]
        %v888 = vld [vmem:[#allocation5 + $0x30] sm:$0xff]
        %v889 = vld [vmem:[#allocation5 + $0x38] sm:$0xff]
        %v890 = vld [vmem:[#allocation5 + $0x40] sm:$0xff]
        %v891 = vld [vmem:[#allocation5 + $0x48] sm:$0xff]
        %v892 = vld [vmem:[#allocation5 + $0x50] sm:$0xff]
        %v893 = vld [vmem:[#allocation5 + $0x58] sm:$0xff]
        %v894 = vld [vmem:[#allocation5 + $0x60] sm:$0xff]
        %v895 = vld [vmem:[#allocation5 + $0x68] sm:$0xff]
        %v896 = vld [vmem:[#allocation5 + $0x70] sm:$0xff]
        %v897 = vld [vmem:[#allocation5 + $0x78] sm:$0xff]
        %v898 = vld [vmem:[#allocation5 + $0x80] sm:$0xff]
        %v899 = vld [vmem:[#allocation5 + $0x88] sm:$0xff]
        %v900 = vld [vmem:[#allocation5 + $0x90] sm:$0xff]
        %v901 = vld [vmem:[#allocation5 + $0x98] sm:$0xff]
        %v902 = vld [vmem:[#allocation5 + $0xa0] sm:$0xff]
        %v903 = vld [vmem:[#allocation5 + $0xa8] sm:$0xff]
        %v904 = vld [vmem:[#allocation5 + $0xb0] sm:$0xff]
        %v905 = vld [vmem:[#allocation5 + $0xb8] sm:$0xff]
        %v906 = vld [vmem:[#allocation5 + $0xc0] sm:$0xff]
        %v907 = vld [vmem:[#allocation5 + $0xc8] sm:$0xff]
        %v908 = vld [vmem:[#allocation5 + $0xd0] sm:$0xff]
        %v909 = vld [vmem:[#allocation5 + $0xd8] sm:$0xff]
        %v910 = vld [vmem:[#allocation5 + $0xe0] sm:$0xff]
        %v911 = vld [vmem:[#allocation5 + $0xe8] sm:$0xff]
        %v912 = vld [vmem:[#allocation5 + $0xf0] sm:$0xff]
        %v913 = vld [vmem:[#allocation5 + $0xf8] sm:$0xff]
        %v914 = vld [vmem:[#allocation5 + $0x100] sm:$0xff]
        %v915 = vld [vmem:[#allocation5 + $0x108] sm:$0xff]
        %v916 = vld [vmem:[#allocation5 + $0x110] sm:$0xff]
        %v917 = vld [vmem:[#allocation5 + $0x118] sm:$0xff]
        %v918 = vld [vmem:[#allocation5 + $0x120] sm:$0xff]
        %v919 = vld [vmem:[#allocation5 + $0x128] sm:$0xff]
        %v920 = vld [vmem:[#allocation5 + $0x130] sm:$0xff]
        %v921 = vld [vmem:[#allocation5 + $0x138] sm:$0xff]
        %v922 = vld [vmem:[#allocation5 + $0x140] sm:$0xff]
        %v923 = vld [vmem:[#allocation5 + $0x148] sm:$0xff]
        %v924 = vld [vmem:[#allocation5 + $0x150] sm:$0xff]
        %v925 = vld [vmem:[#allocation5 + $0x158] sm:$0xff]
        %v926 = vld [vmem:[#allocation5 + $0x160] sm:$0xff]
        %v927 = vld [vmem:[#allocation5 + $0x168] sm:$0xff]
        %v928 = vld [vmem:[#allocation5 + $0x170] sm:$0xff]
        %v929 = vld [vmem:[#allocation5 + $0x178] sm:$0xff]
        %v930 = vld [vmem:[#allocation5 + $0x180] sm:$0xff]
        %v931 = vld [vmem:[#allocation5 + $0x188] sm:$0xff]
        %v932 = vld [vmem:[#allocation5 + $0x190] sm:$0xff]
        %v933 = vld [vmem:[#allocation5 + $0x198] sm:$0xff]
        %v934 = vld [vmem:[#allocation5 + $0x1a0] sm:$0xff]
        %v935 = vld [vmem:[#allocation5 + $0x1a8] sm:$0xff]
        %v936 = vld [vmem:[#allocation5 + $0x1b0] sm:$0xff]
        %v937 = vld [vmem:[#allocation5 + $0x1b8] sm:$0xff]
        %v938 = vld [vmem:[#allocation5 + $0x1c0] sm:$0xff]
        %v939 = vld [vmem:[#allocation5 + $0x1c8] sm:$0xff]
        %v940 = vld [vmem:[#allocation5 + $0x1d0] sm:$0xff]
        %v941 = vld [vmem:[#allocation5 + $0x1d8] sm:$0xff]
        %v942 = vld [vmem:[#allocation5 + $0x1e0] sm:$0xff]
        %v943 = vld [vmem:[#allocation5 + $0x1e8] sm:$0xff]
        %v944 = vld [vmem:[#allocation5 + $0x1f0] sm:$0xff]
        %v945 = vld [vmem:[#allocation5 + $0x1f8] sm:$0xff]
        %v946 = vld [vmem:[#allocation5 + $0x200] sm:$0xff]
        %v947 = vld [vmem:[#allocation5 + $0x208] sm:$0xff]
        %v948 = vld [vmem:[#allocation5 + $0x210] sm:$0xff]
        %v949 = vld [vmem:[#allocation5 + $0x218] sm:$0xff]
        %v950 = vld [vmem:[#allocation5 + $0x220] sm:$0xff]
        %v951 = vld [vmem:[#allocation5 + $0x228] sm:$0xff]
        %v952 = vld [vmem:[#allocation5 + $0x230] sm:$0xff]
        %v953 = vld [vmem:[#allocation5 + $0x238] sm:$0xff]
        %v954 = vld [vmem:[#allocation5 + $0x240] sm:$0xff]
        %v955 = vld [vmem:[#allocation5 + $0x248] sm:$0xff]
        %v956 = vld [vmem:[#allocation5 + $0x250] sm:$0xff]
        %v957 = vld [vmem:[#allocation5 + $0x258] sm:$0xff]
        %v958 = vld [vmem:[#allocation5 + $0x260] sm:$0xff]
        %v959 = vld [vmem:[#allocation5 + $0x268] sm:$0xff]
        %v960 = vld [vmem:[#allocation5 + $0x270] sm:$0xff]
        %v961 = vld [vmem:[#allocation5 + $0x278] sm:$0xff]
        %v962 = vld [vmem:[#allocation5 + $0x280] sm:$0xff]
        %v963 = vld [vmem:[#allocation5 + $0x288] sm:$0xff]
        %v964 = vld [vmem:[#allocation5 + $0x290] sm:$0xff]
        %v965 = vld [vmem:[#allocation5 + $0x298] sm:$0xff]
        %v966 = vld [vmem:[#allocation5 + $0x2a0] sm:$0xff]
        %v967 = vld [vmem:[#allocation5 + $0x2a8] sm:$0xff]
        %v968 = vld [vmem:[#allocation5 + $0x2b0] sm:$0xff]
        %v969 = vld [vmem:[#allocation5 + $0x2b8] sm:$0xff]
        %v970 = vld [vmem:[#allocation5 + $0x2c0] sm:$0xff]
        %v971 = vld [vmem:[#allocation5 + $0x2c8] sm:$0xff]
        %v972 = vld [vmem:[#allocation5 + $0x2d0] sm:$0xff]
        %v973 = vld [vmem:[#allocation5 + $0x2d8] sm:$0xff]
        %v974 = vld [vmem:[#allocation5 + $0x2e0] sm:$0xff]
        %v975 = vld [vmem:[#allocation5 + $0x2e8] sm:$0xff]
        %v976 = vld [vmem:[#allocation5 + $0x2f0] sm:$0xff]
        %v977 = vld [vmem:[#allocation5 + $0x2f8] sm:$0xff]
        %v978 = vld [vmem:[#allocation5 + $0x300] sm:$0xff]
        %v979 = vld [vmem:[#allocation5 + $0x308] sm:$0xff]
        %v980 = vld [vmem:[#allocation5 + $0x310] sm:$0xff]
        %v981 = vld [vmem:[#allocation5 + $0x318] sm:$0xff]
        %v982 = vld [vmem:[#allocation5 + $0x320] sm:$0xff]
        %v983 = vld [vmem:[#allocation5 + $0x328] sm:$0xff]
        %v984 = vld [vmem:[#allocation5 + $0x330] sm:$0xff]
        %v985 = vld [vmem:[#allocation5 + $0x338] sm:$0xff]
        %v986 = vld [vmem:[#allocation5 + $0x340] sm:$0xff]
        %v987 = vld [vmem:[#allocation5 + $0x348] sm:$0xff]
        %v988 = vld [vmem:[#allocation5 + $0x350] sm:$0xff]
        %v989 = vld [vmem:[#allocation5 + $0x358] sm:$0xff]
        %v990 = vld [vmem:[#allocation5 + $0x360] sm:$0xff]
        %v991 = vld [vmem:[#allocation5 + $0x368] sm:$0xff]
        %v992 = vld [vmem:[#allocation5 + $0x370] sm:$0xff]
        %v993 = vld [vmem:[#allocation5 + $0x378] sm:$0xff]
        %v994 = vld [vmem:[#allocation5 + $0x380] sm:$0xff]
        %v995 = vld [vmem:[#allocation5 + $0x388] sm:$0xff]
        %v996 = vld [vmem:[#allocation5 + $0x390] sm:$0xff]
        %v997 = vld [vmem:[#allocation5 + $0x398] sm:$0xff]
        %v998 = vld [vmem:[#allocation5 + $0x3a0] sm:$0xff]
        %v999 = vld [vmem:[#allocation5 + $0x3a8] sm:$0xff]
        %v1000 = vld [vmem:[#allocation5 + $0x3b0] sm:$0xff]
        %v1001 = vld [vmem:[#allocation5 + $0x3b8] sm:$0xff]
        %v1002 = vld [vmem:[#allocation5 + $0x3c0] sm:$0xff]
        %v1003 = vld [vmem:[#allocation5 + $0x3c8] sm:$0xff]
        %v1004 = vld [vmem:[#allocation5 + $0x3d0] sm:$0xff]
        %v1005 = vld [vmem:[#allocation5 + $0x3d8] sm:$0xff]
        %v1006 = vld [vmem:[#allocation5 + $0x3e0] sm:$0xff]
        %v1007 = vld [vmem:[#allocation5 + $0x3e8] sm:$0xff]
        %v1008 = vld [vmem:[#allocation5 + $0x3f0] sm:$0xff]
        %v1009 = vld [vmem:[#allocation5 + $0x3f8] sm:$0xff]
        %v1010 = vld [vmem:[#allocation5 + $0x400] sm:$0xff]
        %v1011 = vld [vmem:[#allocation5 + $0x408] sm:$0xff]
        %v1012 = vld [vmem:[#allocation5 + $0x410] sm:$0xff]
        %v1013 = vld [vmem:[#allocation5 + $0x418] sm:$0xff]
        %v1014 = vld [vmem:[#allocation5 + $0x420] sm:$0xff]
        %v1015 = vld [vmem:[#allocation5 + $0x428] sm:$0xff]
        %v1016 = vld [vmem:[#allocation5 + $0x430] sm:$0xff]
        %v1017 = vld [vmem:[#allocation5 + $0x438] sm:$0xff]
        %v1018 = vld [vmem:[#allocation5 + $0x440] sm:$0xff]
        %v1019 = vld [vmem:[#allocation5 + $0x448] sm:$0xff]
        %v1020 = vld [vmem:[#allocation5 + $0x450] sm:$0xff]
        %v1021 = vld [vmem:[#allocation5 + $0x458] sm:$0xff]
        %v1022 = vld [vmem:[#allocation5 + $0x460] sm:$0xff]
        %v1023 = vld [vmem:[#allocation5 + $0x468] sm:$0xff]
        %v1024 = vld [vmem:[#allocation5 + $0x470] sm:$0xff]
        %v1025 = vld [vmem:[#allocation5 + $0x478] sm:$0xff]
        %v1026 = vld [vmem:[#allocation5 + $0x480] sm:$0xff]
        %v1027 = vld [vmem:[#allocation5 + $0x488] sm:$0xff]
        %v1028 = vld [vmem:[#allocation5 + $0x490] sm:$0xff]
        %v1029 = vld [vmem:[#allocation5 + $0x498] sm:$0xff]
        %v1030 = vld [vmem:[#allocation5 + $0x4a0] sm:$0xff]
        %v1031 = vld [vmem:[#allocation5 + $0x4a8] sm:$0xff]
        %v1032 = vld [vmem:[#allocation5 + $0x4b0] sm:$0xff]
        %v1033 = vld [vmem:[#allocation5 + $0x4b8] sm:$0xff]
        %v1034 = vld [vmem:[#allocation5 + $0x4c0] sm:$0xff]
        %v1035 = vld [vmem:[#allocation5 + $0x4c8] sm:$0xff]
        %v1036 = vld [vmem:[#allocation5 + $0x4d0] sm:$0xff]
        %v1037 = vld [vmem:[#allocation5 + $0x4d8] sm:$0xff]
        %v1038 = vld [vmem:[#allocation5 + $0x4e0] sm:$0xff]
        %v1039 = vld [vmem:[#allocation5 + $0x4e8] sm:$0xff]
        %v1040 = vld [vmem:[#allocation5 + $0x4f0] sm:$0xff]
        %v1041 = vld [vmem:[#allocation5 + $0x4f8] sm:$0xff]
        %v1042 = vld [vmem:[#allocation5 + $0x500] sm:$0xff]
        %v1043 = vld [vmem:[#allocation5 + $0x508] sm:$0xff]
        %v1044 = vld [vmem:[#allocation5 + $0x510] sm:$0xff]
        %v1045 = vld [vmem:[#allocation5 + $0x518] sm:$0xff]
        %v1046 = vld [vmem:[#allocation5 + $0x520] sm:$0xff]
        %v1047 = vld [vmem:[#allocation5 + $0x528] sm:$0xff]
        %v1048 = vld [vmem:[#allocation5 + $0x530] sm:$0xff]
        %v1049 = vld [vmem:[#allocation5 + $0x538] sm:$0xff]
        %v1050 = vld [vmem:[#allocation5 + $0x540] sm:$0xff]
        %v1051 = vld [vmem:[#allocation5 + $0x548] sm:$0xff]
        %v1052 = vld [vmem:[#allocation5 + $0x550] sm:$0xff]
        %v1053 = vld [vmem:[#allocation5 + $0x558] sm:$0xff]
        %v1054 = vld [vmem:[#allocation5 + $0x560] sm:$0xff]
        %v1055 = vld [vmem:[#allocation5 + $0x568] sm:$0xff]
        %v1056 = vld [vmem:[#allocation5 + $0x570] sm:$0xff]
        %v1057 = vld [vmem:[#allocation5 + $0x578] sm:$0xff]
        %v1058 = vld [vmem:[#allocation5 + $0x580] sm:$0xff]
        %v1059 = vld [vmem:[#allocation5 + $0x588] sm:$0xff]
        %v1060 = vld [vmem:[#allocation5 + $0x590] sm:$0xff]
        %v1061 = vld [vmem:[#allocation5 + $0x598] sm:$0xff]
        %v1062 = vld [vmem:[#allocation5 + $0x5a0] sm:$0xff]
        %v1063 = vld [vmem:[#allocation5 + $0x5a8] sm:$0xff]
        %v1064 = vld [vmem:[#allocation5 + $0x5b0] sm:$0xff]
        %v1065 = vld [vmem:[#allocation5 + $0x5b8] sm:$0xff]
        %v1066 = vld [vmem:[#allocation5 + $0x5c0] sm:$0xff]
        %v1067 = vld [vmem:[#allocation5 + $0x5c8] sm:$0xff]
        %v1068 = vld [vmem:[#allocation5 + $0x5d0] sm:$0xff]
        %v1069 = vld [vmem:[#allocation5 + $0x5d8] sm:$0xff]
        %v1070 = vld [vmem:[#allocation5 + $0x5e0] sm:$0xff]
        %v1071 = vld [vmem:[#allocation5 + $0x5e8] sm:$0xff]
        %v1072 = vld [vmem:[#allocation5 + $0x5f0] sm:$0xff]
        %v1073 = vld [vmem:[#allocation5 + $0x5f8] sm:$0xff]
        %v1074 = vld [vmem:[#allocation5 + $0x600] sm:$0xff]
        %v1075 = vld [vmem:[#allocation5 + $0x608] sm:$0xff]
        %v1076 = vld [vmem:[#allocation5 + $0x610] sm:$0xff]
        %v1077 = vld [vmem:[#allocation5 + $0x618] sm:$0xff]
        %v1078 = vld [vmem:[#allocation7] sm:$0xf]
        %v1080 = vlaneseq
        %v1081 = vshrl.u32 %v1080, 7
        %v1082 = vsub.s32 0, %v1081
        %v1083 = vrot.slane %v1078, %v1082
        %v1084 = vlaneseq
        %v1085 = vshrl.u32 %v1084, 7
        %v1086 = vsub.s32 1, %v1085
        %v1087 = vrot.slane %v1078, %v1086
        %v1088 = vlaneseq
        %v1089 = vshrl.u32 %v1088, 7
        %v1090 = vsub.s32 2, %v1089
        %v1091 = vrot.slane %v1078, %v1090
        %v1092 = vlaneseq
        %v1093 = vshrl.u32 %v1092, 7
        %v1094 = vsub.s32 3, %v1093
        %v1095 = vrot.slane %v1078, %v1094
        %v1296 = vunpack.c.l.b16 %v882
        %v1297 = vunpack.c.h.b16 %v882
        %v1298 = vunpack.c.l.b16 %v883
        %v1299 = vunpack.c.h.b16 %v883
        %v1300 = vunpack.c.l.b16 %v884
        %v1301 = vunpack.c.h.b16 %v884
        %v1302 = vunpack.c.l.b16 %v885
        %v1303 = vunpack.c.h.b16 %v885
        %v1304 = vunpack.c.l.b16 %v886
        %v1305 = vunpack.c.h.b16 %v886
        %v1306 = vunpack.c.l.b16 %v887
        %v1307 = vunpack.c.h.b16 %v887
        %v1308 = vunpack.c.l.b16 %v888
        %v1309 = vunpack.c.h.b16 %v888
        %v1310 = vunpack.c.l.b16 %v889
        %v1311 = vunpack.c.h.b16 %v889
        %v1312 = vunpack.c.l.b16 %v890
        %v1313 = vunpack.c.h.b16 %v890
        %v1314 = vunpack.c.l.b16 %v891
        %v1315 = vunpack.c.h.b16 %v891
        %v1316 = vunpack.c.l.b16 %v892
        %v1317 = vunpack.c.h.b16 %v892
        %v1318 = vunpack.c.l.b16 %v893
        %v1319 = vunpack.c.h.b16 %v893
        %v1320 = vunpack.c.l.b16 %v894
        %v1321 = vunpack.c.h.b16 %v894
        %v1322 = vunpack.c.l.b16 %v895
        %v1323 = vunpack.c.h.b16 %v895
        %v1324 = vunpack.c.l.b16 %v896
        %v1325 = vunpack.c.h.b16 %v896
        %v1326 = vunpack.c.l.b16 %v897
        %v1327 = vunpack.c.h.b16 %v897
        %v1328 = vunpack.c.l.b16 %v898
        %v1329 = vunpack.c.h.b16 %v898
        %v1330 = vunpack.c.l.b16 %v899
        %v1331 = vunpack.c.h.b16 %v899
        %v1332 = vunpack.c.l.b16 %v900
        %v1333 = vunpack.c.h.b16 %v900
        %v1334 = vunpack.c.l.b16 %v901
        %v1335 = vunpack.c.h.b16 %v901
        %v1336 = vunpack.c.l.b16 %v902
        %v1337 = vunpack.c.h.b16 %v902
        %v1338 = vunpack.c.l.b16 %v903
        %v1339 = vunpack.c.h.b16 %v903
        %v1340 = vunpack.c.l.b16 %v904
        %v1341 = vunpack.c.h.b16 %v904
        %v1342 = vunpack.c.l.b16 %v905
        %v1343 = vunpack.c.h.b16 %v905
        %v1344 = vunpack.c.l.b16 %v906
        %v1345 = vunpack.c.h.b16 %v906
        %v1346 = vunpack.c.l.b16 %v907
        %v1347 = vunpack.c.h.b16 %v907
        %v1348 = vunpack.c.l.b16 %v908
        %v1349 = vunpack.c.h.b16 %v908
        %v1350 = vunpack.c.l.b16 %v909
        %v1351 = vunpack.c.h.b16 %v909
        %v1352 = vunpack.c.l.b16 %v910
        %v1353 = vunpack.c.h.b16 %v910
        %v1354 = vunpack.c.l.b16 %v911
        %v1355 = vunpack.c.h.b16 %v911
        %v1356 = vunpack.c.l.b16 %v912
        %v1357 = vunpack.c.h.b16 %v912
        %v1358 = vunpack.c.l.b16 %v913
        %v1359 = vunpack.c.h.b16 %v913
        %v1360 = vunpack.c.l.b16 %v914
        %v1361 = vunpack.c.h.b16 %v914
        %v1362 = vunpack.c.l.b16 %v915
        %v1363 = vunpack.c.h.b16 %v915
        %v1364 = vunpack.c.l.b16 %v916
        %v1365 = vunpack.c.h.b16 %v916
        %v1366 = vunpack.c.l.b16 %v917
        %v1367 = vunpack.c.h.b16 %v917
        %v1368 = vunpack.c.l.b16 %v918
        %v1369 = vunpack.c.h.b16 %v918
        %v1370 = vunpack.c.l.b16 %v919
        %v1371 = vunpack.c.h.b16 %v919
        %v1372 = vunpack.c.l.b16 %v920
        %v1373 = vunpack.c.h.b16 %v920
        %v1374 = vunpack.c.l.b16 %v921
        %v1375 = vunpack.c.h.b16 %v921
        %v1376 = vunpack.c.l.b16 %v922
        %v1377 = vunpack.c.h.b16 %v922
        %v1378 = vunpack.c.l.b16 %v923
        %v1379 = vunpack.c.h.b16 %v923
        %v1380 = vunpack.c.l.b16 %v924
        %v1381 = vunpack.c.h.b16 %v924
        %v1382 = vunpack.c.l.b16 %v925
        %v1383 = vunpack.c.h.b16 %v925
        %v1384 = vunpack.c.l.b16 %v926
        %v1385 = vunpack.c.h.b16 %v926
        %v1386 = vunpack.c.l.b16 %v927
        %v1387 = vunpack.c.h.b16 %v927
        %v1388 = vunpack.c.l.b16 %v928
        %v1389 = vunpack.c.h.b16 %v928
        %v1390 = vunpack.c.l.b16 %v929
        %v1391 = vunpack.c.h.b16 %v929
        %v1392 = vunpack.c.l.b16 %v930
        %v1393 = vunpack.c.h.b16 %v930
        %v1394 = vunpack.c.l.b16 %v931
        %v1395 = vunpack.c.h.b16 %v931
        %v1396 = vunpack.c.l.b16 %v932
        %v1397 = vunpack.c.h.b16 %v932
        %v1398 = vunpack.c.l.b16 %v933
        %v1399 = vunpack.c.h.b16 %v933
        %v1400 = vunpack.c.l.b16 %v934
        %v1401 = vunpack.c.h.b16 %v934
        %v1402 = vunpack.c.l.b16 %v935
        %v1403 = vunpack.c.h.b16 %v935
        %v1404 = vunpack.c.l.b16 %v936
        %v1405 = vunpack.c.h.b16 %v936
        %v1406 = vunpack.c.l.b16 %v937
        %v1407 = vunpack.c.h.b16 %v937
        %v1408 = vunpack.c.l.b16 %v938
        %v1409 = vunpack.c.h.b16 %v938
        %v1410 = vunpack.c.l.b16 %v939
        %v1411 = vunpack.c.h.b16 %v939
        %v1412 = vunpack.c.l.b16 %v940
        %v1413 = vunpack.c.h.b16 %v940
        %v1414 = vunpack.c.l.b16 %v941
        %v1415 = vunpack.c.h.b16 %v941
        %v1416 = vunpack.c.l.b16 %v942
        %v1417 = vunpack.c.h.b16 %v942
        %v1418 = vunpack.c.l.b16 %v943
        %v1419 = vunpack.c.h.b16 %v943
        %v1420 = vunpack.c.l.b16 %v944
        %v1421 = vunpack.c.h.b16 %v944
        %v1422 = vunpack.c.l.b16 %v945
        %v1423 = vunpack.c.h.b16 %v945
        %v1424 = vunpack.c.l.b16 %v946
        %v1425 = vunpack.c.h.b16 %v946
        %v1426 = vunpack.c.l.b16 %v947
        %v1427 = vunpack.c.h.b16 %v947
        %v1428 = vunpack.c.l.b16 %v948
        %v1429 = vunpack.c.h.b16 %v948
        %v1430 = vunpack.c.l.b16 %v949
        %v1431 = vunpack.c.h.b16 %v949
        %v1432 = vunpack.c.l.b16 %v950
        %v1433 = vunpack.c.h.b16 %v950
        %v1434 = vunpack.c.l.b16 %v951
        %v1435 = vunpack.c.h.b16 %v951
        %v1436 = vunpack.c.l.b16 %v952
        %v1437 = vunpack.c.h.b16 %v952
        %v1438 = vunpack.c.l.b16 %v953
        %v1439 = vunpack.c.h.b16 %v953
        %v1440 = vunpack.c.l.b16 %v954
        %v1441 = vunpack.c.h.b16 %v954
        %v1442 = vunpack.c.l.b16 %v955
        %v1443 = vunpack.c.h.b16 %v955
        %v1444 = vunpack.c.l.b16 %v956
        %v1445 = vunpack.c.h.b16 %v956
        %v1446 = vunpack.c.l.b16 %v957
        %v1447 = vunpack.c.h.b16 %v957
        %v1448 = vunpack.c.l.b16 %v958
        %v1449 = vunpack.c.h.b16 %v958
        %v1450 = vunpack.c.l.b16 %v959
        %v1451 = vunpack.c.h.b16 %v959
        %v1452 = vunpack.c.l.b16 %v960
        %v1453 = vunpack.c.h.b16 %v960
        %v1454 = vunpack.c.l.b16 %v961
        %v1455 = vunpack.c.h.b16 %v961
        %v1456 = vunpack.c.l.b16 %v962
        %v1457 = vunpack.c.h.b16 %v962
        %v1458 = vunpack.c.l.b16 %v963
        %v1459 = vunpack.c.h.b16 %v963
        %v1460 = vunpack.c.l.b16 %v964
        %v1461 = vunpack.c.h.b16 %v964
        %v1462 = vunpack.c.l.b16 %v965
        %v1463 = vunpack.c.h.b16 %v965
        %v1464 = vunpack.c.l.b16 %v966
        %v1465 = vunpack.c.h.b16 %v966
        %v1466 = vunpack.c.l.b16 %v967
        %v1467 = vunpack.c.h.b16 %v967
        %v1468 = vunpack.c.l.b16 %v968
        %v1469 = vunpack.c.h.b16 %v968
        %v1470 = vunpack.c.l.b16 %v969
        %v1471 = vunpack.c.h.b16 %v969
        %v1472 = vunpack.c.l.b16 %v970
        %v1473 = vunpack.c.h.b16 %v970
        %v1474 = vunpack.c.l.b16 %v971
        %v1475 = vunpack.c.h.b16 %v971
        %v1476 = vunpack.c.l.b16 %v972
        %v1477 = vunpack.c.h.b16 %v972
        %v1478 = vunpack.c.l.b16 %v973
        %v1479 = vunpack.c.h.b16 %v973
        %v1480 = vunpack.c.l.b16 %v974
        %v1481 = vunpack.c.h.b16 %v974
        %v1482 = vunpack.c.l.b16 %v975
        %v1483 = vunpack.c.h.b16 %v975
        %v1484 = vunpack.c.l.b16 %v976
        %v1485 = vunpack.c.h.b16 %v976
        %v1486 = vunpack.c.l.b16 %v977
        %v1487 = vunpack.c.h.b16 %v977
        %v1488 = vunpack.c.l.b16 %v978
        %v1489 = vunpack.c.h.b16 %v978
        %v1490 = vunpack.c.l.b16 %v979
        %v1491 = vunpack.c.h.b16 %v979
        %v1492 = vunpack.c.l.b16 %v980
        %v1493 = vunpack.c.h.b16 %v980
        %v1494 = vunpack.c.l.b16 %v981
        %v1495 = vunpack.c.h.b16 %v981
        %v1496 = vunpack.c.l.b16 %v982
        %v1497 = vunpack.c.h.b16 %v982
        %v1498 = vunpack.c.l.b16 %v983
        %v1499 = vunpack.c.h.b16 %v983
        %v1500 = vunpack.c.l.b16 %v984
        %v1501 = vunpack.c.h.b16 %v984
        %v1502 = vunpack.c.l.b16 %v985
        %v1503 = vunpack.c.h.b16 %v985
        %v1504 = vunpack.c.l.b16 %v986
        %v1505 = vunpack.c.h.b16 %v986
        %v1506 = vunpack.c.l.b16 %v987
        %v1507 = vunpack.c.h.b16 %v987
        %v1508 = vunpack.c.l.b16 %v988
        %v1509 = vunpack.c.h.b16 %v988
        %v1510 = vunpack.c.l.b16 %v989
        %v1511 = vunpack.c.h.b16 %v989
        %v1512 = vunpack.c.l.b16 %v990
        %v1513 = vunpack.c.h.b16 %v990
        %v1514 = vunpack.c.l.b16 %v991
        %v1515 = vunpack.c.h.b16 %v991
        %v1516 = vunpack.c.l.b16 %v992
        %v1517 = vunpack.c.h.b16 %v992
        %v1518 = vunpack.c.l.b16 %v993
        %v1519 = vunpack.c.h.b16 %v993
        %v1520 = vunpack.c.l.b16 %v994
        %v1521 = vunpack.c.h.b16 %v994
        %v1522 = vunpack.c.l.b16 %v995
        %v1523 = vunpack.c.h.b16 %v995
        %v1524 = vunpack.c.l.b16 %v996
        %v1525 = vunpack.c.h.b16 %v996
        %v1526 = vunpack.c.l.b16 %v997
        %v1527 = vunpack.c.h.b16 %v997
        %v1528 = vunpack.c.l.b16 %v998
        %v1529 = vunpack.c.h.b16 %v998
        %v1530 = vunpack.c.l.b16 %v999
        %v1531 = vunpack.c.h.b16 %v999
        %v1532 = vunpack.c.l.b16 %v1000
        %v1533 = vunpack.c.h.b16 %v1000
        %v1534 = vunpack.c.l.b16 %v1001
        %v1535 = vunpack.c.h.b16 %v1001
        %v1536 = vunpack.c.l.b16 %v1002
        %v1537 = vunpack.c.h.b16 %v1002
        %v1538 = vunpack.c.l.b16 %v1003
        %v1539 = vunpack.c.h.b16 %v1003
        %v1540 = vunpack.c.l.b16 %v1004
        %v1541 = vunpack.c.h.b16 %v1004
        %v1542 = vunpack.c.l.b16 %v1005
        %v1543 = vunpack.c.h.b16 %v1005
        %v1544 = vunpack.c.l.b16 %v1006
        %v1545 = vunpack.c.h.b16 %v1006
        %v1546 = vunpack.c.l.b16 %v1007
        %v1547 = vunpack.c.h.b16 %v1007
        %v1548 = vunpack.c.l.b16 %v1008
        %v1549 = vunpack.c.h.b16 %v1008
        %v1550 = vunpack.c.l.b16 %v1009
        %v1551 = vunpack.c.h.b16 %v1009
        %v1552 = vunpack.c.l.b16 %v1010
        %v1553 = vunpack.c.h.b16 %v1010
        %v1554 = vunpack.c.l.b16 %v1011
        %v1555 = vunpack.c.h.b16 %v1011
        %v1556 = vunpack.c.l.b16 %v1012
        %v1557 = vunpack.c.h.b16 %v1012
        %v1558 = vunpack.c.l.b16 %v1013
        %v1559 = vunpack.c.h.b16 %v1013
        %v1560 = vunpack.c.l.b16 %v1014
        %v1561 = vunpack.c.h.b16 %v1014
        %v1562 = vunpack.c.l.b16 %v1015
        %v1563 = vunpack.c.h.b16 %v1015
        %v1564 = vunpack.c.l.b16 %v1016
        %v1565 = vunpack.c.h.b16 %v1016
        %v1566 = vunpack.c.l.b16 %v1017
        %v1567 = vunpack.c.h.b16 %v1017
        %v1568 = vunpack.c.l.b16 %v1018
        %v1569 = vunpack.c.h.b16 %v1018
        %v1570 = vunpack.c.l.b16 %v1019
        %v1571 = vunpack.c.h.b16 %v1019
        %v1572 = vunpack.c.l.b16 %v1020
        %v1573 = vunpack.c.h.b16 %v1020
        %v1574 = vunpack.c.l.b16 %v1021
        %v1575 = vunpack.c.h.b16 %v1021
        %v1576 = vunpack.c.l.b16 %v1022
        %v1577 = vunpack.c.h.b16 %v1022
        %v1578 = vunpack.c.l.b16 %v1023
        %v1579 = vunpack.c.h.b16 %v1023
        %v1580 = vunpack.c.l.b16 %v1024
        %v1581 = vunpack.c.h.b16 %v1024
        %v1582 = vunpack.c.l.b16 %v1025
        %v1583 = vunpack.c.h.b16 %v1025
        %v1584 = vunpack.c.l.b16 %v1026
        %v1585 = vunpack.c.h.b16 %v1026
        %v1586 = vunpack.c.l.b16 %v1027
        %v1587 = vunpack.c.h.b16 %v1027
        %v1588 = vunpack.c.l.b16 %v1028
        %v1589 = vunpack.c.h.b16 %v1028
        %v1590 = vunpack.c.l.b16 %v1029
        %v1591 = vunpack.c.h.b16 %v1029
        %v1592 = vunpack.c.l.b16 %v1030
        %v1593 = vunpack.c.h.b16 %v1030
        %v1594 = vunpack.c.l.b16 %v1031
        %v1595 = vunpack.c.h.b16 %v1031
        %v1596 = vunpack.c.l.b16 %v1032
        %v1597 = vunpack.c.h.b16 %v1032
        %v1598 = vunpack.c.l.b16 %v1033
        %v1599 = vunpack.c.h.b16 %v1033
        %v1600 = vunpack.c.l.b16 %v1034
        %v1601 = vunpack.c.h.b16 %v1034
        %v1602 = vunpack.c.l.b16 %v1035
        %v1603 = vunpack.c.h.b16 %v1035
        %v1604 = vunpack.c.l.b16 %v1036
        %v1605 = vunpack.c.h.b16 %v1036
        %v1606 = vunpack.c.l.b16 %v1037
        %v1607 = vunpack.c.h.b16 %v1037
        %v1608 = vunpack.c.l.b16 %v1038
        %v1609 = vunpack.c.h.b16 %v1038
        %v1610 = vunpack.c.l.b16 %v1039
        %v1611 = vunpack.c.h.b16 %v1039
        %v1612 = vunpack.c.l.b16 %v1040
        %v1613 = vunpack.c.h.b16 %v1040
        %v1614 = vunpack.c.l.b16 %v1041
        %v1615 = vunpack.c.h.b16 %v1041
        %v1616 = vunpack.c.l.b16 %v1042
        %v1617 = vunpack.c.h.b16 %v1042
        %v1618 = vunpack.c.l.b16 %v1043
        %v1619 = vunpack.c.h.b16 %v1043
        %v1620 = vunpack.c.l.b16 %v1044
        %v1621 = vunpack.c.h.b16 %v1044
        %v1622 = vunpack.c.l.b16 %v1045
        %v1623 = vunpack.c.h.b16 %v1045
        %v1624 = vunpack.c.l.b16 %v1046
        %v1625 = vunpack.c.h.b16 %v1046
        %v1626 = vunpack.c.l.b16 %v1047
        %v1627 = vunpack.c.h.b16 %v1047
        %v1628 = vunpack.c.l.b16 %v1048
        %v1629 = vunpack.c.h.b16 %v1048
        %v1630 = vunpack.c.l.b16 %v1049
        %v1631 = vunpack.c.h.b16 %v1049
        %v1632 = vunpack.c.l.b16 %v1050
        %v1633 = vunpack.c.h.b16 %v1050
        %v1634 = vunpack.c.l.b16 %v1051
        %v1635 = vunpack.c.h.b16 %v1051
        %v1636 = vunpack.c.l.b16 %v1052
        %v1637 = vunpack.c.h.b16 %v1052
        %v1638 = vunpack.c.l.b16 %v1053
        %v1639 = vunpack.c.h.b16 %v1053
        %v1640 = vunpack.c.l.b16 %v1054
        %v1641 = vunpack.c.h.b16 %v1054
        %v1642 = vunpack.c.l.b16 %v1055
        %v1643 = vunpack.c.h.b16 %v1055
        %v1644 = vunpack.c.l.b16 %v1056
        %v1645 = vunpack.c.h.b16 %v1056
        %v1646 = vunpack.c.l.b16 %v1057
        %v1647 = vunpack.c.h.b16 %v1057
        %v1648 = vunpack.c.l.b16 %v1058
        %v1649 = vunpack.c.h.b16 %v1058
        %v1650 = vunpack.c.l.b16 %v1059
        %v1651 = vunpack.c.h.b16 %v1059
        %v1652 = vunpack.c.l.b16 %v1060
        %v1653 = vunpack.c.h.b16 %v1060
        %v1654 = vunpack.c.l.b16 %v1061
        %v1655 = vunpack.c.h.b16 %v1061
        %v1656 = vunpack.c.l.b16 %v1062
        %v1657 = vunpack.c.h.b16 %v1062
        %v1658 = vunpack.c.l.b16 %v1063
        %v1659 = vunpack.c.h.b16 %v1063
        %v1660 = vunpack.c.l.b16 %v1064
        %v1661 = vunpack.c.h.b16 %v1064
        %v1662 = vunpack.c.l.b16 %v1065
        %v1663 = vunpack.c.h.b16 %v1065
        %v1664 = vunpack.c.l.b16 %v1066
        %v1665 = vunpack.c.h.b16 %v1066
        %v1666 = vunpack.c.l.b16 %v1067
        %v1667 = vunpack.c.h.b16 %v1067
        %v1668 = vunpack.c.l.b16 %v1068
        %v1669 = vunpack.c.h.b16 %v1068
        %v1670 = vunpack.c.l.b16 %v1069
        %v1671 = vunpack.c.h.b16 %v1069
        %v1672 = vunpack.c.l.b16 %v1070
        %v1673 = vunpack.c.h.b16 %v1070
        %v1674 = vunpack.c.l.b16 %v1071
        %v1675 = vunpack.c.h.b16 %v1071
        %v1676 = vunpack.c.l.b16 %v1072
        %v1677 = vunpack.c.h.b16 %v1072
        %v1678 = vunpack.c.l.b16 %v1073
        %v1679 = vunpack.c.h.b16 %v1073
        %v1680 = vunpack.c.l.b16 %v1074
        %v1681 = vunpack.c.h.b16 %v1074
        %v1682 = vunpack.c.l.b16 %v1075
        %v1683 = vunpack.c.h.b16 %v1075
        %v1684 = vunpack.c.l.b16 %v1076
        %v1685 = vunpack.c.h.b16 %v1076
        %v1686 = vunpack.c.l.b16 %v1077
        %v1687 = vunpack.c.h.b16 %v1077
        %v1688 = vpack.c.b16 %v1300, %v1296
        %v1689 = vpack.c.b16 %v1301, %v1297
        %v1690 = vpack.c.b16 %v1302, %v1298
        %v1691 = vpack.c.b16 %v1303, %v1299
        %v1692 = vpack.c.b16 %v1308, %v1304
        %v1693 = vpack.c.b16 %v1309, %v1305
        %v1694 = vpack.c.b16 %v1310, %v1306
        %v1695 = vpack.c.b16 %v1311, %v1307
        %v1696 = vpack.c.b16 %v1316, %v1312
        %v1697 = vpack.c.b16 %v1317, %v1313
        %v1698 = vpack.c.b16 %v1318, %v1314
        %v1699 = vpack.c.b16 %v1319, %v1315
        %v1700 = vpack.c.b16 %v1324, %v1320
        %v1701 = vpack.c.b16 %v1325, %v1321
        %v1702 = vpack.c.b16 %v1326, %v1322
        %v1703 = vpack.c.b16 %v1327, %v1323
        %v1704 = vpack.c.b16 %v1332, %v1328
        %v1705 = vpack.c.b16 %v1333, %v1329
        %v1706 = vpack.c.b16 %v1334, %v1330
        %v1707 = vpack.c.b16 %v1335, %v1331
        %v1708 = vpack.c.b16 %v1340, %v1336
        %v1709 = vpack.c.b16 %v1341, %v1337
        %v1710 = vpack.c.b16 %v1342, %v1338
        %v1711 = vpack.c.b16 %v1343, %v1339
        %v1712 = vpack.c.b16 %v1348, %v1344
        %v1713 = vpack.c.b16 %v1349, %v1345
        %v1714 = vpack.c.b16 %v1350, %v1346
        %v1715 = vpack.c.b16 %v1351, %v1347
        %v1716 = vpack.c.b16 %v1356, %v1352
        %v1717 = vpack.c.b16 %v1357, %v1353
        %v1718 = vpack.c.b16 %v1358, %v1354
        %v1719 = vpack.c.b16 %v1359, %v1355
        %v1720 = vpack.c.b16 %v1364, %v1360
        %v1721 = vpack.c.b16 %v1365, %v1361
        %v1722 = vpack.c.b16 %v1366, %v1362
        %v1723 = vpack.c.b16 %v1367, %v1363
        %v1724 = vpack.c.b16 %v1372, %v1368
        %v1725 = vpack.c.b16 %v1373, %v1369
        %v1726 = vpack.c.b16 %v1374, %v1370
        %v1727 = vpack.c.b16 %v1375, %v1371
        %v1728 = vpack.c.b16 %v1380, %v1376
        %v1729 = vpack.c.b16 %v1381, %v1377
        %v1730 = vpack.c.b16 %v1382, %v1378
        %v1731 = vpack.c.b16 %v1383, %v1379
        %v1732 = vpack.c.b16 %v1388, %v1384
        %v1733 = vpack.c.b16 %v1389, %v1385
        %v1734 = vpack.c.b16 %v1390, %v1386
        %v1735 = vpack.c.b16 %v1391, %v1387
        %v1736 = vpack.c.b16 %v1396, %v1392
        %v1737 = vpack.c.b16 %v1397, %v1393
        %v1738 = vpack.c.b16 %v1398, %v1394
        %v1739 = vpack.c.b16 %v1399, %v1395
        %v1740 = vpack.c.b16 %v1404, %v1400
        %v1741 = vpack.c.b16 %v1405, %v1401
        %v1742 = vpack.c.b16 %v1406, %v1402
        %v1743 = vpack.c.b16 %v1407, %v1403
        %v1744 = vpack.c.b16 %v1412, %v1408
        %v1745 = vpack.c.b16 %v1413, %v1409
        %v1746 = vpack.c.b16 %v1414, %v1410
        %v1747 = vpack.c.b16 %v1415, %v1411
        %v1748 = vpack.c.b16 %v1420, %v1416
        %v1749 = vpack.c.b16 %v1421, %v1417
        %v1750 = vpack.c.b16 %v1422, %v1418
        %v1751 = vpack.c.b16 %v1423, %v1419
        %v1752 = vpack.c.b16 %v1428, %v1424
        %v1753 = vpack.c.b16 %v1429, %v1425
        %v1754 = vpack.c.b16 %v1430, %v1426
        %v1755 = vpack.c.b16 %v1431, %v1427
        %v1756 = vpack.c.b16 %v1436, %v1432
        %v1757 = vpack.c.b16 %v1437, %v1433
        %v1758 = vpack.c.b16 %v1438, %v1434
        %v1759 = vpack.c.b16 %v1439, %v1435
        %v1760 = vpack.c.b16 %v1444, %v1440
        %v1761 = vpack.c.b16 %v1445, %v1441
        %v1762 = vpack.c.b16 %v1446, %v1442
        %v1763 = vpack.c.b16 %v1447, %v1443
        %v1764 = vpack.c.b16 %v1452, %v1448
        %v1765 = vpack.c.b16 %v1453, %v1449
        %v1766 = vpack.c.b16 %v1454, %v1450
        %v1767 = vpack.c.b16 %v1455, %v1451
        %v1768 = vpack.c.b16 %v1460, %v1456
        %v1769 = vpack.c.b16 %v1461, %v1457
        %v1770 = vpack.c.b16 %v1462, %v1458
        %v1771 = vpack.c.b16 %v1463, %v1459
        %v1772 = vpack.c.b16 %v1468, %v1464
        %v1773 = vpack.c.b16 %v1469, %v1465
        %v1774 = vpack.c.b16 %v1470, %v1466
        %v1775 = vpack.c.b16 %v1471, %v1467
        %v1776 = vpack.c.b16 %v1476, %v1472
        %v1777 = vpack.c.b16 %v1477, %v1473
        %v1778 = vpack.c.b16 %v1478, %v1474
        %v1779 = vpack.c.b16 %v1479, %v1475
        %v1780 = vpack.c.b16 %v1484, %v1480
        %v1781 = vpack.c.b16 %v1485, %v1481
        %v1782 = vpack.c.b16 %v1486, %v1482
        %v1783 = vpack.c.b16 %v1487, %v1483
        %v1784 = vpack.c.b16 %v1492, %v1488
        %v1785 = vpack.c.b16 %v1493, %v1489
        %v1786 = vpack.c.b16 %v1494, %v1490
        %v1787 = vpack.c.b16 %v1495, %v1491
        %v1788 = vpack.c.b16 %v1500, %v1496
        %v1789 = vpack.c.b16 %v1501, %v1497
        %v1790 = vpack.c.b16 %v1502, %v1498
        %v1791 = vpack.c.b16 %v1503, %v1499
        %v1792 = vpack.c.b16 %v1508, %v1504
        %v1793 = vpack.c.b16 %v1509, %v1505
        %v1794 = vpack.c.b16 %v1510, %v1506
        %v1795 = vpack.c.b16 %v1511, %v1507
        %v1796 = vpack.c.b16 %v1516, %v1512
        %v1797 = vpack.c.b16 %v1517, %v1513
        %v1798 = vpack.c.b16 %v1518, %v1514
        %v1799 = vpack.c.b16 %v1519, %v1515
        %v1800 = vpack.c.b16 %v1524, %v1520
        %v1801 = vpack.c.b16 %v1525, %v1521
        %v1802 = vpack.c.b16 %v1526, %v1522
        %v1803 = vpack.c.b16 %v1527, %v1523
        %v1804 = vpack.c.b16 %v1532, %v1528
        %v1805 = vpack.c.b16 %v1533, %v1529
        %v1806 = vpack.c.b16 %v1534, %v1530
        %v1807 = vpack.c.b16 %v1535, %v1531
        %v1808 = vpack.c.b16 %v1540, %v1536
        %v1809 = vpack.c.b16 %v1541, %v1537
        %v1810 = vpack.c.b16 %v1542, %v1538
        %v1811 = vpack.c.b16 %v1543, %v1539
        %v1812 = vpack.c.b16 %v1548, %v1544
        %v1813 = vpack.c.b16 %v1549, %v1545
        %v1814 = vpack.c.b16 %v1550, %v1546
        %v1815 = vpack.c.b16 %v1551, %v1547
        %v1816 = vpack.c.b16 %v1556, %v1552
        %v1817 = vpack.c.b16 %v1557, %v1553
        %v1818 = vpack.c.b16 %v1558, %v1554
        %v1819 = vpack.c.b16 %v1559, %v1555
        %v1820 = vpack.c.b16 %v1564, %v1560
        %v1821 = vpack.c.b16 %v1565, %v1561
        %v1822 = vpack.c.b16 %v1566, %v1562
        %v1823 = vpack.c.b16 %v1567, %v1563
        %v1824 = vpack.c.b16 %v1572, %v1568
        %v1825 = vpack.c.b16 %v1573, %v1569
        %v1826 = vpack.c.b16 %v1574, %v1570
        %v1827 = vpack.c.b16 %v1575, %v1571
        %v1828 = vpack.c.b16 %v1580, %v1576
        %v1829 = vpack.c.b16 %v1581, %v1577
        %v1830 = vpack.c.b16 %v1582, %v1578
        %v1831 = vpack.c.b16 %v1583, %v1579
        %v1832 = vpack.c.b16 %v1588, %v1584
        %v1833 = vpack.c.b16 %v1589, %v1585
        %v1834 = vpack.c.b16 %v1590, %v1586
        %v1835 = vpack.c.b16 %v1591, %v1587
        %v1836 = vpack.c.b16 %v1596, %v1592
        %v1837 = vpack.c.b16 %v1597, %v1593
        %v1838 = vpack.c.b16 %v1598, %v1594
        %v1839 = vpack.c.b16 %v1599, %v1595
        %v1840 = vpack.c.b16 %v1604, %v1600
        %v1841 = vpack.c.b16 %v1605, %v1601
        %v1842 = vpack.c.b16 %v1606, %v1602
        %v1843 = vpack.c.b16 %v1607, %v1603
        %v1844 = vpack.c.b16 %v1612, %v1608
        %v1845 = vpack.c.b16 %v1613, %v1609
        %v1846 = vpack.c.b16 %v1614, %v1610
        %v1847 = vpack.c.b16 %v1615, %v1611
        %v1848 = vpack.c.b16 %v1620, %v1616
        %v1849 = vpack.c.b16 %v1621, %v1617
        %v1850 = vpack.c.b16 %v1622, %v1618
        %v1851 = vpack.c.b16 %v1623, %v1619
        %v1852 = vpack.c.b16 %v1628, %v1624
        %v1853 = vpack.c.b16 %v1629, %v1625
        %v1854 = vpack.c.b16 %v1630, %v1626
        %v1855 = vpack.c.b16 %v1631, %v1627
        %v1856 = vpack.c.b16 %v1636, %v1632
        %v1857 = vpack.c.b16 %v1637, %v1633
        %v1858 = vpack.c.b16 %v1638, %v1634
        %v1859 = vpack.c.b16 %v1639, %v1635
        %v1860 = vpack.c.b16 %v1644, %v1640
        %v1861 = vpack.c.b16 %v1645, %v1641
        %v1862 = vpack.c.b16 %v1646, %v1642
        %v1863 = vpack.c.b16 %v1647, %v1643
        %v1864 = vpack.c.b16 %v1652, %v1648
        %v1865 = vpack.c.b16 %v1653, %v1649
        %v1866 = vpack.c.b16 %v1654, %v1650
        %v1867 = vpack.c.b16 %v1655, %v1651
        %v1868 = vpack.c.b16 %v1660, %v1656
        %v1869 = vpack.c.b16 %v1661, %v1657
        %v1870 = vpack.c.b16 %v1662, %v1658
        %v1871 = vpack.c.b16 %v1663, %v1659
        %v1872 = vpack.c.b16 %v1668, %v1664
        %v1873 = vpack.c.b16 %v1669, %v1665
        %v1874 = vpack.c.b16 %v1670, %v1666
        %v1875 = vpack.c.b16 %v1671, %v1667
        %v1876 = vpack.c.b16 %v1676, %v1672
        %v1877 = vpack.c.b16 %v1677, %v1673
        %v1878 = vpack.c.b16 %v1678, %v1674
        %v1879 = vpack.c.b16 %v1679, %v1675
        %v1880 = vpack.c.b16 %v1684, %v1680
        %v1881 = vpack.c.b16 %v1685, %v1681
        %v1882 = vpack.c.b16 %v1686, %v1682
        %v1883 = vpack.c.b16 %v1687, %v1683
        %vm2080 = vcmask 130048
        %v2082 = vsel %vm2080, %v776, 0
        %v2085 = vsel %vm2080, %v783, 0
        %v2088 = vsel %vm2080, %v790, 0
        %v2091 = vsel %vm2080, %v797, 0
        %v2094 = vsel %vm2080, %v804, 0
        %v2097 = vsel %vm2080, %v811, 0
        %v2100 = vsel %vm2080, %v818, 0
        %v2103 = vsel %vm2080, %v825, 0
        %v2106 = vsel %vm2080, %v832, 0
        %v2109 = vsel %vm2080, %v839, 0
        %v2112 = vsel %vm2080, %v846, 0
        %v2115 = vsel %vm2080, %v853, 0
        %v2118 = vsel %vm2080, %v860, 0
        %v2121 = vsel %vm2080, %v867, 0
        %v2124 = vsel %vm2080, %v874, 0
        %v2127 = vsel %vm2080, %v881, 0
        %2129 = vmatprep.subr.bf16.mxu0 %v1689
        %2130 = vmatpush1.bf16.msra.mxu0 %v1688
        %2131 = vmatprep.subr.bf16.mxu0 %v1693
        %2132 = vmatpush1.bf16.msra.mxu0 %v1692
        %2133 = vmatprep.subr.bf16.mxu0 %v1697
        %2134 = vmatpush1.bf16.msra.mxu0 %v1696
        %2135 = vmatprep.subr.bf16.mxu0 %v1701
        %2136 = vmatpush1.bf16.msra.mxu0 %v1700
        %2137 = vmatprep.subr.bf16.mxu0 %v1705
        %2138 = vmatpush1.bf16.msra.mxu0 %v1704
        %2139 = vmatprep.subr.bf16.mxu0 %v1709
        %2140 = vmatpush1.bf16.msra.mxu0 %v1708
        %2141 = vmatprep.subr.bf16.mxu0 %v1713
        %2142 = vmatpush1.bf16.msra.mxu0 %v1712
        %2143 = vmatprep.subr.bf16.mxu0 %v1717
        %2144 = vmatpush1.bf16.msra.mxu0 %v1716
        %2145 = vmatprep.subr.bf16.mxu0 %v1721
        %2146 = vmatpush1.bf16.msra.mxu0 %v1720
        %2147 = vmatprep.subr.bf16.mxu0 %v1725
        %2148 = vmatpush1.bf16.msra.mxu0 %v1724
        %2149 = vmatprep.subr.bf16.mxu0 %v1729
        %2150 = vmatpush1.bf16.msra.mxu0 %v1728
        %2151 = vmatprep.subr.bf16.mxu0 %v1733
        %2152 = vmatpush1.bf16.msra.mxu0 %v1732
        %2153 = vmatprep.subr.bf16.mxu0 %v1737
        %2154 = vmatpush1.bf16.msra.mxu0 %v1736
        %2155 = vmatprep.subr.bf16.mxu0 %v1741
        %2156 = vmatpush1.bf16.msra.mxu0 %v1740
        %2157 = vmatprep.subr.bf16.mxu0 %v1745
        %2158 = vmatpush1.bf16.msra.mxu0 %v1744
        %2159 = vmatprep.subr.bf16.mxu0 %v1749
        %2160 = vmatpush1.bf16.msra.mxu0 %v1748
        %2161 = vmatprep.mubr.bf16.mxu0 %v771
        %2162 = vmatmul.mubr.bf16.gmra.mrb[0].mxu0 %v770
        %v2163 = vpop.f32.mrb[0].mxu0
        %v2164 = vadd.f32 %v1083, %v2163
        %v2165 = vpop.f32.mrb[0].mxu0
        %v2166 = vadd.f32 %v1087, %v2165
        %v2167 = vpop.f32.mrb[0].mxu0
        %v2168 = vadd.f32 %v1083, %v2167
        %v2169 = vpop.f32.mrb[0].mxu0
        %v2170 = vadd.f32 %v1087, %v2169
        %2171 = vmatprep.mubr.bf16.mxu0 %v778
        %2172 = vmatmul.mubr.bf16.gmra.mrb[0].mxu0 %v777
        %v2173 = vpop.f32.mrb[0].mxu0
        %v2174 = vadd.f32 %v1083, %v2173
        %v2175 = vpop.f32.mrb[0].mxu0
        %v2176 = vadd.f32 %v1087, %v2175
        %v2177 = vpop.f32.mrb[0].mxu0
        %v2178 = vadd.f32 %v1083, %v2177
        %v2179 = vpop.f32.mrb[0].mxu0
        %v2180 = vadd.f32 %v1087, %v2179
        %2181 = vmatprep.mubr.bf16.mxu0 %v785
        %2182 = vmatmul.mubr.bf16.gmra.mrb[0].mxu0 %v784
        %v2183 = vpop.f32.mrb[0].mxu0
        %v2184 = vadd.f32 %v1083, %v2183
        %v2185 = vpop.f32.mrb[0].mxu0
        %v2186 = vadd.f32 %v1087, %v2185
        %v2187 = vpop.f32.mrb[0].mxu0
        %v2188 = vadd.f32 %v1083, %v2187
        %v2189 = vpop.f32.mrb[0].mxu0
        %v2190 = vadd.f32 %v1087, %v2189
        %2191 = vmatprep.mubr.bf16.mxu0 %v792
        %2192 = vmatmul.mubr.bf16.gmra.mrb[0].mxu0 %v791
        %v2193 = vpop.f32.mrb[0].mxu0
        %v2194 = vadd.f32 %v1083, %v2193
        %v2195 = vpop.f32.mrb[0].mxu0
        %v2196 = vadd.f32 %v1087, %v2195
        %v2197 = vpop.f32.mrb[0].mxu0
        %v2198 = vadd.f32 %v1083, %v2197
        %v2199 = vpop.f32.mrb[0].mxu0
        %v2200 = vadd.f32 %v1087, %v2199
        %2201 = vmatprep.mubr.bf16.mxu0 %v799
        %2202 = vmatmul.mubr.bf16.gmra.mrb[0].mxu0 %v798
        %v2203 = vpop.f32.mrb[0].mxu0
        %v2204 = vadd.f32 %v1083, %v2203
        %v2205 = vpop.f32.mrb[0].mxu0
        %v2206 = vadd.f32 %v1087, %v2205
        %v2207 = vpop.f32.mrb[0].mxu0
        %v2208 = vadd.f32 %v1083, %v2207
        %v2209 = vpop.f32.mrb[0].mxu0
        %v2210 = vadd.f32 %v1087, %v2209
        %2211 = vmatprep.mubr.bf16.mxu0 %v806
        %2212 = vmatmul.mubr.bf16.gmra.mrb[0].mxu0 %v805
        %v2213 = vpop.f32.mrb[0].mxu0
        %v2214 = vadd.f32 %v1083, %v2213
        %v2215 = vpop.f32.mrb[0].mxu0
        %v2216 = vadd.f32 %v1087, %v2215
        %v2217 = vpop.f32.mrb[0].mxu0
        %v2218 = vadd.f32 %v1083, %v2217
        %v2219 = vpop.f32.mrb[0].mxu0
        %v2220 = vadd.f32 %v1087, %v2219
        %2221 = vmatprep.mubr.bf16.mxu0 %v813
        %2222 = vmatmul.mubr.bf16.gmra.mrb[0].mxu0 %v812
        %v2223 = vpop.f32.mrb[0].mxu0
        %v2224 = vadd.f32 %v1083, %v2223
        %v2225 = vpop.f32.mrb[0].mxu0
        %v2226 = vadd.f32 %v1087, %v2225
        %v2227 = vpop.f32.mrb[0].mxu0
        %v2228 = vadd.f32 %v1083, %v2227
        %v2229 = vpop.f32.mrb[0].mxu0
        %v2230 = vadd.f32 %v1087, %v2229
        %2231 = vmatprep.mubr.bf16.mxu0 %v820
        %2232 = vmatmul.mubr.bf16.gmra.mrb[0].mxu0 %v819
        %v2233 = vpop.f32.mrb[0].mxu0
        %v2234 = vadd.f32 %v1083, %v2233
        %v2235 = vpop.f32.mrb[0].mxu0
        %v2236 = vadd.f32 %v1087, %v2235
        %v2237 = vpop.f32.mrb[0].mxu0
        %v2238 = vadd.f32 %v1083, %v2237
        %v2239 = vpop.f32.mrb[0].mxu0
        %v2240 = vadd.f32 %v1087, %v2239
        %2241 = vmatprep.mubr.bf16.mxu0 %v827
        %2242 = vmatmul.mubr.bf16.gmra.mrb[0].mxu0 %v826
        %v2243 = vpop.f32.mrb[0].mxu0
        %v2244 = vadd.f32 %v1083, %v2243
        %v2245 = vpop.f32.mrb[0].mxu0
        %v2246 = vadd.f32 %v1087, %v2245
        %v2247 = vpop.f32.mrb[0].mxu0
        %v2248 = vadd.f32 %v1083, %v2247
        %v2249 = vpop.f32.mrb[0].mxu0
        %v2250 = vadd.f32 %v1087, %v2249
        %2251 = vmatprep.mubr.bf16.mxu0 %v834
        %2252 = vmatmul.mubr.bf16.gmra.mrb[0].mxu0 %v833
        %v2253 = vpop.f32.mrb[0].mxu0
        %v2254 = vadd.f32 %v1083, %v2253
        %v2255 = vpop.f32.mrb[0].mxu0
        %v2256 = vadd.f32 %v1087, %v2255
        %v2257 = vpop.f32.mrb[0].mxu0
        %v2258 = vadd.f32 %v1083, %v2257
        %v2259 = vpop.f32.mrb[0].mxu0
        %v2260 = vadd.f32 %v1087, %v2259
        %2261 = vmatprep.mubr.bf16.mxu0 %v841
        %2262 = vmatmul.mubr.bf16.gmra.mrb[0].mxu0 %v840
        %v2263 = vpop.f32.mrb[0].mxu0
        %v2264 = vadd.f32 %v1083, %v2263
        %v2265 = vpop.f32.mrb[0].mxu0
        %v2266 = vadd.f32 %v1087, %v2265
        %v2267 = vpop.f32.mrb[0].mxu0
        %v2268 = vadd.f32 %v1083, %v2267
        %v2269 = vpop.f32.mrb[0].mxu0
        %v2270 = vadd.f32 %v1087, %v2269
        %2271 = vmatprep.mubr.bf16.mxu0 %v848
        %2272 = vmatmul.mubr.bf16.gmra.mrb[0].mxu0 %v847
        %v2273 = vpop.f32.mrb[0].mxu0
        %v2274 = vadd.f32 %v1083, %v2273
        %v2275 = vpop.f32.mrb[0].mxu0
        %v2276 = vadd.f32 %v1087, %v2275
        %v2277 = vpop.f32.mrb[0].mxu0
        %v2278 = vadd.f32 %v1083, %v2277
        %v2279 = vpop.f32.mrb[0].mxu0
        %v2280 = vadd.f32 %v1087, %v2279
        %2281 = vmatprep.mubr.bf16.mxu0 %v855
        %2282 = vmatmul.mubr.bf16.gmra.mrb[0].mxu0 %v854
        %v2283 = vpop.f32.mrb[0].mxu0
        %v2284 = vadd.f32 %v1083, %v2283
        %v2285 = vpop.f32.mrb[0].mxu0
        %v2286 = vadd.f32 %v1087, %v2285
        %v2287 = vpop.f32.mrb[0].mxu0
        %v2288 = vadd.f32 %v1083, %v2287
        %v2289 = vpop.f32.mrb[0].mxu0
        %v2290 = vadd.f32 %v1087, %v2289
        %2291 = vmatprep.mubr.bf16.mxu0 %v862
        %2292 = vmatmul.mubr.bf16.gmra.mrb[0].mxu0 %v861
        %v2293 = vpop.f32.mrb[0].mxu0
        %v2294 = vadd.f32 %v1083, %v2293
        %v2295 = vpop.f32.mrb[0].mxu0
        %v2296 = vadd.f32 %v1087, %v2295
        %v2297 = vpop.f32.mrb[0].mxu0
        %v2298 = vadd.f32 %v1083, %v2297
        %v2299 = vpop.f32.mrb[0].mxu0
        %v2300 = vadd.f32 %v1087, %v2299
        %2301 = vmatprep.mubr.bf16.mxu0 %v869
        %2302 = vmatmul.mubr.bf16.gmra.mrb[0].mxu0 %v868
        %v2303 = vpop.f32.mrb[0].mxu0
        %v2304 = vadd.f32 %v1083, %v2303
        %v2305 = vpop.f32.mrb[0].mxu0
        %v2306 = vadd.f32 %v1087, %v2305
        %v2307 = vpop.f32.mrb[0].mxu0
        %v2308 = vadd.f32 %v1083, %v2307
        %v2309 = vpop.f32.mrb[0].mxu0
        %v2310 = vadd.f32 %v1087, %v2309
        %2311 = vmatprep.mubr.bf16.mxu0 %v876
        %2312 = vmatmul.mubr.bf16.gmra.mrb[0].mxu0 %v875
        %v2313 = vpop.f32.mrb[0].mxu0
        %v2314 = vadd.f32 %v1083, %v2313
        %v2315 = vpop.f32.mrb[0].mxu0
        %v2316 = vadd.f32 %v1087, %v2315
        %v2317 = vpop.f32.mrb[0].mxu0
        %v2318 = vadd.f32 %v1083, %v2317
        %v2319 = vpop.f32.mrb[0].mxu0
        %v2320 = vadd.f32 %v1087, %v2319
        %2321 = vdwg.mxu0
        %2322 = vmatprep.subr.bf16.mxu0 %v1753
        %2323 = vmatpush1.bf16.msra.mxu0 %v1752
        %2324 = vmatprep.subr.bf16.mxu0 %v1757
        %2325 = vmatpush1.bf16.msra.mxu0 %v1756
        %2326 = vmatprep.subr.bf16.mxu0 %v1761
        %2327 = vmatpush1.bf16.msra.mxu0 %v1760
        %2328 = vmatprep.subr.bf16.mxu0 %v1765
        %2329 = vmatpush1.bf16.msra.mxu0 %v1764
        %2330 = vmatprep.subr.bf16.mxu0 %v1769
        %2331 = vmatpush1.bf16.msra.mxu0 %v1768
        %2332 = vmatprep.subr.bf16.mxu0 %v1773
        %2333 = vmatpush1.bf16.msra.mxu0 %v1772
        %2334 = vmatprep.subr.bf16.mxu0 %v1777
        %2335 = vmatpush1.bf16.msra.mxu0 %v1776
        %2336 = vmatprep.subr.bf16.mxu0 %v1781
        %2337 = vmatpush1.bf16.msra.mxu0 %v1780
        %2338 = vmatprep.subr.bf16.mxu0 %v1785
        %2339 = vmatpush1.bf16.msra.mxu0 %v1784
        %2340 = vmatprep.subr.bf16.mxu0 %v1789
        %2341 = vmatpush1.bf16.msra.mxu0 %v1788
        %2342 = vmatprep.subr.bf16.mxu0 %v1793
        %2343 = vmatpush1.bf16.msra.mxu0 %v1792
        %2344 = vmatprep.subr.bf16.mxu0 %v1797
        %2345 = vmatpush1.bf16.msra.mxu0 %v1796
        %2346 = vmatprep.subr.bf16.mxu0 %v1801
        %2347 = vmatpush1.bf16.msra.mxu0 %v1800
        %2348 = vmatprep.subr.bf16.mxu0 %v1805
        %2349 = vmatpush1.bf16.msra.mxu0 %v1804
        %2350 = vmatprep.subr.bf16.mxu0 %v1809
        %2351 = vmatpush1.bf16.msra.mxu0 %v1808
        %2352 = vmatprep.subr.bf16.mxu0 %v1813
        %2353 = vmatpush1.bf16.msra.mxu0 %v1812
        %2354 = vmatprep.mubr.bf16.mxu0 %v773
        %2355 = vmatmul.mubr.bf16.gmra.mrb[0].mxu0 %v772
        %v2356 = vpop.f32.mrb[0].mxu0
        %v2357 = vadd.f32 %v2164, %v2356
        %v2358 = vpop.f32.mrb[0].mxu0
        %v2359 = vadd.f32 %v2166, %v2358
        %v2360 = vpop.f32.mrb[0].mxu0
        %v2361 = vadd.f32 %v2168, %v2360
        %v2362 = vpop.f32.mrb[0].mxu0
        %v2363 = vadd.f32 %v2170, %v2362
        %2364 = vmatprep.mubr.bf16.mxu0 %v780
        %2365 = vmatmul.mubr.bf16.gmra.mrb[0].mxu0 %v779
        %v2366 = vpop.f32.mrb[0].mxu0
        %v2367 = vadd.f32 %v2174, %v2366
        %v2368 = vpop.f32.mrb[0].mxu0
        %v2369 = vadd.f32 %v2176, %v2368
        %v2370 = vpop.f32.mrb[0].mxu0
        %v2371 = vadd.f32 %v2178, %v2370
        %v2372 = vpop.f32.mrb[0].mxu0
        %v2373 = vadd.f32 %v2180, %v2372
        %2374 = vmatprep.mubr.bf16.mxu0 %v787
        %2375 = vmatmul.mubr.bf16.gmra.mrb[0].mxu0 %v786
        %v2376 = vpop.f32.mrb[0].mxu0
        %v2377 = vadd.f32 %v2184, %v2376
        %v2378 = vpop.f32.mrb[0].mxu0
        %v2379 = vadd.f32 %v2186, %v2378
        %v2380 = vpop.f32.mrb[0].mxu0
        %v2381 = vadd.f32 %v2188, %v2380
        %v2382 = vpop.f32.mrb[0].mxu0
        %v2383 = vadd.f32 %v2190, %v2382
        %2384 = vmatprep.mubr.bf16.mxu0 %v794
        %2385 = vmatmul.mubr.bf16.gmra.mrb[0].mxu0 %v793
        %v2386 = vpop.f32.mrb[0].mxu0
        %v2387 = vadd.f32 %v2194, %v2386
        %v2388 = vpop.f32.mrb[0].mxu0
        %v2389 = vadd.f32 %v2196, %v2388
        %v2390 = vpop.f32.mrb[0].mxu0
        %v2391 = vadd.f32 %v2198, %v2390
        %v2392 = vpop.f32.mrb[0].mxu0
        %v2393 = vadd.f32 %v2200, %v2392
        %2394 = vmatprep.mubr.bf16.mxu0 %v801
        %2395 = vmatmul.mubr.bf16.gmra.mrb[0].mxu0 %v800
        %v2396 = vpop.f32.mrb[0].mxu0
        %v2397 = vadd.f32 %v2204, %v2396
        %v2398 = vpop.f32.mrb[0].mxu0
        %v2399 = vadd.f32 %v2206, %v2398
        %v2400 = vpop.f32.mrb[0].mxu0
        %v2401 = vadd.f32 %v2208, %v2400
        %v2402 = vpop.f32.mrb[0].mxu0
        %v2403 = vadd.f32 %v2210, %v2402
        %2404 = vmatprep.mubr.bf16.mxu0 %v808
        %2405 = vmatmul.mubr.bf16.gmra.mrb[0].mxu0 %v807
        %v2406 = vpop.f32.mrb[0].mxu0
        %v2407 = vadd.f32 %v2214, %v2406
        %v2408 = vpop.f32.mrb[0].mxu0
        %v2409 = vadd.f32 %v2216, %v2408
        %v2410 = vpop.f32.mrb[0].mxu0
        %v2411 = vadd.f32 %v2218, %v2410
        %v2412 = vpop.f32.mrb[0].mxu0
        %v2413 = vadd.f32 %v2220, %v2412
        %2414 = vmatprep.mubr.bf16.mxu0 %v815
        %2415 = vmatmul.mubr.bf16.gmra.mrb[0].mxu0 %v814
        %v2416 = vpop.f32.mrb[0].mxu0
        %v2417 = vadd.f32 %v2224, %v2416
        %v2418 = vpop.f32.mrb[0].mxu0
        %v2419 = vadd.f32 %v2226, %v2418
        %v2420 = vpop.f32.mrb[0].mxu0
        %v2421 = vadd.f32 %v2228, %v2420
        %v2422 = vpop.f32.mrb[0].mxu0
        %v2423 = vadd.f32 %v2230, %v2422
        %2424 = vmatprep.mubr.bf16.mxu0 %v822
        %2425 = vmatmul.mubr.bf16.gmra.mrb[0].mxu0 %v821
        %v2426 = vpop.f32.mrb[0].mxu0
        %v2427 = vadd.f32 %v2234, %v2426
        %v2428 = vpop.f32.mrb[0].mxu0
        %v2429 = vadd.f32 %v2236, %v2428
        %v2430 = vpop.f32.mrb[0].mxu0
        %v2431 = vadd.f32 %v2238, %v2430
        %v2432 = vpop.f32.mrb[0].mxu0
        %v2433 = vadd.f32 %v2240, %v2432
        %2434 = vmatprep.mubr.bf16.mxu0 %v829
        %2435 = vmatmul.mubr.bf16.gmra.mrb[0].mxu0 %v828
        %v2436 = vpop.f32.mrb[0].mxu0
        %v2437 = vadd.f32 %v2244, %v2436
        %v2438 = vpop.f32.mrb[0].mxu0
        %v2439 = vadd.f32 %v2246, %v2438
        %v2440 = vpop.f32.mrb[0].mxu0
        %v2441 = vadd.f32 %v2248, %v2440
        %v2442 = vpop.f32.mrb[0].mxu0
        %v2443 = vadd.f32 %v2250, %v2442
        %2444 = vmatprep.mubr.bf16.mxu0 %v836
        %2445 = vmatmul.mubr.bf16.gmra.mrb[0].mxu0 %v835
        %v2446 = vpop.f32.mrb[0].mxu0
        %v2447 = vadd.f32 %v2254, %v2446
        %v2448 = vpop.f32.mrb[0].mxu0
        %v2449 = vadd.f32 %v2256, %v2448
        %v2450 = vpop.f32.mrb[0].mxu0
        %v2451 = vadd.f32 %v2258, %v2450
        %v2452 = vpop.f32.mrb[0].mxu0
        %v2453 = vadd.f32 %v2260, %v2452
        %2454 = vmatprep.mubr.bf16.mxu0 %v843
        %2455 = vmatmul.mubr.bf16.gmra.mrb[0].mxu0 %v842
        %v2456 = vpop.f32.mrb[0].mxu0
        %v2457 = vadd.f32 %v2264, %v2456
        %v2458 = vpop.f32.mrb[0].mxu0
        %v2459 = vadd.f32 %v2266, %v2458
        %v2460 = vpop.f32.mrb[0].mxu0
        %v2461 = vadd.f32 %v2268, %v2460
        %v2462 = vpop.f32.mrb[0].mxu0
        %v2463 = vadd.f32 %v2270, %v2462
        %2464 = vmatprep.mubr.bf16.mxu0 %v850
        %2465 = vmatmul.mubr.bf16.gmra.mrb[0].mxu0 %v849
        %v2466 = vpop.f32.mrb[0].mxu0
        %v2467 = vadd.f32 %v2274, %v2466
        %v2468 = vpop.f32.mrb[0].mxu0
        %v2469 = vadd.f32 %v2276, %v2468
        %v2470 = vpop.f32.mrb[0].mxu0
        %v2471 = vadd.f32 %v2278, %v2470
        %v2472 = vpop.f32.mrb[0].mxu0
        %v2473 = vadd.f32 %v2280, %v2472
        %2474 = vmatprep.mubr.bf16.mxu0 %v857
        %2475 = vmatmul.mubr.bf16.gmra.mrb[0].mxu0 %v856
        %v2476 = vpop.f32.mrb[0].mxu0
        %v2477 = vadd.f32 %v2284, %v2476
        %v2478 = vpop.f32.mrb[0].mxu0
        %v2479 = vadd.f32 %v2286, %v2478
        %v2480 = vpop.f32.mrb[0].mxu0
        %v2481 = vadd.f32 %v2288, %v2480
        %v2482 = vpop.f32.mrb[0].mxu0
        %v2483 = vadd.f32 %v2290, %v2482
        %2484 = vmatprep.mubr.bf16.mxu0 %v864
        %2485 = vmatmul.mubr.bf16.gmra.mrb[0].mxu0 %v863
        %v2486 = vpop.f32.mrb[0].mxu0
        %v2487 = vadd.f32 %v2294, %v2486
        %v2488 = vpop.f32.mrb[0].mxu0
        %v2489 = vadd.f32 %v2296, %v2488
        %v2490 = vpop.f32.mrb[0].mxu0
        %v2491 = vadd.f32 %v2298, %v2490
        %v2492 = vpop.f32.mrb[0].mxu0
        %v2493 = vadd.f32 %v2300, %v2492
        %2494 = vmatprep.mubr.bf16.mxu0 %v871
        %2495 = vmatmul.mubr.bf16.gmra.mrb[0].mxu0 %v870
        %v2496 = vpop.f32.mrb[0].mxu0
        %v2497 = vadd.f32 %v2304, %v2496
        %v2498 = vpop.f32.mrb[0].mxu0
        %v2499 = vadd.f32 %v2306, %v2498
        %v2500 = vpop.f32.mrb[0].mxu0
        %v2501 = vadd.f32 %v2308, %v2500
        %v2502 = vpop.f32.mrb[0].mxu0
        %v2503 = vadd.f32 %v2310, %v2502
        %2504 = vmatprep.mubr.bf16.mxu0 %v878
        %2505 = vmatmul.mubr.bf16.gmra.mrb[0].mxu0 %v877
        %v2506 = vpop.f32.mrb[0].mxu0
        %v2507 = vadd.f32 %v2314, %v2506
        %v2508 = vpop.f32.mrb[0].mxu0
        %v2509 = vadd.f32 %v2316, %v2508
        %v2510 = vpop.f32.mrb[0].mxu0
        %v2511 = vadd.f32 %v2318, %v2510
        %v2512 = vpop.f32.mrb[0].mxu0
        %v2513 = vadd.f32 %v2320, %v2512
        %2514 = vdwg.mxu0
        %2515 = vmatprep.subr.bf16.mxu0 %v1817
        %2516 = vmatpush1.bf16.msra.mxu0 %v1816
        %2517 = vmatprep.subr.bf16.mxu0 %v1821
        %2518 = vmatpush1.bf16.msra.mxu0 %v1820
        %2519 = vmatprep.subr.bf16.mxu0 %v1825
        %2520 = vmatpush1.bf16.msra.mxu0 %v1824
        %2521 = vmatprep.subr.bf16.mxu0 %v1829
        %2522 = vmatpush1.bf16.msra.mxu0 %v1828
        %2523 = vmatprep.subr.bf16.mxu0 %v1833
        %2524 = vmatpush1.bf16.msra.mxu0 %v1832
        %2525 = vmatprep.subr.bf16.mxu0 %v1837
        %2526 = vmatpush1.bf16.msra.mxu0 %v1836
        %2527 = vmatprep.subr.bf16.mxu0 %v1841
        %2528 = vmatpush1.bf16.msra.mxu0 %v1840
        %2529 = vmatprep.subr.bf16.mxu0 %v1845
        %2530 = vmatpush1.bf16.msra.mxu0 %v1844
        %2531 = vmatprep.subr.bf16.mxu0 %v1849
        %2532 = vmatpush1.bf16.msra.mxu0 %v1848
        %2533 = vmatprep.subr.bf16.mxu0 %v1853
        %2534 = vmatpush1.bf16.msra.mxu0 %v1852
        %2535 = vmatprep.subr.bf16.mxu0 %v1857
        %2536 = vmatpush1.bf16.msra.mxu0 %v1856
        %2537 = vmatprep.subr.bf16.mxu0 %v1861
        %2538 = vmatpush1.bf16.msra.mxu0 %v1860
        %2539 = vmatprep.subr.bf16.mxu0 %v1865
        %2540 = vmatpush1.bf16.msra.mxu0 %v1864
        %2541 = vmatprep.subr.bf16.mxu0 %v1869
        %2542 = vmatpush1.bf16.msra.mxu0 %v1868
        %2543 = vmatprep.subr.bf16.mxu0 %v1873
        %2544 = vmatpush1.bf16.msra.mxu0 %v1872
        %2545 = vmatprep.subr.bf16.mxu0 %v1877
        %2546 = vmatpush1.bf16.msra.mxu0 %v1876
        %2547 = vmatprep.mubr.bf16.mxu0 %v775
        %2548 = vmatmul.mubr.bf16.gmra.mrb[0].mxu0 %v774
        %v2549 = vpop.f32.mrb[0].mxu0
        %v2550 = vadd.f32 %v2357, %v2549
        %v2551 = vpop.f32.mrb[0].mxu0
        %v2552 = vadd.f32 %v2359, %v2551
        %v2553 = vpop.f32.mrb[0].mxu0
        %v2554 = vadd.f32 %v2361, %v2553
        %v2555 = vpop.f32.mrb[0].mxu0
        %v2556 = vadd.f32 %v2363, %v2555
        %2557 = vmatprep.mubr.bf16.mxu0 %v782
        %2558 = vmatmul.mubr.bf16.gmra.mrb[0].mxu0 %v781
        %v2559 = vpop.f32.mrb[0].mxu0
        %v2560 = vadd.f32 %v2367, %v2559
        %v2561 = vpop.f32.mrb[0].mxu0
        %v2562 = vadd.f32 %v2369, %v2561
        %v2563 = vpop.f32.mrb[0].mxu0
        %v2564 = vadd.f32 %v2371, %v2563
        %v2565 = vpop.f32.mrb[0].mxu0
        %v2566 = vadd.f32 %v2373, %v2565
        %2567 = vmatprep.mubr.bf16.mxu0 %v789
        %2568 = vmatmul.mubr.bf16.gmra.mrb[0].mxu0 %v788
        %v2569 = vpop.f32.mrb[0].mxu0
        %v2570 = vadd.f32 %v2377, %v2569
        %v2571 = vpop.f32.mrb[0].mxu0
        %v2572 = vadd.f32 %v2379, %v2571
        %v2573 = vpop.f32.mrb[0].mxu0
        %v2574 = vadd.f32 %v2381, %v2573
        %v2575 = vpop.f32.mrb[0].mxu0
        %v2576 = vadd.f32 %v2383, %v2575
        %2577 = vmatprep.mubr.bf16.mxu0 %v796
        %2578 = vmatmul.mubr.bf16.gmra.mrb[0].mxu0 %v795
        %v2579 = vpop.f32.mrb[0].mxu0
        %v2580 = vadd.f32 %v2387, %v2579
        %v2581 = vpop.f32.mrb[0].mxu0
        %v2582 = vadd.f32 %v2389, %v2581
        %v2583 = vpop.f32.mrb[0].mxu0
        %v2584 = vadd.f32 %v2391, %v2583
        %v2585 = vpop.f32.mrb[0].mxu0
        %v2586 = vadd.f32 %v2393, %v2585
        %2587 = vmatprep.mubr.bf16.mxu0 %v803
        %2588 = vmatmul.mubr.bf16.gmra.mrb[0].mxu0 %v802
        %v2589 = vpop.f32.mrb[0].mxu0
        %v2590 = vadd.f32 %v2397, %v2589
        %v2591 = vpop.f32.mrb[0].mxu0
        %v2592 = vadd.f32 %v2399, %v2591
        %v2593 = vpop.f32.mrb[0].mxu0
        %v2594 = vadd.f32 %v2401, %v2593
        %v2595 = vpop.f32.mrb[0].mxu0
        %v2596 = vadd.f32 %v2403, %v2595
        %2597 = vmatprep.mubr.bf16.mxu0 %v810
        %2598 = vmatmul.mubr.bf16.gmra.mrb[0].mxu0 %v809
        %v2599 = vpop.f32.mrb[0].mxu0
        %v2600 = vadd.f32 %v2407, %v2599
        %v2601 = vpop.f32.mrb[0].mxu0
        %v2602 = vadd.f32 %v2409, %v2601
        %v2603 = vpop.f32.mrb[0].mxu0
        %v2604 = vadd.f32 %v2411, %v2603
        %v2605 = vpop.f32.mrb[0].mxu0
        %v2606 = vadd.f32 %v2413, %v2605
        %2607 = vmatprep.mubr.bf16.mxu0 %v817
        %2608 = vmatmul.mubr.bf16.gmra.mrb[0].mxu0 %v816
        %v2609 = vpop.f32.mrb[0].mxu0
        %v2610 = vadd.f32 %v2417, %v2609
        %v2611 = vpop.f32.mrb[0].mxu0
        %v2612 = vadd.f32 %v2419, %v2611
        %v2613 = vpop.f32.mrb[0].mxu0
        %v2614 = vadd.f32 %v2421, %v2613
        %v2615 = vpop.f32.mrb[0].mxu0
        %v2616 = vadd.f32 %v2423, %v2615
        %2617 = vmatprep.mubr.bf16.mxu0 %v824
        %2618 = vmatmul.mubr.bf16.gmra.mrb[0].mxu0 %v823
        %v2619 = vpop.f32.mrb[0].mxu0
        %v2620 = vadd.f32 %v2427, %v2619
        %v2621 = vpop.f32.mrb[0].mxu0
        %v2622 = vadd.f32 %v2429, %v2621
        %v2623 = vpop.f32.mrb[0].mxu0
        %v2624 = vadd.f32 %v2431, %v2623
        %v2625 = vpop.f32.mrb[0].mxu0
        %v2626 = vadd.f32 %v2433, %v2625
        %2627 = vmatprep.mubr.bf16.mxu0 %v831
        %2628 = vmatmul.mubr.bf16.gmra.mrb[0].mxu0 %v830
        %v2629 = vpop.f32.mrb[0].mxu0
        %v2630 = vadd.f32 %v2437, %v2629
        %v2631 = vpop.f32.mrb[0].mxu0
        %v2632 = vadd.f32 %v2439, %v2631
        %v2633 = vpop.f32.mrb[0].mxu0
        %v2634 = vadd.f32 %v2441, %v2633
        %v2635 = vpop.f32.mrb[0].mxu0
        %v2636 = vadd.f32 %v2443, %v2635
        %2637 = vmatprep.mubr.bf16.mxu0 %v838
        %2638 = vmatmul.mubr.bf16.gmra.mrb[0].mxu0 %v837
        %v2639 = vpop.f32.mrb[0].mxu0
        %v2640 = vadd.f32 %v2447, %v2639
        %v2641 = vpop.f32.mrb[0].mxu0
        %v2642 = vadd.f32 %v2449, %v2641
        %v2643 = vpop.f32.mrb[0].mxu0
        %v2644 = vadd.f32 %v2451, %v2643
        %v2645 = vpop.f32.mrb[0].mxu0
        %v2646 = vadd.f32 %v2453, %v2645
        %2647 = vmatprep.mubr.bf16.mxu0 %v845
        %2648 = vmatmul.mubr.bf16.gmra.mrb[0].mxu0 %v844
        %v2649 = vpop.f32.mrb[0].mxu0
        %v2650 = vadd.f32 %v2457, %v2649
        %v2651 = vpop.f32.mrb[0].mxu0
        %v2652 = vadd.f32 %v2459, %v2651
        %v2653 = vpop.f32.mrb[0].mxu0
        %v2654 = vadd.f32 %v2461, %v2653
        %v2655 = vpop.f32.mrb[0].mxu0
        %v2656 = vadd.f32 %v2463, %v2655
        %2657 = vmatprep.mubr.bf16.mxu0 %v852
        %2658 = vmatmul.mubr.bf16.gmra.mrb[0].mxu0 %v851
        %v2659 = vpop.f32.mrb[0].mxu0
        %v2660 = vadd.f32 %v2467, %v2659
        %v2661 = vpop.f32.mrb[0].mxu0
        %v2662 = vadd.f32 %v2469, %v2661
        %v2663 = vpop.f32.mrb[0].mxu0
        %v2664 = vadd.f32 %v2471, %v2663
        %v2665 = vpop.f32.mrb[0].mxu0
        %v2666 = vadd.f32 %v2473, %v2665
        %2667 = vmatprep.mubr.bf16.mxu0 %v859
        %2668 = vmatmul.mubr.bf16.gmra.mrb[0].mxu0 %v858
        %v2669 = vpop.f32.mrb[0].mxu0
        %v2670 = vadd.f32 %v2477, %v2669
        %v2671 = vpop.f32.mrb[0].mxu0
        %v2672 = vadd.f32 %v2479, %v2671
        %v2673 = vpop.f32.mrb[0].mxu0
        %v2674 = vadd.f32 %v2481, %v2673
        %v2675 = vpop.f32.mrb[0].mxu0
        %v2676 = vadd.f32 %v2483, %v2675
        %2677 = vmatprep.mubr.bf16.mxu0 %v866
        %2678 = vmatmul.mubr.bf16.gmra.mrb[0].mxu0 %v865
        %v2679 = vpop.f32.mrb[0].mxu0
        %v2680 = vadd.f32 %v2487, %v2679
        %v2681 = vpop.f32.mrb[0].mxu0
        %v2682 = vadd.f32 %v2489, %v2681
        %v2683 = vpop.f32.mrb[0].mxu0
        %v2684 = vadd.f32 %v2491, %v2683
        %v2685 = vpop.f32.mrb[0].mxu0
        %v2686 = vadd.f32 %v2493, %v2685
        %2687 = vmatprep.mubr.bf16.mxu0 %v873
        %2688 = vmatmul.mubr.bf16.gmra.mrb[0].mxu0 %v872
        %v2689 = vpop.f32.mrb[0].mxu0
        %v2690 = vadd.f32 %v2497, %v2689
        %v2691 = vpop.f32.mrb[0].mxu0
        %v2692 = vadd.f32 %v2499, %v2691
        %v2693 = vpop.f32.mrb[0].mxu0
        %v2694 = vadd.f32 %v2501, %v2693
        %v2695 = vpop.f32.mrb[0].mxu0
        %v2696 = vadd.f32 %v2503, %v2695
        %2697 = vmatprep.mubr.bf16.mxu0 %v880
        %2698 = vmatmul.mubr.bf16.gmra.mrb[0].mxu0 %v879
        %v2699 = vpop.f32.mrb[0].mxu0
        %v2700 = vadd.f32 %v2507, %v2699
        %v2701 = vpop.f32.mrb[0].mxu0
        %v2702 = vadd.f32 %v2509, %v2701
        %v2703 = vpop.f32.mrb[0].mxu0
        %v2704 = vadd.f32 %v2511, %v2703
        %v2705 = vpop.f32.mrb[0].mxu0
        %v2706 = vadd.f32 %v2513, %v2705
        %2707 = vdwg.mxu0
        %2708 = vmatprep.subr.bf16.mxu0 %v1881
        %2709 = vmatpush1.bf16.msra.mxu0 %v1880
        %2710 = vmatprep.subr.bf16.mxu0 0
        %2711 = vmatpush1.bf16.msra.mxu0 0
        %2712 = vmatprep.subr.bf16.mxu0 0
        %2713 = vmatpush1.bf16.msra.mxu0 0
        %2714 = vmatprep.subr.bf16.mxu0 0
        %2715 = vmatpush1.bf16.msra.mxu0 0
        %2716 = vmatprep.subr.bf16.mxu0 0
        %2717 = vmatpush1.bf16.msra.mxu0 0
        %2718 = vmatprep.subr.bf16.mxu0 0
        %2719 = vmatpush1.bf16.msra.mxu0 0
        %2720 = vmatprep.subr.bf16.mxu0 0
        %2721 = vmatpush1.bf16.msra.mxu0 0
        %2722 = vmatprep.subr.bf16.mxu0 0
        %2723 = vmatpush1.bf16.msra.mxu0 0
        %2724 = vmatprep.subr.bf16.mxu0 0
        %2725 = vmatpush1.bf16.msra.mxu0 0
        %2726 = vmatprep.subr.bf16.mxu0 0
        %2727 = vmatpush1.bf16.msra.mxu0 0
        %2728 = vmatprep.subr.bf16.mxu0 0
        %2729 = vmatpush1.bf16.msra.mxu0 0
        %2730 = vmatprep.subr.bf16.mxu0 0
        %2731 = vmatpush1.bf16.msra.mxu0 0
        %2732 = vmatprep.subr.bf16.mxu0 0
        %2733 = vmatpush1.bf16.msra.mxu0 0
        %2734 = vmatprep.subr.bf16.mxu0 0
        %2735 = vmatpush1.bf16.msra.mxu0 0
        %2736 = vmatprep.subr.bf16.mxu0 0
        %2737 = vmatpush1.bf16.msra.mxu0 0
        %2738 = vmatprep.subr.bf16.mxu0 0
        %2739 = vmatpush1.bf16.msra.mxu0 0
        %2740 = vmatprep.mubr.bf16.mxu0 0
        %2741 = vmatmul.mubr.bf16.gmra.mrb[0].mxu0 %v2082
        %v2742 = vpop.f32.mrb[0].mxu0
        %v2743 = vadd.f32 %v2550, %v2742
        %v2744 = vpop.f32.mrb[0].mxu0
        %v2745 = vadd.f32 %v2552, %v2744
        %v2746 = vpop.f32.mrb[0].mxu0
        %v2747 = vadd.f32 %v2554, %v2746
        %v2748 = vpop.f32.mrb[0].mxu0
        %v2749 = vadd.f32 %v2556, %v2748
        %2750 = vmatprep.mubr.bf16.mxu0 0
        %2751 = vmatmul.mubr.bf16.gmra.mrb[0].mxu0 %v2085
        %v2752 = vpop.f32.mrb[0].mxu0
        %v2753 = vadd.f32 %v2560, %v2752
        %v2754 = vpop.f32.mrb[0].mxu0
        %v2755 = vadd.f32 %v2562, %v2754
        %v2756 = vpop.f32.mrb[0].mxu0
        %v2757 = vadd.f32 %v2564, %v2756
        %v2758 = vpop.f32.mrb[0].mxu0
        %v2759 = vadd.f32 %v2566, %v2758
        %2760 = vmatprep.mubr.bf16.mxu0 0
        %2761 = vmatmul.mubr.bf16.gmra.mrb[0].mxu0 %v2088
        %v2762 = vpop.f32.mrb[0].mxu0
        %v2763 = vadd.f32 %v2570, %v2762
        %v2764 = vpop.f32.mrb[0].mxu0
        %v2765 = vadd.f32 %v2572, %v2764
        %v2766 = vpop.f32.mrb[0].mxu0
        %v2767 = vadd.f32 %v2574, %v2766
        %v2768 = vpop.f32.mrb[0].mxu0
        %v2769 = vadd.f32 %v2576, %v2768
        %2770 = vmatprep.mubr.bf16.mxu0 0
        %2771 = vmatmul.mubr.bf16.gmra.mrb[0].mxu0 %v2091
        %v2772 = vpop.f32.mrb[0].mxu0
        %v2773 = vadd.f32 %v2580, %v2772
        %v2774 = vpop.f32.mrb[0].mxu0
        %v2775 = vadd.f32 %v2582, %v2774
        %v2776 = vpop.f32.mrb[0].mxu0
        %v2777 = vadd.f32 %v2584, %v2776
        %v2778 = vpop.f32.mrb[0].mxu0
        %v2779 = vadd.f32 %v2586, %v2778
        %2780 = vmatprep.mubr.bf16.mxu0 0
        %2781 = vmatmul.mubr.bf16.gmra.mrb[0].mxu0 %v2094
        %v2782 = vpop.f32.mrb[0].mxu0
        %v2783 = vadd.f32 %v2590, %v2782
        %v2784 = vpop.f32.mrb[0].mxu0
        %v2785 = vadd.f32 %v2592, %v2784
        %v2786 = vpop.f32.mrb[0].mxu0
        %v2787 = vadd.f32 %v2594, %v2786
        %v2788 = vpop.f32.mrb[0].mxu0
        %v2789 = vadd.f32 %v2596, %v2788
        %2790 = vmatprep.mubr.bf16.mxu0 0
        %2791 = vmatmul.mubr.bf16.gmra.mrb[0].mxu0 %v2097
        %v2792 = vpop.f32.mrb[0].mxu0
        %v2793 = vadd.f32 %v2600, %v2792
        %v2794 = vpop.f32.mrb[0].mxu0
        %v2795 = vadd.f32 %v2602, %v2794
        %v2796 = vpop.f32.mrb[0].mxu0
        %v2797 = vadd.f32 %v2604, %v2796
        %v2798 = vpop.f32.mrb[0].mxu0
        %v2799 = vadd.f32 %v2606, %v2798
        %2800 = vmatprep.mubr.bf16.mxu0 0
        %2801 = vmatmul.mubr.bf16.gmra.mrb[0].mxu0 %v2100
        %v2802 = vpop.f32.mrb[0].mxu0
        %v2803 = vadd.f32 %v2610, %v2802
        %v2804 = vpop.f32.mrb[0].mxu0
        %v2805 = vadd.f32 %v2612, %v2804
        %v2806 = vpop.f32.mrb[0].mxu0
        %v2807 = vadd.f32 %v2614, %v2806
        %v2808 = vpop.f32.mrb[0].mxu0
        %v2809 = vadd.f32 %v2616, %v2808
        %2810 = vmatprep.mubr.bf16.mxu0 0
        %2811 = vmatmul.mubr.bf16.gmra.mrb[0].mxu0 %v2103
        %v2812 = vpop.f32.mrb[0].mxu0
        %v2813 = vadd.f32 %v2620, %v2812
        %v2814 = vpop.f32.mrb[0].mxu0
        %v2815 = vadd.f32 %v2622, %v2814
        %v2816 = vpop.f32.mrb[0].mxu0
        %v2817 = vadd.f32 %v2624, %v2816
        %v2818 = vpop.f32.mrb[0].mxu0
        %v2819 = vadd.f32 %v2626, %v2818
        %2820 = vmatprep.mubr.bf16.mxu0 0
        %2821 = vmatmul.mubr.bf16.gmra.mrb[0].mxu0 %v2106
        %v2822 = vpop.f32.mrb[0].mxu0
        %v2823 = vadd.f32 %v2630, %v2822
        %v2824 = vpop.f32.mrb[0].mxu0
        %v2825 = vadd.f32 %v2632, %v2824
        %v2826 = vpop.f32.mrb[0].mxu0
        %v2827 = vadd.f32 %v2634, %v2826
        %v2828 = vpop.f32.mrb[0].mxu0
        %v2829 = vadd.f32 %v2636, %v2828
        %2830 = vmatprep.mubr.bf16.mxu0 0
        %2831 = vmatmul.mubr.bf16.gmra.mrb[0].mxu0 %v2109
        %v2832 = vpop.f32.mrb[0].mxu0
        %v2833 = vadd.f32 %v2640, %v2832
        %v2834 = vpop.f32.mrb[0].mxu0
        %v2835 = vadd.f32 %v2642, %v2834
        %v2836 = vpop.f32.mrb[0].mxu0
        %v2837 = vadd.f32 %v2644, %v2836
        %v2838 = vpop.f32.mrb[0].mxu0
        %v2839 = vadd.f32 %v2646, %v2838
        %2840 = vmatprep.mubr.bf16.mxu0 0
        %2841 = vmatmul.mubr.bf16.gmra.mrb[0].mxu0 %v2112
        %v2842 = vpop.f32.mrb[0].mxu0
        %v2843 = vadd.f32 %v2650, %v2842
        %v2844 = vpop.f32.mrb[0].mxu0
        %v2845 = vadd.f32 %v2652, %v2844
        %v2846 = vpop.f32.mrb[0].mxu0
        %v2847 = vadd.f32 %v2654, %v2846
        %v2848 = vpop.f32.mrb[0].mxu0
        %v2849 = vadd.f32 %v2656, %v2848
        %2850 = vmatprep.mubr.bf16.mxu0 0
        %2851 = vmatmul.mubr.bf16.gmra.mrb[0].mxu0 %v2115
        %v2852 = vpop.f32.mrb[0].mxu0
        %v2853 = vadd.f32 %v2660, %v2852
        %v2854 = vpop.f32.mrb[0].mxu0
        %v2855 = vadd.f32 %v2662, %v2854
        %v2856 = vpop.f32.mrb[0].mxu0
        %v2857 = vadd.f32 %v2664, %v2856
        %v2858 = vpop.f32.mrb[0].mxu0
        %v2859 = vadd.f32 %v2666, %v2858
        %2860 = vmatprep.mubr.bf16.mxu0 0
        %2861 = vmatmul.mubr.bf16.gmra.mrb[0].mxu0 %v2118
        %v2862 = vpop.f32.mrb[0].mxu0
        %v2863 = vadd.f32 %v2670, %v2862
        %v2864 = vpop.f32.mrb[0].mxu0
        %v2865 = vadd.f32 %v2672, %v2864
        %v2866 = vpop.f32.mrb[0].mxu0
        %v2867 = vadd.f32 %v2674, %v2866
        %v2868 = vpop.f32.mrb[0].mxu0
        %v2869 = vadd.f32 %v2676, %v2868
        %2870 = vmatprep.mubr.bf16.mxu0 0
        %2871 = vmatmul.mubr.bf16.gmra.mrb[0].mxu0 %v2121
        %v2872 = vpop.f32.mrb[0].mxu0
        %v2873 = vadd.f32 %v2680, %v2872
        %v2874 = vpop.f32.mrb[0].mxu0
        %v2875 = vadd.f32 %v2682, %v2874
        %v2876 = vpop.f32.mrb[0].mxu0
        %v2877 = vadd.f32 %v2684, %v2876
        %v2878 = vpop.f32.mrb[0].mxu0
        %v2879 = vadd.f32 %v2686, %v2878
        %2880 = vmatprep.mubr.bf16.mxu0 0
        %2881 = vmatmul.mubr.bf16.gmra.mrb[0].mxu0 %v2124
        %v2882 = vpop.f32.mrb[0].mxu0
        %v2883 = vadd.f32 %v2690, %v2882
        %v2884 = vpop.f32.mrb[0].mxu0
        %v2885 = vadd.f32 %v2692, %v2884
        %v2886 = vpop.f32.mrb[0].mxu0
        %v2887 = vadd.f32 %v2694, %v2886
        %v2888 = vpop.f32.mrb[0].mxu0
        %v2889 = vadd.f32 %v2696, %v2888
        %2890 = vmatprep.mubr.bf16.mxu0 0
        %2891 = vmatmul.mubr.bf16.gmra.mrb[0].mxu0 %v2127
        %v2892 = vpop.f32.mrb[0].mxu0
        %v2893 = vadd.f32 %v2700, %v2892
        %v2894 = vpop.f32.mrb[0].mxu0
        %v2895 = vadd.f32 %v2702, %v2894
        %v2896 = vpop.f32.mrb[0].mxu0
        %v2897 = vadd.f32 %v2704, %v2896
        %v2898 = vpop.f32.mrb[0].mxu0
        %v2899 = vadd.f32 %v2706, %v2898
        %2900 = vdwg.mxu0
        %2901 = vmatprep.subr.bf16.mxu0 %v1691
        %2902 = vmatpush1.bf16.msra.mxu0 %v1690
        %2903 = vmatprep.subr.bf16.mxu0 %v1695
        %2904 = vmatpush1.bf16.msra.mxu0 %v1694
        %2905 = vmatprep.subr.bf16.mxu0 %v1699
        %2906 = vmatpush1.bf16.msra.mxu0 %v1698
        %2907 = vmatprep.subr.bf16.mxu0 %v1703
        %2908 = vmatpush1.bf16.msra.mxu0 %v1702
        %2909 = vmatprep.subr.bf16.mxu0 %v1707
        %2910 = vmatpush1.bf16.msra.mxu0 %v1706
        %2911 = vmatprep.subr.bf16.mxu0 %v1711
        %2912 = vmatpush1.bf16.msra.mxu0 %v1710
        %2913 = vmatprep.subr.bf16.mxu0 %v1715
        %2914 = vmatpush1.bf16.msra.mxu0 %v1714
        %2915 = vmatprep.subr.bf16.mxu0 %v1719
        %2916 = vmatpush1.bf16.msra.mxu0 %v1718
        %2917 = vmatprep.subr.bf16.mxu0 %v1723
        %2918 = vmatpush1.bf16.msra.mxu0 %v1722
        %2919 = vmatprep.subr.bf16.mxu0 %v1727
        %2920 = vmatpush1.bf16.msra.mxu0 %v1726
        %2921 = vmatprep.subr.bf16.mxu0 %v1731
        %2922 = vmatpush1.bf16.msra.mxu0 %v1730
        %2923 = vmatprep.subr.bf16.mxu0 %v1735
        %2924 = vmatpush1.bf16.msra.mxu0 %v1734
        %2925 = vmatprep.subr.bf16.mxu0 %v1739
        %2926 = vmatpush1.bf16.msra.mxu0 %v1738
        %2927 = vmatprep.subr.bf16.mxu0 %v1743
        %2928 = vmatpush1.bf16.msra.mxu0 %v1742
        %2929 = vmatprep.subr.bf16.mxu0 %v1747
        %2930 = vmatpush1.bf16.msra.mxu0 %v1746
        %2931 = vmatprep.subr.bf16.mxu0 %v1751
        %2932 = vmatpush1.bf16.msra.mxu0 %v1750
        %2933 = vmatprep.mubr.bf16.mxu0 %v771
        %2934 = vmatmul.mubr.bf16.gmra.mrb[0].mxu0 %v770
        %v2935 = vpop.f32.mrb[0].mxu0
        %v2936 = vadd.f32 %v1091, %v2935
        %v2937 = vpop.f32.mrb[0].mxu0
        %v2938 = vadd.f32 %v1095, %v2937
        %v2939 = vpop.f32.mrb[0].mxu0
        %v2940 = vadd.f32 %v1091, %v2939
        %v2941 = vpop.f32.mrb[0].mxu0
        %v2942 = vadd.f32 %v1095, %v2941
        %2943 = vmatprep.mubr.bf16.mxu0 %v778
        %2944 = vmatmul.mubr.bf16.gmra.mrb[0].mxu0 %v777
        %v2945 = vpop.f32.mrb[0].mxu0
        %v2946 = vadd.f32 %v1091, %v2945
        %v2947 = vpop.f32.mrb[0].mxu0
        %v2948 = vadd.f32 %v1095, %v2947
        %v2949 = vpop.f32.mrb[0].mxu0
        %v2950 = vadd.f32 %v1091, %v2949
        %v2951 = vpop.f32.mrb[0].mxu0
        %v2952 = vadd.f32 %v1095, %v2951
        %2953 = vmatprep.mubr.bf16.mxu0 %v785
        %2954 = vmatmul.mubr.bf16.gmra.mrb[0].mxu0 %v784
        %v2955 = vpop.f32.mrb[0].mxu0
        %v2956 = vadd.f32 %v1091, %v2955
        %v2957 = vpop.f32.mrb[0].mxu0
        %v2958 = vadd.f32 %v1095, %v2957
        %v2959 = vpop.f32.mrb[0].mxu0
        %v2960 = vadd.f32 %v1091, %v2959
        %v2961 = vpop.f32.mrb[0].mxu0
        %v2962 = vadd.f32 %v1095, %v2961
        %2963 = vmatprep.mubr.bf16.mxu0 %v792
        %2964 = vmatmul.mubr.bf16.gmra.mrb[0].mxu0 %v791
        %v2965 = vpop.f32.mrb[0].mxu0
        %v2966 = vadd.f32 %v1091, %v2965
        %v2967 = vpop.f32.mrb[0].mxu0
        %v2968 = vadd.f32 %v1095, %v2967
        %v2969 = vpop.f32.mrb[0].mxu0
        %v2970 = vadd.f32 %v1091, %v2969
        %v2971 = vpop.f32.mrb[0].mxu0
        %v2972 = vadd.f32 %v1095, %v2971
        %2973 = vmatprep.mubr.bf16.mxu0 %v799
        %2974 = vmatmul.mubr.bf16.gmra.mrb[0].mxu0 %v798
        %v2975 = vpop.f32.mrb[0].mxu0
        %v2976 = vadd.f32 %v1091, %v2975
        %v2977 = vpop.f32.mrb[0].mxu0
        %v2978 = vadd.f32 %v1095, %v2977
        %v2979 = vpop.f32.mrb[0].mxu0
        %v2980 = vadd.f32 %v1091, %v2979
        %v2981 = vpop.f32.mrb[0].mxu0
        %v2982 = vadd.f32 %v1095, %v2981
        %2983 = vmatprep.mubr.bf16.mxu0 %v806
        %2984 = vmatmul.mubr.bf16.gmra.mrb[0].mxu0 %v805
        %v2985 = vpop.f32.mrb[0].mxu0
        %v2986 = vadd.f32 %v1091, %v2985
        %v2987 = vpop.f32.mrb[0].mxu0
        %v2988 = vadd.f32 %v1095, %v2987
        %v2989 = vpop.f32.mrb[0].mxu0
        %v2990 = vadd.f32 %v1091, %v2989
        %v2991 = vpop.f32.mrb[0].mxu0
        %v2992 = vadd.f32 %v1095, %v2991
        %2993 = vmatprep.mubr.bf16.mxu0 %v813
        %2994 = vmatmul.mubr.bf16.gmra.mrb[0].mxu0 %v812
        %v2995 = vpop.f32.mrb[0].mxu0
        %v2996 = vadd.f32 %v1091, %v2995
        %v2997 = vpop.f32.mrb[0].mxu0
        %v2998 = vadd.f32 %v1095, %v2997
        %v2999 = vpop.f32.mrb[0].mxu0
        %v3000 = vadd.f32 %v1091, %v2999
        %v3001 = vpop.f32.mrb[0].mxu0
        %v3002 = vadd.f32 %v1095, %v3001
        %3003 = vmatprep.mubr.bf16.mxu0 %v820
        %3004 = vmatmul.mubr.bf16.gmra.mrb[0].mxu0 %v819
        %v3005 = vpop.f32.mrb[0].mxu0
        %v3006 = vadd.f32 %v1091, %v3005
        %v3007 = vpop.f32.mrb[0].mxu0
        %v3008 = vadd.f32 %v1095, %v3007
        %v3009 = vpop.f32.mrb[0].mxu0
        %v3010 = vadd.f32 %v1091, %v3009
        %v3011 = vpop.f32.mrb[0].mxu0
        %v3012 = vadd.f32 %v1095, %v3011
        %3013 = vmatprep.mubr.bf16.mxu0 %v827
        %3014 = vmatmul.mubr.bf16.gmra.mrb[0].mxu0 %v826
        %v3015 = vpop.f32.mrb[0].mxu0
        %v3016 = vadd.f32 %v1091, %v3015
        %v3017 = vpop.f32.mrb[0].mxu0
        %v3018 = vadd.f32 %v1095, %v3017
        %v3019 = vpop.f32.mrb[0].mxu0
        %v3020 = vadd.f32 %v1091, %v3019
        %v3021 = vpop.f32.mrb[0].mxu0
        %v3022 = vadd.f32 %v1095, %v3021
        %3023 = vmatprep.mubr.bf16.mxu0 %v834
        %3024 = vmatmul.mubr.bf16.gmra.mrb[0].mxu0 %v833
        %v3025 = vpop.f32.mrb[0].mxu0
        %v3026 = vadd.f32 %v1091, %v3025
        %v3027 = vpop.f32.mrb[0].mxu0
        %v3028 = vadd.f32 %v1095, %v3027
        %v3029 = vpop.f32.mrb[0].mxu0
        %v3030 = vadd.f32 %v1091, %v3029
        %v3031 = vpop.f32.mrb[0].mxu0
        %v3032 = vadd.f32 %v1095, %v3031
        %3033 = vmatprep.mubr.bf16.mxu0 %v841
        %3034 = vmatmul.mubr.bf16.gmra.mrb[0].mxu0 %v840
        %v3035 = vpop.f32.mrb[0].mxu0
        %v3036 = vadd.f32 %v1091, %v3035
        %v3037 = vpop.f32.mrb[0].mxu0
        %v3038 = vadd.f32 %v1095, %v3037
        %v3039 = vpop.f32.mrb[0].mxu0
        %v3040 = vadd.f32 %v1091, %v3039
        %v3041 = vpop.f32.mrb[0].mxu0
        %v3042 = vadd.f32 %v1095, %v3041
        %3043 = vmatprep.mubr.bf16.mxu0 %v848
        %3044 = vmatmul.mubr.bf16.gmra.mrb[0].mxu0 %v847
        %v3045 = vpop.f32.mrb[0].mxu0
        %v3046 = vadd.f32 %v1091, %v3045
        %v3047 = vpop.f32.mrb[0].mxu0
        %v3048 = vadd.f32 %v1095, %v3047
        %v3049 = vpop.f32.mrb[0].mxu0
        %v3050 = vadd.f32 %v1091, %v3049
        %v3051 = vpop.f32.mrb[0].mxu0
        %v3052 = vadd.f32 %v1095, %v3051
        %3053 = vmatprep.mubr.bf16.mxu0 %v855
        %3054 = vmatmul.mubr.bf16.gmra.mrb[0].mxu0 %v854
        %v3055 = vpop.f32.mrb[0].mxu0
        %v3056 = vadd.f32 %v1091, %v3055
        %v3057 = vpop.f32.mrb[0].mxu0
        %v3058 = vadd.f32 %v1095, %v3057
        %v3059 = vpop.f32.mrb[0].mxu0
        %v3060 = vadd.f32 %v1091, %v3059
        %v3061 = vpop.f32.mrb[0].mxu0
        %v3062 = vadd.f32 %v1095, %v3061
        %3063 = vmatprep.mubr.bf16.mxu0 %v862
        %3064 = vmatmul.mubr.bf16.gmra.mrb[0].mxu0 %v861
        %v3065 = vpop.f32.mrb[0].mxu0
        %v3066 = vadd.f32 %v1091, %v3065
        %v3067 = vpop.f32.mrb[0].mxu0
        %v3068 = vadd.f32 %v1095, %v3067
        %v3069 = vpop.f32.mrb[0].mxu0
        %v3070 = vadd.f32 %v1091, %v3069
        %v3071 = vpop.f32.mrb[0].mxu0
        %v3072 = vadd.f32 %v1095, %v3071
        %3073 = vmatprep.mubr.bf16.mxu0 %v869
        %3074 = vmatmul.mubr.bf16.gmra.mrb[0].mxu0 %v868
        %v3075 = vpop.f32.mrb[0].mxu0
        %v3076 = vadd.f32 %v1091, %v3075
        %v3077 = vpop.f32.mrb[0].mxu0
        %v3078 = vadd.f32 %v1095, %v3077
        %v3079 = vpop.f32.mrb[0].mxu0
        %v3080 = vadd.f32 %v1091, %v3079
        %v3081 = vpop.f32.mrb[0].mxu0
        %v3082 = vadd.f32 %v1095, %v3081
        %3083 = vmatprep.mubr.bf16.mxu0 %v876
        %3084 = vmatmul.mubr.bf16.gmra.mrb[0].mxu0 %v875
        %v3085 = vpop.f32.mrb[0].mxu0
        %v3086 = vadd.f32 %v1091, %v3085
        %v3087 = vpop.f32.mrb[0].mxu0
        %v3088 = vadd.f32 %v1095, %v3087
        %v3089 = vpop.f32.mrb[0].mxu0
        %v3090 = vadd.f32 %v1091, %v3089
        %v3091 = vpop.f32.mrb[0].mxu0
        %v3092 = vadd.f32 %v1095, %v3091
        %3093 = vdwg.mxu0
        %3094 = vmatprep.subr.bf16.mxu0 %v1755
        %3095 = vmatpush1.bf16.msra.mxu0 %v1754
        %3096 = vmatprep.subr.bf16.mxu0 %v1759
        %3097 = vmatpush1.bf16.msra.mxu0 %v1758
        %3098 = vmatprep.subr.bf16.mxu0 %v1763
        %3099 = vmatpush1.bf16.msra.mxu0 %v1762
        %3100 = vmatprep.subr.bf16.mxu0 %v1767
        %3101 = vmatpush1.bf16.msra.mxu0 %v1766
        %3102 = vmatprep.subr.bf16.mxu0 %v1771
        %3103 = vmatpush1.bf16.msra.mxu0 %v1770
        %3104 = vmatprep.subr.bf16.mxu0 %v1775
        %3105 = vmatpush1.bf16.msra.mxu0 %v1774
        %3106 = vmatprep.subr.bf16.mxu0 %v1779
        %3107 = vmatpush1.bf16.msra.mxu0 %v1778
        %3108 = vmatprep.subr.bf16.mxu0 %v1783
        %3109 = vmatpush1.bf16.msra.mxu0 %v1782
        %3110 = vmatprep.subr.bf16.mxu0 %v1787
        %3111 = vmatpush1.bf16.msra.mxu0 %v1786
        %3112 = vmatprep.subr.bf16.mxu0 %v1791
        %3113 = vmatpush1.bf16.msra.mxu0 %v1790
        %3114 = vmatprep.subr.bf16.mxu0 %v1795
        %3115 = vmatpush1.bf16.msra.mxu0 %v1794
        %3116 = vmatprep.subr.bf16.mxu0 %v1799
        %3117 = vmatpush1.bf16.msra.mxu0 %v1798
        %3118 = vmatprep.subr.bf16.mxu0 %v1803
        %3119 = vmatpush1.bf16.msra.mxu0 %v1802
        %3120 = vmatprep.subr.bf16.mxu0 %v1807
        %3121 = vmatpush1.bf16.msra.mxu0 %v1806
        %3122 = vmatprep.subr.bf16.mxu0 %v1811
        %3123 = vmatpush1.bf16.msra.mxu0 %v1810
        %3124 = vmatprep.subr.bf16.mxu0 %v1815
        %3125 = vmatpush1.bf16.msra.mxu0 %v1814
        %3126 = vmatprep.mubr.bf16.mxu0 %v773
        %3127 = vmatmul.mubr.bf16.gmra.mrb[0].mxu0 %v772
        %v3128 = vpop.f32.mrb[0].mxu0
        %v3129 = vadd.f32 %v2936, %v3128
        %v3130 = vpop.f32.mrb[0].mxu0
        %v3131 = vadd.f32 %v2938, %v3130
        %v3132 = vpop.f32.mrb[0].mxu0
        %v3133 = vadd.f32 %v2940, %v3132
        %v3134 = vpop.f32.mrb[0].mxu0
        %v3135 = vadd.f32 %v2942, %v3134
        %3136 = vmatprep.mubr.bf16.mxu0 %v780
        %3137 = vmatmul.mubr.bf16.gmra.mrb[0].mxu0 %v779
        %v3138 = vpop.f32.mrb[0].mxu0
        %v3139 = vadd.f32 %v2946, %v3138
        %v3140 = vpop.f32.mrb[0].mxu0
        %v3141 = vadd.f32 %v2948, %v3140
        %v3142 = vpop.f32.mrb[0].mxu0
        %v3143 = vadd.f32 %v2950, %v3142
        %v3144 = vpop.f32.mrb[0].mxu0
        %v3145 = vadd.f32 %v2952, %v3144
        %3146 = vmatprep.mubr.bf16.mxu0 %v787
        %3147 = vmatmul.mubr.bf16.gmra.mrb[0].mxu0 %v786
        %v3148 = vpop.f32.mrb[0].mxu0
        %v3149 = vadd.f32 %v2956, %v3148
        %v3150 = vpop.f32.mrb[0].mxu0
        %v3151 = vadd.f32 %v2958, %v3150
        %v3152 = vpop.f32.mrb[0].mxu0
        %v3153 = vadd.f32 %v2960, %v3152
        %v3154 = vpop.f32.mrb[0].mxu0
        %v3155 = vadd.f32 %v2962, %v3154
        %3156 = vmatprep.mubr.bf16.mxu0 %v794
        %3157 = vmatmul.mubr.bf16.gmra.mrb[0].mxu0 %v793
        %v3158 = vpop.f32.mrb[0].mxu0
        %v3159 = vadd.f32 %v2966, %v3158
        %v3160 = vpop.f32.mrb[0].mxu0
        %v3161 = vadd.f32 %v2968, %v3160
        %v3162 = vpop.f32.mrb[0].mxu0
        %v3163 = vadd.f32 %v2970, %v3162
        %v3164 = vpop.f32.mrb[0].mxu0
        %v3165 = vadd.f32 %v2972, %v3164
        %3166 = vmatprep.mubr.bf16.mxu0 %v801
        %3167 = vmatmul.mubr.bf16.gmra.mrb[0].mxu0 %v800
        %v3168 = vpop.f32.mrb[0].mxu0
        %v3169 = vadd.f32 %v2976, %v3168
        %v3170 = vpop.f32.mrb[0].mxu0
        %v3171 = vadd.f32 %v2978, %v3170
        %v3172 = vpop.f32.mrb[0].mxu0
        %v3173 = vadd.f32 %v2980, %v3172
        %v3174 = vpop.f32.mrb[0].mxu0
        %v3175 = vadd.f32 %v2982, %v3174
        %3176 = vmatprep.mubr.bf16.mxu0 %v808
        %3177 = vmatmul.mubr.bf16.gmra.mrb[0].mxu0 %v807
        %v3178 = vpop.f32.mrb[0].mxu0
        %v3179 = vadd.f32 %v2986, %v3178
        %v3180 = vpop.f32.mrb[0].mxu0
        %v3181 = vadd.f32 %v2988, %v3180
        %v3182 = vpop.f32.mrb[0].mxu0
        %v3183 = vadd.f32 %v2990, %v3182
        %v3184 = vpop.f32.mrb[0].mxu0
        %v3185 = vadd.f32 %v2992, %v3184
        %3186 = vmatprep.mubr.bf16.mxu0 %v815
        %3187 = vmatmul.mubr.bf16.gmra.mrb[0].mxu0 %v814
        %v3188 = vpop.f32.mrb[0].mxu0
        %v3189 = vadd.f32 %v2996, %v3188
        %v3190 = vpop.f32.mrb[0].mxu0
        %v3191 = vadd.f32 %v2998, %v3190
        %v3192 = vpop.f32.mrb[0].mxu0
        %v3193 = vadd.f32 %v3000, %v3192
        %v3194 = vpop.f32.mrb[0].mxu0
        %v3195 = vadd.f32 %v3002, %v3194
        %3196 = vmatprep.mubr.bf16.mxu0 %v822
        %3197 = vmatmul.mubr.bf16.gmra.mrb[0].mxu0 %v821
        %v3198 = vpop.f32.mrb[0].mxu0
        %v3199 = vadd.f32 %v3006, %v3198
        %v3200 = vpop.f32.mrb[0].mxu0
        %v3201 = vadd.f32 %v3008, %v3200
        %v3202 = vpop.f32.mrb[0].mxu0
        %v3203 = vadd.f32 %v3010, %v3202
        %v3204 = vpop.f32.mrb[0].mxu0
        %v3205 = vadd.f32 %v3012, %v3204
        %3206 = vmatprep.mubr.bf16.mxu0 %v829
        %3207 = vmatmul.mubr.bf16.gmra.mrb[0].mxu0 %v828
        %v3208 = vpop.f32.mrb[0].mxu0
        %v3209 = vadd.f32 %v3016, %v3208
        %v3210 = vpop.f32.mrb[0].mxu0
        %v3211 = vadd.f32 %v3018, %v3210
        %v3212 = vpop.f32.mrb[0].mxu0
        %v3213 = vadd.f32 %v3020, %v3212
        %v3214 = vpop.f32.mrb[0].mxu0
        %v3215 = vadd.f32 %v3022, %v3214
        %3216 = vmatprep.mubr.bf16.mxu0 %v836
        %3217 = vmatmul.mubr.bf16.gmra.mrb[0].mxu0 %v835
        %v3218 = vpop.f32.mrb[0].mxu0
        %v3219 = vadd.f32 %v3026, %v3218
        %v3220 = vpop.f32.mrb[0].mxu0
        %v3221 = vadd.f32 %v3028, %v3220
        %v3222 = vpop.f32.mrb[0].mxu0
        %v3223 = vadd.f32 %v3030, %v3222
        %v3224 = vpop.f32.mrb[0].mxu0
        %v3225 = vadd.f32 %v3032, %v3224
        %3226 = vmatprep.mubr.bf16.mxu0 %v843
        %3227 = vmatmul.mubr.bf16.gmra.mrb[0].mxu0 %v842
        %v3228 = vpop.f32.mrb[0].mxu0
        %v3229 = vadd.f32 %v3036, %v3228
        %v3230 = vpop.f32.mrb[0].mxu0
        %v3231 = vadd.f32 %v3038, %v3230
        %v3232 = vpop.f32.mrb[0].mxu0
        %v3233 = vadd.f32 %v3040, %v3232
        %v3234 = vpop.f32.mrb[0].mxu0
        %v3235 = vadd.f32 %v3042, %v3234
        %3236 = vmatprep.mubr.bf16.mxu0 %v850
        %3237 = vmatmul.mubr.bf16.gmra.mrb[0].mxu0 %v849
        %v3238 = vpop.f32.mrb[0].mxu0
        %v3239 = vadd.f32 %v3046, %v3238
        %v3240 = vpop.f32.mrb[0].mxu0
        %v3241 = vadd.f32 %v3048, %v3240
        %v3242 = vpop.f32.mrb[0].mxu0
        %v3243 = vadd.f32 %v3050, %v3242
        %v3244 = vpop.f32.mrb[0].mxu0
        %v3245 = vadd.f32 %v3052, %v3244
        %3246 = vmatprep.mubr.bf16.mxu0 %v857
        %3247 = vmatmul.mubr.bf16.gmra.mrb[0].mxu0 %v856
        %v3248 = vpop.f32.mrb[0].mxu0
        %v3249 = vadd.f32 %v3056, %v3248
        %v3250 = vpop.f32.mrb[0].mxu0
        %v3251 = vadd.f32 %v3058, %v3250
        %v3252 = vpop.f32.mrb[0].mxu0
        %v3253 = vadd.f32 %v3060, %v3252
        %v3254 = vpop.f32.mrb[0].mxu0
        %v3255 = vadd.f32 %v3062, %v3254
        %3256 = vmatprep.mubr.bf16.mxu0 %v864
        %3257 = vmatmul.mubr.bf16.gmra.mrb[0].mxu0 %v863
        %v3258 = vpop.f32.mrb[0].mxu0
        %v3259 = vadd.f32 %v3066, %v3258
        %v3260 = vpop.f32.mrb[0].mxu0
        %v3261 = vadd.f32 %v3068, %v3260
        %v3262 = vpop.f32.mrb[0].mxu0
        %v3263 = vadd.f32 %v3070, %v3262
        %v3264 = vpop.f32.mrb[0].mxu0
        %v3265 = vadd.f32 %v3072, %v3264
        %3266 = vmatprep.mubr.bf16.mxu0 %v871
        %3267 = vmatmul.mubr.bf16.gmra.mrb[0].mxu0 %v870
        %v3268 = vpop.f32.mrb[0].mxu0
        %v3269 = vadd.f32 %v3076, %v3268
        %v3270 = vpop.f32.mrb[0].mxu0
        %v3271 = vadd.f32 %v3078, %v3270
        %v3272 = vpop.f32.mrb[0].mxu0
        %v3273 = vadd.f32 %v3080, %v3272
        %v3274 = vpop.f32.mrb[0].mxu0
        %v3275 = vadd.f32 %v3082, %v3274
        %3276 = vmatprep.mubr.bf16.mxu0 %v878
        %3277 = vmatmul.mubr.bf16.gmra.mrb[0].mxu0 %v877
        %v3278 = vpop.f32.mrb[0].mxu0
        %v3279 = vadd.f32 %v3086, %v3278
        %v3280 = vpop.f32.mrb[0].mxu0
        %v3281 = vadd.f32 %v3088, %v3280
        %v3282 = vpop.f32.mrb[0].mxu0
        %v3283 = vadd.f32 %v3090, %v3282
        %v3284 = vpop.f32.mrb[0].mxu0
        %v3285 = vadd.f32 %v3092, %v3284
        %3286 = vdwg.mxu0
        %3287 = vmatprep.subr.bf16.mxu0 %v1819
        %3288 = vmatpush1.bf16.msra.mxu0 %v1818
        %3289 = vmatprep.subr.bf16.mxu0 %v1823
        %3290 = vmatpush1.bf16.msra.mxu0 %v1822
        %3291 = vmatprep.subr.bf16.mxu0 %v1827
        %3292 = vmatpush1.bf16.msra.mxu0 %v1826
        %3293 = vmatprep.subr.bf16.mxu0 %v1831
        %3294 = vmatpush1.bf16.msra.mxu0 %v1830
        %3295 = vmatprep.subr.bf16.mxu0 %v1835
        %3296 = vmatpush1.bf16.msra.mxu0 %v1834
        %3297 = vmatprep.subr.bf16.mxu0 %v1839
        %3298 = vmatpush1.bf16.msra.mxu0 %v1838
        %3299 = vmatprep.subr.bf16.mxu0 %v1843
        %3300 = vmatpush1.bf16.msra.mxu0 %v1842
        %3301 = vmatprep.subr.bf16.mxu0 %v1847
        %3302 = vmatpush1.bf16.msra.mxu0 %v1846
        %3303 = vmatprep.subr.bf16.mxu0 %v1851
        %3304 = vmatpush1.bf16.msra.mxu0 %v1850
        %3305 = vmatprep.subr.bf16.mxu0 %v1855
        %3306 = vmatpush1.bf16.msra.mxu0 %v1854
        %3307 = vmatprep.subr.bf16.mxu0 %v1859
        %3308 = vmatpush1.bf16.msra.mxu0 %v1858
        %3309 = vmatprep.subr.bf16.mxu0 %v1863
        %3310 = vmatpush1.bf16.msra.mxu0 %v1862
        %3311 = vmatprep.subr.bf16.mxu0 %v1867
        %3312 = vmatpush1.bf16.msra.mxu0 %v1866
        %3313 = vmatprep.subr.bf16.mxu0 %v1871
        %3314 = vmatpush1.bf16.msra.mxu0 %v1870
        %3315 = vmatprep.subr.bf16.mxu0 %v1875
        %3316 = vmatpush1.bf16.msra.mxu0 %v1874
        %3317 = vmatprep.subr.bf16.mxu0 %v1879
        %3318 = vmatpush1.bf16.msra.mxu0 %v1878
        %3319 = vmatprep.mubr.bf16.mxu0 %v775
        %3320 = vmatmul.mubr.bf16.gmra.mrb[0].mxu0 %v774
        %v3321 = vpop.f32.mrb[0].mxu0
        %v3322 = vadd.f32 %v3129, %v3321
        %v3323 = vpop.f32.mrb[0].mxu0
        %v3324 = vadd.f32 %v3131, %v3323
        %v3325 = vpop.f32.mrb[0].mxu0
        %v3326 = vadd.f32 %v3133, %v3325
        %v3327 = vpop.f32.mrb[0].mxu0
        %v3328 = vadd.f32 %v3135, %v3327
        %3329 = vmatprep.mubr.bf16.mxu0 %v782
        %3330 = vmatmul.mubr.bf16.gmra.mrb[0].mxu0 %v781
        %v3331 = vpop.f32.mrb[0].mxu0
        %v3332 = vadd.f32 %v3139, %v3331
        %v3333 = vpop.f32.mrb[0].mxu0
        %v3334 = vadd.f32 %v3141, %v3333
        %v3335 = vpop.f32.mrb[0].mxu0
        %v3336 = vadd.f32 %v3143, %v3335
        %v3337 = vpop.f32.mrb[0].mxu0
        %v3338 = vadd.f32 %v3145, %v3337
        %3339 = vmatprep.mubr.bf16.mxu0 %v789
        %3340 = vmatmul.mubr.bf16.gmra.mrb[0].mxu0 %v788
        %v3341 = vpop.f32.mrb[0].mxu0
        %v3342 = vadd.f32 %v3149, %v3341
        %v3343 = vpop.f32.mrb[0].mxu0
        %v3344 = vadd.f32 %v3151, %v3343
        %v3345 = vpop.f32.mrb[0].mxu0
        %v3346 = vadd.f32 %v3153, %v3345
        %v3347 = vpop.f32.mrb[0].mxu0
        %v3348 = vadd.f32 %v3155, %v3347
        %3349 = vmatprep.mubr.bf16.mxu0 %v796
        %3350 = vmatmul.mubr.bf16.gmra.mrb[0].mxu0 %v795
        %v3351 = vpop.f32.mrb[0].mxu0
        %v3352 = vadd.f32 %v3159, %v3351
        %v3353 = vpop.f32.mrb[0].mxu0
        %v3354 = vadd.f32 %v3161, %v3353
        %v3355 = vpop.f32.mrb[0].mxu0
        %v3356 = vadd.f32 %v3163, %v3355
        %v3357 = vpop.f32.mrb[0].mxu0
        %v3358 = vadd.f32 %v3165, %v3357
        %3359 = vmatprep.mubr.bf16.mxu0 %v803
        %3360 = vmatmul.mubr.bf16.gmra.mrb[0].mxu0 %v802
        %v3361 = vpop.f32.mrb[0].mxu0
        %v3362 = vadd.f32 %v3169, %v3361
        %v3363 = vpop.f32.mrb[0].mxu0
        %v3364 = vadd.f32 %v3171, %v3363
        %v3365 = vpop.f32.mrb[0].mxu0
        %v3366 = vadd.f32 %v3173, %v3365
        %v3367 = vpop.f32.mrb[0].mxu0
        %v3368 = vadd.f32 %v3175, %v3367
        %3369 = vmatprep.mubr.bf16.mxu0 %v810
        %3370 = vmatmul.mubr.bf16.gmra.mrb[0].mxu0 %v809
        %v3371 = vpop.f32.mrb[0].mxu0
        %v3372 = vadd.f32 %v3179, %v3371
        %v3373 = vpop.f32.mrb[0].mxu0
        %v3374 = vadd.f32 %v3181, %v3373
        %v3375 = vpop.f32.mrb[0].mxu0
        %v3376 = vadd.f32 %v3183, %v3375
        %v3377 = vpop.f32.mrb[0].mxu0
        %v3378 = vadd.f32 %v3185, %v3377
        %3379 = vmatprep.mubr.bf16.mxu0 %v817
        %3380 = vmatmul.mubr.bf16.gmra.mrb[0].mxu0 %v816
        %v3381 = vpop.f32.mrb[0].mxu0
        %v3382 = vadd.f32 %v3189, %v3381
        %v3383 = vpop.f32.mrb[0].mxu0
        %v3384 = vadd.f32 %v3191, %v3383
        %v3385 = vpop.f32.mrb[0].mxu0
        %v3386 = vadd.f32 %v3193, %v3385
        %v3387 = vpop.f32.mrb[0].mxu0
        %v3388 = vadd.f32 %v3195, %v3387
        %3389 = vmatprep.mubr.bf16.mxu0 %v824
        %3390 = vmatmul.mubr.bf16.gmra.mrb[0].mxu0 %v823
        %v3391 = vpop.f32.mrb[0].mxu0
        %v3392 = vadd.f32 %v3199, %v3391
        %v3393 = vpop.f32.mrb[0].mxu0
        %v3394 = vadd.f32 %v3201, %v3393
        %v3395 = vpop.f32.mrb[0].mxu0
        %v3396 = vadd.f32 %v3203, %v3395
        %v3397 = vpop.f32.mrb[0].mxu0
        %v3398 = vadd.f32 %v3205, %v3397
        %3399 = vmatprep.mubr.bf16.mxu0 %v831
        %3400 = vmatmul.mubr.bf16.gmra.mrb[0].mxu0 %v830
        %v3401 = vpop.f32.mrb[0].mxu0
        %v3402 = vadd.f32 %v3209, %v3401
        %v3403 = vpop.f32.mrb[0].mxu0
        %v3404 = vadd.f32 %v3211, %v3403
        %v3405 = vpop.f32.mrb[0].mxu0
        %v3406 = vadd.f32 %v3213, %v3405
        %v3407 = vpop.f32.mrb[0].mxu0
        %v3408 = vadd.f32 %v3215, %v3407
        %3409 = vmatprep.mubr.bf16.mxu0 %v838
        %3410 = vmatmul.mubr.bf16.gmra.mrb[0].mxu0 %v837
        %v3411 = vpop.f32.mrb[0].mxu0
        %v3412 = vadd.f32 %v3219, %v3411
        %v3413 = vpop.f32.mrb[0].mxu0
        %v3414 = vadd.f32 %v3221, %v3413
        %v3415 = vpop.f32.mrb[0].mxu0
        %v3416 = vadd.f32 %v3223, %v3415
        %v3417 = vpop.f32.mrb[0].mxu0
        %v3418 = vadd.f32 %v3225, %v3417
        %3419 = vmatprep.mubr.bf16.mxu0 %v845
        %3420 = vmatmul.mubr.bf16.gmra.mrb[0].mxu0 %v844
        %v3421 = vpop.f32.mrb[0].mxu0
        %v3422 = vadd.f32 %v3229, %v3421
        %v3423 = vpop.f32.mrb[0].mxu0
        %v3424 = vadd.f32 %v3231, %v3423
        %v3425 = vpop.f32.mrb[0].mxu0
        %v3426 = vadd.f32 %v3233, %v3425
        %v3427 = vpop.f32.mrb[0].mxu0
        %v3428 = vadd.f32 %v3235, %v3427
        %3429 = vmatprep.mubr.bf16.mxu0 %v852
        %3430 = vmatmul.mubr.bf16.gmra.mrb[0].mxu0 %v851
        %v3431 = vpop.f32.mrb[0].mxu0
        %v3432 = vadd.f32 %v3239, %v3431
        %v3433 = vpop.f32.mrb[0].mxu0
        %v3434 = vadd.f32 %v3241, %v3433
        %v3435 = vpop.f32.mrb[0].mxu0
        %v3436 = vadd.f32 %v3243, %v3435
        %v3437 = vpop.f32.mrb[0].mxu0
        %v3438 = vadd.f32 %v3245, %v3437
        %3439 = vmatprep.mubr.bf16.mxu0 %v859
        %3440 = vmatmul.mubr.bf16.gmra.mrb[0].mxu0 %v858
        %v3441 = vpop.f32.mrb[0].mxu0
        %v3442 = vadd.f32 %v3249, %v3441
        %v3443 = vpop.f32.mrb[0].mxu0
        %v3444 = vadd.f32 %v3251, %v3443
        %v3445 = vpop.f32.mrb[0].mxu0
        %v3446 = vadd.f32 %v3253, %v3445
        %v3447 = vpop.f32.mrb[0].mxu0
        %v3448 = vadd.f32 %v3255, %v3447
        %3449 = vmatprep.mubr.bf16.mxu0 %v866
        %3450 = vmatmul.mubr.bf16.gmra.mrb[0].mxu0 %v865
        %v3451 = vpop.f32.mrb[0].mxu0
        %v3452 = vadd.f32 %v3259, %v3451
        %v3453 = vpop.f32.mrb[0].mxu0
        %v3454 = vadd.f32 %v3261, %v3453
        %v3455 = vpop.f32.mrb[0].mxu0
        %v3456 = vadd.f32 %v3263, %v3455
        %v3457 = vpop.f32.mrb[0].mxu0
        %v3458 = vadd.f32 %v3265, %v3457
        %3459 = vmatprep.mubr.bf16.mxu0 %v873
        %3460 = vmatmul.mubr.bf16.gmra.mrb[0].mxu0 %v872
        %v3461 = vpop.f32.mrb[0].mxu0
        %v3462 = vadd.f32 %v3269, %v3461
        %v3463 = vpop.f32.mrb[0].mxu0
        %v3464 = vadd.f32 %v3271, %v3463
        %v3465 = vpop.f32.mrb[0].mxu0
        %v3466 = vadd.f32 %v3273, %v3465
        %v3467 = vpop.f32.mrb[0].mxu0
        %v3468 = vadd.f32 %v3275, %v3467
        %3469 = vmatprep.mubr.bf16.mxu0 %v880
        %3470 = vmatmul.mubr.bf16.gmra.mrb[0].mxu0 %v879
        %v3471 = vpop.f32.mrb[0].mxu0
        %v3472 = vadd.f32 %v3279, %v3471
        %v3473 = vpop.f32.mrb[0].mxu0
        %v3474 = vadd.f32 %v3281, %v3473
        %v3475 = vpop.f32.mrb[0].mxu0
        %v3476 = vadd.f32 %v3283, %v3475
        %v3477 = vpop.f32.mrb[0].mxu0
        %v3478 = vadd.f32 %v3285, %v3477
        %3479 = vdwg.mxu0
        %3480 = vmatprep.subr.bf16.mxu0 %v1883
        %3481 = vmatpush1.bf16.msra.mxu0 %v1882
        %3482 = vmatprep.subr.bf16.mxu0 0
        %3483 = vmatpush1.bf16.msra.mxu0 0
        %3484 = vmatprep.subr.bf16.mxu0 0
        %3485 = vmatpush1.bf16.msra.mxu0 0
        %3486 = vmatprep.subr.bf16.mxu0 0
        %3487 = vmatpush1.bf16.msra.mxu0 0
        %3488 = vmatprep.subr.bf16.mxu0 0
        %3489 = vmatpush1.bf16.msra.mxu0 0
        %3490 = vmatprep.subr.bf16.mxu0 0
        %3491 = vmatpush1.bf16.msra.mxu0 0
        %3492 = vmatprep.subr.bf16.mxu0 0
        %3493 = vmatpush1.bf16.msra.mxu0 0
        %3494 = vmatprep.subr.bf16.mxu0 0
        %3495 = vmatpush1.bf16.msra.mxu0 0
        %3496 = vmatprep.subr.bf16.mxu0 0
        %3497 = vmatpush1.bf16.msra.mxu0 0
        %3498 = vmatprep.subr.bf16.mxu0 0
        %3499 = vmatpush1.bf16.msra.mxu0 0
        %3500 = vmatprep.subr.bf16.mxu0 0
        %3501 = vmatpush1.bf16.msra.mxu0 0
        %3502 = vmatprep.subr.bf16.mxu0 0
        %3503 = vmatpush1.bf16.msra.mxu0 0
        %3504 = vmatprep.subr.bf16.mxu0 0
        %3505 = vmatpush1.bf16.msra.mxu0 0
        %3506 = vmatprep.subr.bf16.mxu0 0
        %3507 = vmatpush1.bf16.msra.mxu0 0
        %3508 = vmatprep.subr.bf16.mxu0 0
        %3509 = vmatpush1.bf16.msra.mxu0 0
        %3510 = vmatprep.subr.bf16.mxu0 0
        %3511 = vmatpush1.bf16.msra.mxu0 0
        %3512 = vmatprep.mubr.bf16.mxu0 0
        %3513 = vmatmul.mubr.bf16.gmra.mrb[0].mxu0 %v2082
        %v3514 = vpop.f32.mrb[0].mxu0
        %v3515 = vadd.f32 %v3322, %v3514
        %v3516 = vpop.f32.mrb[0].mxu0
        %v3517 = vadd.f32 %v3324, %v3516
        %v3518 = vpop.f32.mrb[0].mxu0
        %v3519 = vadd.f32 %v3326, %v3518
        %v3520 = vpop.f32.mrb[0].mxu0
        %v3521 = vadd.f32 %v3328, %v3520
        %3522 = vmatprep.mubr.bf16.mxu0 0
        %3523 = vmatmul.mubr.bf16.gmra.mrb[0].mxu0 %v2085
        %v3524 = vpop.f32.mrb[0].mxu0
        %v3525 = vadd.f32 %v3332, %v3524
        %v3526 = vpop.f32.mrb[0].mxu0
        %v3527 = vadd.f32 %v3334, %v3526
        %v3528 = vpop.f32.mrb[0].mxu0
        %v3529 = vadd.f32 %v3336, %v3528
        %v3530 = vpop.f32.mrb[0].mxu0
        %v3531 = vadd.f32 %v3338, %v3530
        %3532 = vmatprep.mubr.bf16.mxu0 0
        %3533 = vmatmul.mubr.bf16.gmra.mrb[0].mxu0 %v2088
        %v3534 = vpop.f32.mrb[0].mxu0
        %v3535 = vadd.f32 %v3342, %v3534
        %v3536 = vpop.f32.mrb[0].mxu0
        %v3537 = vadd.f32 %v3344, %v3536
        %v3538 = vpop.f32.mrb[0].mxu0
        %v3539 = vadd.f32 %v3346, %v3538
        %v3540 = vpop.f32.mrb[0].mxu0
        %v3541 = vadd.f32 %v3348, %v3540
        %3542 = vmatprep.mubr.bf16.mxu0 0
        %3543 = vmatmul.mubr.bf16.gmra.mrb[0].mxu0 %v2091
        %v3544 = vpop.f32.mrb[0].mxu0
        %v3545 = vadd.f32 %v3352, %v3544
        %v3546 = vpop.f32.mrb[0].mxu0
        %v3547 = vadd.f32 %v3354, %v3546
        %v3548 = vpop.f32.mrb[0].mxu0
        %v3549 = vadd.f32 %v3356, %v3548
        %v3550 = vpop.f32.mrb[0].mxu0
        %v3551 = vadd.f32 %v3358, %v3550
        %3552 = vmatprep.mubr.bf16.mxu0 0
        %3553 = vmatmul.mubr.bf16.gmra.mrb[0].mxu0 %v2094
        %v3554 = vpop.f32.mrb[0].mxu0
        %v3555 = vadd.f32 %v3362, %v3554
        %v3556 = vpop.f32.mrb[0].mxu0
        %v3557 = vadd.f32 %v3364, %v3556
        %v3558 = vpop.f32.mrb[0].mxu0
        %v3559 = vadd.f32 %v3366, %v3558
        %v3560 = vpop.f32.mrb[0].mxu0
        %v3561 = vadd.f32 %v3368, %v3560
        %3562 = vmatprep.mubr.bf16.mxu0 0
        %3563 = vmatmul.mubr.bf16.gmra.mrb[0].mxu0 %v2097
        %v3564 = vpop.f32.mrb[0].mxu0
        %v3565 = vadd.f32 %v3372, %v3564
        %v3566 = vpop.f32.mrb[0].mxu0
        %v3567 = vadd.f32 %v3374, %v3566
        %v3568 = vpop.f32.mrb[0].mxu0
        %v3569 = vadd.f32 %v3376, %v3568
        %v3570 = vpop.f32.mrb[0].mxu0
        %v3571 = vadd.f32 %v3378, %v3570
        %3572 = vmatprep.mubr.bf16.mxu0 0
        %3573 = vmatmul.mubr.bf16.gmra.mrb[0].mxu0 %v2100
        %v3574 = vpop.f32.mrb[0].mxu0
        %v3575 = vadd.f32 %v3382, %v3574
        %v3576 = vpop.f32.mrb[0].mxu0
        %v3577 = vadd.f32 %v3384, %v3576
        %v3578 = vpop.f32.mrb[0].mxu0
        %v3579 = vadd.f32 %v3386, %v3578
        %v3580 = vpop.f32.mrb[0].mxu0
        %v3581 = vadd.f32 %v3388, %v3580
        %3582 = vmatprep.mubr.bf16.mxu0 0
        %3583 = vmatmul.mubr.bf16.gmra.mrb[0].mxu0 %v2103
        %v3584 = vpop.f32.mrb[0].mxu0
        %v3585 = vadd.f32 %v3392, %v3584
        %v3586 = vpop.f32.mrb[0].mxu0
        %v3587 = vadd.f32 %v3394, %v3586
        %v3588 = vpop.f32.mrb[0].mxu0
        %v3589 = vadd.f32 %v3396, %v3588
        %v3590 = vpop.f32.mrb[0].mxu0
        %v3591 = vadd.f32 %v3398, %v3590
        %3592 = vmatprep.mubr.bf16.mxu0 0
        %3593 = vmatmul.mubr.bf16.gmra.mrb[0].mxu0 %v2106
        %v3594 = vpop.f32.mrb[0].mxu0
        %v3595 = vadd.f32 %v3402, %v3594
        %v3596 = vpop.f32.mrb[0].mxu0
        %v3597 = vadd.f32 %v3404, %v3596
        %v3598 = vpop.f32.mrb[0].mxu0
        %v3599 = vadd.f32 %v3406, %v3598
        %v3600 = vpop.f32.mrb[0].mxu0
        %v3601 = vadd.f32 %v3408, %v3600
        %3602 = vmatprep.mubr.bf16.mxu0 0
        %3603 = vmatmul.mubr.bf16.gmra.mrb[0].mxu0 %v2109
        %v3604 = vpop.f32.mrb[0].mxu0
        %v3605 = vadd.f32 %v3412, %v3604
        %v3606 = vpop.f32.mrb[0].mxu0
        %v3607 = vadd.f32 %v3414, %v3606
        %v3608 = vpop.f32.mrb[0].mxu0
        %v3609 = vadd.f32 %v3416, %v3608
        %v3610 = vpop.f32.mrb[0].mxu0
        %v3611 = vadd.f32 %v3418, %v3610
        %3612 = vmatprep.mubr.bf16.mxu0 0
        %3613 = vmatmul.mubr.bf16.gmra.mrb[0].mxu0 %v2112
        %v3614 = vpop.f32.mrb[0].mxu0
        %v3615 = vadd.f32 %v3422, %v3614
        %v3616 = vpop.f32.mrb[0].mxu0
        %v3617 = vadd.f32 %v3424, %v3616
        %v3618 = vpop.f32.mrb[0].mxu0
        %v3619 = vadd.f32 %v3426, %v3618
        %v3620 = vpop.f32.mrb[0].mxu0
        %v3621 = vadd.f32 %v3428, %v3620
        %3622 = vmatprep.mubr.bf16.mxu0 0
        %3623 = vmatmul.mubr.bf16.gmra.mrb[0].mxu0 %v2115
        %v3624 = vpop.f32.mrb[0].mxu0
        %v3625 = vadd.f32 %v3432, %v3624
        %v3626 = vpop.f32.mrb[0].mxu0
        %v3627 = vadd.f32 %v3434, %v3626
        %v3628 = vpop.f32.mrb[0].mxu0
        %v3629 = vadd.f32 %v3436, %v3628
        %v3630 = vpop.f32.mrb[0].mxu0
        %v3631 = vadd.f32 %v3438, %v3630
        %3632 = vmatprep.mubr.bf16.mxu0 0
        %3633 = vmatmul.mubr.bf16.gmra.mrb[0].mxu0 %v2118
        %v3634 = vpop.f32.mrb[0].mxu0
        %v3635 = vadd.f32 %v3442, %v3634
        %v3636 = vpop.f32.mrb[0].mxu0
        %v3637 = vadd.f32 %v3444, %v3636
        %v3638 = vpop.f32.mrb[0].mxu0
        %v3639 = vadd.f32 %v3446, %v3638
        %v3640 = vpop.f32.mrb[0].mxu0
        %v3641 = vadd.f32 %v3448, %v3640
        %3642 = vmatprep.mubr.bf16.mxu0 0
        %3643 = vmatmul.mubr.bf16.gmra.mrb[0].mxu0 %v2121
        %v3644 = vpop.f32.mrb[0].mxu0
        %v3645 = vadd.f32 %v3452, %v3644
        %v3646 = vpop.f32.mrb[0].mxu0
        %v3647 = vadd.f32 %v3454, %v3646
        %v3648 = vpop.f32.mrb[0].mxu0
        %v3649 = vadd.f32 %v3456, %v3648
        %v3650 = vpop.f32.mrb[0].mxu0
        %v3651 = vadd.f32 %v3458, %v3650
        %3652 = vmatprep.mubr.bf16.mxu0 0
        %3653 = vmatmul.mubr.bf16.gmra.mrb[0].mxu0 %v2124
        %v3654 = vpop.f32.mrb[0].mxu0
        %v3655 = vadd.f32 %v3462, %v3654
        %v3656 = vpop.f32.mrb[0].mxu0
        %v3657 = vadd.f32 %v3464, %v3656
        %v3658 = vpop.f32.mrb[0].mxu0
        %v3659 = vadd.f32 %v3466, %v3658
        %v3660 = vpop.f32.mrb[0].mxu0
        %v3661 = vadd.f32 %v3468, %v3660
        %3662 = vmatprep.mubr.bf16.mxu0 0
        %3663 = vmatmul.mubr.bf16.gmra.mrb[0].mxu0 %v2127
        %v3664 = vpop.f32.mrb[0].mxu0
        %v3665 = vadd.f32 %v3472, %v3664
        %v3666 = vpop.f32.mrb[0].mxu0
        %v3667 = vadd.f32 %v3474, %v3666
        %v3668 = vpop.f32.mrb[0].mxu0
        %v3669 = vadd.f32 %v3476, %v3668
        %v3670 = vpop.f32.mrb[0].mxu0
        %v3671 = vadd.f32 %v3478, %v3670
        %3672 = vdwg.mxu0
        %v3673 = vmax.f32 %v2743, 0.0
        %v3674 = vmax.f32 %v2745, 0.0
        %v3675 = vmax.f32 %v3515, 0.0
        %v3676 = vmax.f32 %v3517, 0.0
        %v3677 = vmax.f32 %v2747, 0.0
        %v3678 = vmax.f32 %v2749, 0.0
        %v3679 = vmax.f32 %v3519, 0.0
        %v3680 = vmax.f32 %v3521, 0.0
        %v3681 = vmax.f32 %v2753, 0.0
        %v3682 = vmax.f32 %v2755, 0.0
        %v3683 = vmax.f32 %v3525, 0.0
        %v3684 = vmax.f32 %v3527, 0.0
        %v3685 = vmax.f32 %v2757, 0.0
        %v3686 = vmax.f32 %v2759, 0.0
        %v3687 = vmax.f32 %v3529, 0.0
        %v3688 = vmax.f32 %v3531, 0.0
        %v3689 = vmax.f32 %v2763, 0.0
        %v3690 = vmax.f32 %v2765, 0.0
        %v3691 = vmax.f32 %v3535, 0.0
        %v3692 = vmax.f32 %v3537, 0.0
        %v3693 = vmax.f32 %v2767, 0.0
        %v3694 = vmax.f32 %v2769, 0.0
        %v3695 = vmax.f32 %v3539, 0.0
        %v3696 = vmax.f32 %v3541, 0.0
        %v3697 = vmax.f32 %v2773, 0.0
        %v3698 = vmax.f32 %v2775, 0.0
        %v3699 = vmax.f32 %v3545, 0.0
        %v3700 = vmax.f32 %v3547, 0.0
        %v3701 = vmax.f32 %v2777, 0.0
        %v3702 = vmax.f32 %v2779, 0.0
        %v3703 = vmax.f32 %v3549, 0.0
        %v3704 = vmax.f32 %v3551, 0.0
        %v3705 = vmax.f32 %v2783, 0.0
        %v3706 = vmax.f32 %v2785, 0.0
        %v3707 = vmax.f32 %v3555, 0.0
        %v3708 = vmax.f32 %v3557, 0.0
        %v3709 = vmax.f32 %v2787, 0.0
        %v3710 = vmax.f32 %v2789, 0.0
        %v3711 = vmax.f32 %v3559, 0.0
        %v3712 = vmax.f32 %v3561, 0.0
        %v3713 = vmax.f32 %v2793, 0.0
        %v3714 = vmax.f32 %v2795, 0.0
        %v3715 = vmax.f32 %v3565, 0.0
        %v3716 = vmax.f32 %v3567, 0.0
        %v3717 = vmax.f32 %v2797, 0.0
        %v3718 = vmax.f32 %v2799, 0.0
        %v3719 = vmax.f32 %v3569, 0.0
        %v3720 = vmax.f32 %v3571, 0.0
        %v3721 = vmax.f32 %v2803, 0.0
        %v3722 = vmax.f32 %v2805, 0.0
        %v3723 = vmax.f32 %v3575, 0.0
        %v3724 = vmax.f32 %v3577, 0.0
        %v3725 = vmax.f32 %v2807, 0.0
        %v3726 = vmax.f32 %v2809, 0.0
        %v3727 = vmax.f32 %v3579, 0.0
        %v3728 = vmax.f32 %v3581, 0.0
        %v3729 = vmax.f32 %v2813, 0.0
        %v3730 = vmax.f32 %v2815, 0.0
        %v3731 = vmax.f32 %v3585, 0.0
        %v3732 = vmax.f32 %v3587, 0.0
        %v3733 = vmax.f32 %v2817, 0.0
        %v3734 = vmax.f32 %v2819, 0.0
        %v3735 = vmax.f32 %v3589, 0.0
        %v3736 = vmax.f32 %v3591, 0.0
        %v3737 = vmax.f32 %v2823, 0.0
        %v3738 = vmax.f32 %v2825, 0.0
        %v3739 = vmax.f32 %v3595, 0.0
        %v3740 = vmax.f32 %v3597, 0.0
        %v3741 = vmax.f32 %v2827, 0.0
        %v3742 = vmax.f32 %v2829, 0.0
        %v3743 = vmax.f32 %v3599, 0.0
        %v3744 = vmax.f32 %v3601, 0.0
        %v3745 = vmax.f32 %v2833, 0.0
        %v3746 = vmax.f32 %v2835, 0.0
        %v3747 = vmax.f32 %v3605, 0.0
        %v3748 = vmax.f32 %v3607, 0.0
        %v3749 = vmax.f32 %v2837, 0.0
        %v3750 = vmax.f32 %v2839, 0.0
        %v3751 = vmax.f32 %v3609, 0.0
        %v3752 = vmax.f32 %v3611, 0.0
        %v3753 = vmax.f32 %v2843, 0.0
        %v3754 = vmax.f32 %v2845, 0.0
        %v3755 = vmax.f32 %v3615, 0.0
        %v3756 = vmax.f32 %v3617, 0.0
        %v3757 = vmax.f32 %v2847, 0.0
        %v3758 = vmax.f32 %v2849, 0.0
        %v3759 = vmax.f32 %v3619, 0.0
        %v3760 = vmax.f32 %v3621, 0.0
        %v3761 = vmax.f32 %v2853, 0.0
        %v3762 = vmax.f32 %v2855, 0.0
        %v3763 = vmax.f32 %v3625, 0.0
        %v3764 = vmax.f32 %v3627, 0.0
        %v3765 = vmax.f32 %v2857, 0.0
        %v3766 = vmax.f32 %v2859, 0.0
        %v3767 = vmax.f32 %v3629, 0.0
        %v3768 = vmax.f32 %v3631, 0.0
        %v3769 = vmax.f32 %v2863, 0.0
        %v3770 = vmax.f32 %v2865, 0.0
        %v3771 = vmax.f32 %v3635, 0.0
        %v3772 = vmax.f32 %v3637, 0.0
        %v3773 = vmax.f32 %v2867, 0.0
        %v3774 = vmax.f32 %v2869, 0.0
        %v3775 = vmax.f32 %v3639, 0.0
        %v3776 = vmax.f32 %v3641, 0.0
        %v3777 = vmax.f32 %v2873, 0.0
        %v3778 = vmax.f32 %v2875, 0.0
        %v3779 = vmax.f32 %v3645, 0.0
        %v3780 = vmax.f32 %v3647, 0.0
        %v3781 = vmax.f32 %v2877, 0.0
        %v3782 = vmax.f32 %v2879, 0.0
        %v3783 = vmax.f32 %v3649, 0.0
        %v3784 = vmax.f32 %v3651, 0.0
        %v3785 = vmax.f32 %v2883, 0.0
        %v3786 = vmax.f32 %v2885, 0.0
        %v3787 = vmax.f32 %v3655, 0.0
        %v3788 = vmax.f32 %v3657, 0.0
        %v3789 = vmax.f32 %v2887, 0.0
        %v3790 = vmax.f32 %v2889, 0.0
        %v3791 = vmax.f32 %v3659, 0.0
        %v3792 = vmax.f32 %v3661, 0.0
        %v3793 = vmax.f32 %v2893, 0.0
        %v3794 = vmax.f32 %v2895, 0.0
        %v3795 = vmax.f32 %v3665, 0.0
        %v3796 = vmax.f32 %v3667, 0.0
        %v3797 = vmax.f32 %v2897, 0.0
        %v3798 = vmax.f32 %v2899, 0.0
        %v3799 = vmax.f32 %v3669, 0.0
        %v3800 = vmax.f32 %v3671, 0.0
        %v3801 = vpack.c.bf16 %v3677, %v3673
        %v3802 = vpack.c.bf16 %v3678, %v3674
        %v3803 = vpack.c.bf16 %v3679, %v3675
        %v3804 = vpack.c.bf16 %v3680, %v3676
        %v3805 = vpack.c.bf16 %v3685, %v3681
        %v3806 = vpack.c.bf16 %v3686, %v3682
        %v3807 = vpack.c.bf16 %v3687, %v3683
        %v3808 = vpack.c.bf16 %v3688, %v3684
        %v3809 = vpack.c.bf16 %v3693, %v3689
        %v3810 = vpack.c.bf16 %v3694, %v3690
        %v3811 = vpack.c.bf16 %v3695, %v3691
        %v3812 = vpack.c.bf16 %v3696, %v3692
        %v3813 = vpack.c.bf16 %v3701, %v3697
        %v3814 = vpack.c.bf16 %v3702, %v3698
        %v3815 = vpack.c.bf16 %v3703, %v3699
        %v3816 = vpack.c.bf16 %v3704, %v3700
        %v3817 = vpack.c.bf16 %v3709, %v3705
        %v3818 = vpack.c.bf16 %v3710, %v3706
        %v3819 = vpack.c.bf16 %v3711, %v3707
        %v3820 = vpack.c.bf16 %v3712, %v3708
        %v3821 = vpack.c.bf16 %v3717, %v3713
        %v3822 = vpack.c.bf16 %v3718, %v3714
        %v3823 = vpack.c.bf16 %v3719, %v3715
        %v3824 = vpack.c.bf16 %v3720, %v3716
        %v3825 = vpack.c.bf16 %v3725, %v3721
        %v3826 = vpack.c.bf16 %v3726, %v3722
        %v3827 = vpack.c.bf16 %v3727, %v3723
        %v3828 = vpack.c.bf16 %v3728, %v3724
        %v3829 = vpack.c.bf16 %v3733, %v3729
        %v3830 = vpack.c.bf16 %v3734, %v3730
        %v3831 = vpack.c.bf16 %v3735, %v3731
        %v3832 = vpack.c.bf16 %v3736, %v3732
        %v3833 = vpack.c.bf16 %v3741, %v3737
        %v3834 = vpack.c.bf16 %v3742, %v3738
        %v3835 = vpack.c.bf16 %v3743, %v3739
        %v3836 = vpack.c.bf16 %v3744, %v3740
        %v3837 = vpack.c.bf16 %v3749, %v3745
        %v3838 = vpack.c.bf16 %v3750, %v3746
        %v3839 = vpack.c.bf16 %v3751, %v3747
        %v3840 = vpack.c.bf16 %v3752, %v3748
        %v3841 = vpack.c.bf16 %v3757, %v3753
        %v3842 = vpack.c.bf16 %v3758, %v3754
        %v3843 = vpack.c.bf16 %v3759, %v3755
        %v3844 = vpack.c.bf16 %v3760, %v3756
        %v3845 = vpack.c.bf16 %v3765, %v3761
        %v3846 = vpack.c.bf16 %v3766, %v3762
        %v3847 = vpack.c.bf16 %v3767, %v3763
        %v3848 = vpack.c.bf16 %v3768, %v3764
        %v3849 = vpack.c.bf16 %v3773, %v3769
        %v3850 = vpack.c.bf16 %v3774, %v3770
        %v3851 = vpack.c.bf16 %v3775, %v3771
        %v3852 = vpack.c.bf16 %v3776, %v3772
        %v3853 = vpack.c.bf16 %v3781, %v3777
        %v3854 = vpack.c.bf16 %v3782, %v3778
        %v3855 = vpack.c.bf16 %v3783, %v3779
        %v3856 = vpack.c.bf16 %v3784, %v3780
        %v3857 = vpack.c.bf16 %v3789, %v3785
        %v3858 = vpack.c.bf16 %v3790, %v3786
        %v3859 = vpack.c.bf16 %v3791, %v3787
        %v3860 = vpack.c.bf16 %v3792, %v3788
        %v3861 = vpack.c.bf16 %v3797, %v3793
        %v3862 = vpack.c.bf16 %v3798, %v3794
        %v3863 = vpack.c.bf16 %v3799, %v3795
        %v3864 = vpack.c.bf16 %v3800, %v3796
        %v3865 = vld [vmem:[#allocation8] sm:$0xff]
        %v3866 = vld [vmem:[#allocation8 + $0x8] sm:$0xff]
        %v3867 = vld [vmem:[#allocation8 + $0x10] sm:$0xff]
        %v3868 = vld [vmem:[#allocation8 + $0x18] sm:$0xff]
        %v3869 = vld [vmem:[#allocation8 + $0x20] sm:$0xff]
        %v3870 = vld [vmem:[#allocation8 + $0x28] sm:$0xff]
        %v3871 = vld [vmem:[#allocation8 + $0x30] sm:$0xff]
        %v3872 = vld [vmem:[#allocation8 + $0x38] sm:$0xff]
        %v3873 = vld [vmem:[#allocation8 + $0x40] sm:$0xff]
        %v3874 = vld [vmem:[#allocation8 + $0x48] sm:$0xff]
        %v3875 = vld [vmem:[#allocation8 + $0x50] sm:$0xff]
        %v3876 = vld [vmem:[#allocation8 + $0x58] sm:$0xff]
        %v3877 = vld [vmem:[#allocation8 + $0x60] sm:$0xff]
        %v3878 = vld [vmem:[#allocation8 + $0x68] sm:$0xff]
        %v3879 = vld [vmem:[#allocation8 + $0x70] sm:$0xff]
        %v3880 = vld [vmem:[#allocation8 + $0x78] sm:$0xff]
        %v3881 = vld [vmem:[#allocation8 + $0x80] sm:$0xff]
        %v3882 = vld [vmem:[#allocation8 + $0x88] sm:$0xff]
        %v3883 = vld [vmem:[#allocation8 + $0x90] sm:$0xff]
        %v3884 = vld [vmem:[#allocation8 + $0x98] sm:$0xff]
        %v3885 = vld [vmem:[#allocation8 + $0xa0] sm:$0xff]
        %v3886 = vld [vmem:[#allocation8 + $0xa8] sm:$0xff]
        %v3887 = vld [vmem:[#allocation8 + $0xb0] sm:$0xff]
        %v3888 = vld [vmem:[#allocation8 + $0xb8] sm:$0xff]
        %v3889 = vld [vmem:[#allocation8 + $0xc0] sm:$0xff]
        %v3890 = vld [vmem:[#allocation8 + $0xc8] sm:$0xff]
        %v3891 = vld [vmem:[#allocation8 + $0xd0] sm:$0xff]
        %v3892 = vld [vmem:[#allocation8 + $0xd8] sm:$0xff]
        %v3893 = vld [vmem:[#allocation8 + $0xe0] sm:$0xff]
        %v3894 = vld [vmem:[#allocation8 + $0xe8] sm:$0xff]
        %v3895 = vld [vmem:[#allocation8 + $0xf0] sm:$0xff]
        %v3896 = vld [vmem:[#allocation8 + $0xf8] sm:$0xff]
        %v3897 = vld [vmem:[#allocation8 + $0x100] sm:$0xff]
        %v3898 = vld [vmem:[#allocation8 + $0x108] sm:$0xff]
        %v3899 = vld [vmem:[#allocation8 + $0x110] sm:$0xff]
        %v3900 = vld [vmem:[#allocation8 + $0x118] sm:$0xff]
        %v3901 = vld [vmem:[#allocation8 + $0x120] sm:$0xff]
        %v3902 = vld [vmem:[#allocation8 + $0x128] sm:$0xff]
        %v3903 = vld [vmem:[#allocation8 + $0x130] sm:$0xff]
        %v3904 = vld [vmem:[#allocation8 + $0x138] sm:$0xff]
        %v3905 = vld [vmem:[#allocation8 + $0x140] sm:$0xff]
        %v3906 = vld [vmem:[#allocation8 + $0x148] sm:$0xff]
        %v3907 = vld [vmem:[#allocation8 + $0x150] sm:$0xff]
        %v3908 = vld [vmem:[#allocation8 + $0x158] sm:$0xff]
        %v3909 = vld [vmem:[#allocation8 + $0x160] sm:$0xff]
        %v3910 = vld [vmem:[#allocation8 + $0x168] sm:$0xff]
        %v3911 = vld [vmem:[#allocation8 + $0x170] sm:$0xff]
        %v3912 = vld [vmem:[#allocation8 + $0x178] sm:$0xff]
        %v3913 = vld [vmem:[#allocation8 + $0x180] sm:$0xff]
        %v3914 = vld [vmem:[#allocation8 + $0x188] sm:$0xff]
        %v3915 = vld [vmem:[#allocation8 + $0x190] sm:$0xff]
        %v3916 = vld [vmem:[#allocation8 + $0x198] sm:$0xff]
        %v3917 = vld [vmem:[#allocation8 + $0x1a0] sm:$0xff]
        %v3918 = vld [vmem:[#allocation8 + $0x1a8] sm:$0xff]
        %v3919 = vld [vmem:[#allocation8 + $0x1b0] sm:$0xff]
        %v3920 = vld [vmem:[#allocation8 + $0x1b8] sm:$0xff]
        %v3921 = vld [vmem:[#allocation8 + $0x1c0] sm:$0xff]
        %v3922 = vld [vmem:[#allocation8 + $0x1c8] sm:$0xff]
        %v3923 = vld [vmem:[#allocation8 + $0x1d0] sm:$0xff]
        %v3924 = vld [vmem:[#allocation8 + $0x1d8] sm:$0xff]
        %v3925 = vld [vmem:[#allocation8 + $0x1e0] sm:$0xff]
        %v3926 = vld [vmem:[#allocation8 + $0x1e8] sm:$0xff]
        %v3927 = vld [vmem:[#allocation8 + $0x1f0] sm:$0xff]
        %v3928 = vld [vmem:[#allocation8 + $0x1f8] sm:$0xff]
        %v3929 = vld [vmem:[#allocation10] sm:$0x3]
        %v3931 = vlaneseq
        %v3932 = vshrl.u32 %v3931, 7
        %v3933 = vsub.s32 0, %v3932
        %v3934 = vrot.slane %v3929, %v3933
        %v3935 = vlaneseq
        %v3936 = vshrl.u32 %v3935, 7
        %v3937 = vsub.s32 1, %v3936
        %v3938 = vrot.slane %v3929, %v3937
        %v4005 = vunpack.c.l.b16 %v3865
        %v4006 = vunpack.c.h.b16 %v3865
        %v4007 = vunpack.c.l.b16 %v3866
        %v4008 = vunpack.c.h.b16 %v3866
        %v4009 = vunpack.c.l.b16 %v3867
        %v4010 = vunpack.c.h.b16 %v3867
        %v4011 = vunpack.c.l.b16 %v3868
        %v4012 = vunpack.c.h.b16 %v3868
        %v4013 = vunpack.c.l.b16 %v3869
        %v4014 = vunpack.c.h.b16 %v3869
        %v4015 = vunpack.c.l.b16 %v3870
        %v4016 = vunpack.c.h.b16 %v3870
        %v4017 = vunpack.c.l.b16 %v3871
        %v4018 = vunpack.c.h.b16 %v3871
        %v4019 = vunpack.c.l.b16 %v3872
        %v4020 = vunpack.c.h.b16 %v3872
        %v4021 = vunpack.c.l.b16 %v3873
        %v4022 = vunpack.c.h.b16 %v3873
        %v4023 = vunpack.c.l.b16 %v3874
        %v4024 = vunpack.c.h.b16 %v3874
        %v4025 = vunpack.c.l.b16 %v3875
        %v4026 = vunpack.c.h.b16 %v3875
        %v4027 = vunpack.c.l.b16 %v3876
        %v4028 = vunpack.c.h.b16 %v3876
        %v4029 = vunpack.c.l.b16 %v3877
        %v4030 = vunpack.c.h.b16 %v3877
        %v4031 = vunpack.c.l.b16 %v3878
        %v4032 = vunpack.c.h.b16 %v3878
        %v4033 = vunpack.c.l.b16 %v3879
        %v4034 = vunpack.c.h.b16 %v3879
        %v4035 = vunpack.c.l.b16 %v3880
        %v4036 = vunpack.c.h.b16 %v3880
        %v4037 = vunpack.c.l.b16 %v3881
        %v4038 = vunpack.c.h.b16 %v3881
        %v4039 = vunpack.c.l.b16 %v3882
        %v4040 = vunpack.c.h.b16 %v3882
        %v4041 = vunpack.c.l.b16 %v3883
        %v4042 = vunpack.c.h.b16 %v3883
        %v4043 = vunpack.c.l.b16 %v3884
        %v4044 = vunpack.c.h.b16 %v3884
        %v4045 = vunpack.c.l.b16 %v3885
        %v4046 = vunpack.c.h.b16 %v3885
        %v4047 = vunpack.c.l.b16 %v3886
        %v4048 = vunpack.c.h.b16 %v3886
        %v4049 = vunpack.c.l.b16 %v3887
        %v4050 = vunpack.c.h.b16 %v3887
        %v4051 = vunpack.c.l.b16 %v3888
        %v4052 = vunpack.c.h.b16 %v3888
        %v4053 = vunpack.c.l.b16 %v3889
        %v4054 = vunpack.c.h.b16 %v3889
        %v4055 = vunpack.c.l.b16 %v3890
        %v4056 = vunpack.c.h.b16 %v3890
        %v4057 = vunpack.c.l.b16 %v3891
        %v4058 = vunpack.c.h.b16 %v3891
        %v4059 = vunpack.c.l.b16 %v3892
        %v4060 = vunpack.c.h.b16 %v3892
        %v4061 = vunpack.c.l.b16 %v3893
        %v4062 = vunpack.c.h.b16 %v3893
        %v4063 = vunpack.c.l.b16 %v3894
        %v4064 = vunpack.c.h.b16 %v3894
        %v4065 = vunpack.c.l.b16 %v3895
        %v4066 = vunpack.c.h.b16 %v3895
        %v4067 = vunpack.c.l.b16 %v3896
        %v4068 = vunpack.c.h.b16 %v3896
        %v4069 = vunpack.c.l.b16 %v3897
        %v4070 = vunpack.c.h.b16 %v3897
        %v4071 = vunpack.c.l.b16 %v3898
        %v4072 = vunpack.c.h.b16 %v3898
        %v4073 = vunpack.c.l.b16 %v3899
        %v4074 = vunpack.c.h.b16 %v3899
        %v4075 = vunpack.c.l.b16 %v3900
        %v4076 = vunpack.c.h.b16 %v3900
        %v4077 = vunpack.c.l.b16 %v3901
        %v4078 = vunpack.c.h.b16 %v3901
        %v4079 = vunpack.c.l.b16 %v3902
        %v4080 = vunpack.c.h.b16 %v3902
        %v4081 = vunpack.c.l.b16 %v3903
        %v4082 = vunpack.c.h.b16 %v3903
        %v4083 = vunpack.c.l.b16 %v3904
        %v4084 = vunpack.c.h.b16 %v3904
        %v4085 = vunpack.c.l.b16 %v3905
        %v4086 = vunpack.c.h.b16 %v3905
        %v4087 = vunpack.c.l.b16 %v3906
        %v4088 = vunpack.c.h.b16 %v3906
        %v4089 = vunpack.c.l.b16 %v3907
        %v4090 = vunpack.c.h.b16 %v3907
        %v4091 = vunpack.c.l.b16 %v3908
        %v4092 = vunpack.c.h.b16 %v3908
        %v4093 = vunpack.c.l.b16 %v3909
        %v4094 = vunpack.c.h.b16 %v3909
        %v4095 = vunpack.c.l.b16 %v3910
        %v4096 = vunpack.c.h.b16 %v3910
        %v4097 = vunpack.c.l.b16 %v3911
        %v4098 = vunpack.c.h.b16 %v3911
        %v4099 = vunpack.c.l.b16 %v3912
        %v4100 = vunpack.c.h.b16 %v3912
        %v4101 = vunpack.c.l.b16 %v3913
        %v4102 = vunpack.c.h.b16 %v3913
        %v4103 = vunpack.c.l.b16 %v3914
        %v4104 = vunpack.c.h.b16 %v3914
        %v4105 = vunpack.c.l.b16 %v3915
        %v4106 = vunpack.c.h.b16 %v3915
        %v4107 = vunpack.c.l.b16 %v3916
        %v4108 = vunpack.c.h.b16 %v3916
        %v4109 = vunpack.c.l.b16 %v3917
        %v4110 = vunpack.c.h.b16 %v3917
        %v4111 = vunpack.c.l.b16 %v3918
        %v4112 = vunpack.c.h.b16 %v3918
        %v4113 = vunpack.c.l.b16 %v3919
        %v4114 = vunpack.c.h.b16 %v3919
        %v4115 = vunpack.c.l.b16 %v3920
        %v4116 = vunpack.c.h.b16 %v3920
        %v4117 = vunpack.c.l.b16 %v3921
        %v4118 = vunpack.c.h.b16 %v3921
        %v4119 = vunpack.c.l.b16 %v3922
        %v4120 = vunpack.c.h.b16 %v3922
        %v4121 = vunpack.c.l.b16 %v3923
        %v4122 = vunpack.c.h.b16 %v3923
        %v4123 = vunpack.c.l.b16 %v3924
        %v4124 = vunpack.c.h.b16 %v3924
        %v4125 = vunpack.c.l.b16 %v3925
        %v4126 = vunpack.c.h.b16 %v3925
        %v4127 = vunpack.c.l.b16 %v3926
        %v4128 = vunpack.c.h.b16 %v3926
        %v4129 = vunpack.c.l.b16 %v3927
        %v4130 = vunpack.c.h.b16 %v3927
        %v4131 = vunpack.c.l.b16 %v3928
        %v4132 = vunpack.c.h.b16 %v3928
        %v4133 = vpack.c.b16 %v4007, %v4005
        %v4134 = vpack.c.b16 %v4008, %v4006
        %v4135 = vpack.c.b16 %v4011, %v4009
        %v4136 = vpack.c.b16 %v4012, %v4010
        %v4137 = vpack.c.b16 %v4015, %v4013
        %v4138 = vpack.c.b16 %v4016, %v4014
        %v4139 = vpack.c.b16 %v4019, %v4017
        %v4140 = vpack.c.b16 %v4020, %v4018
        %v4141 = vpack.c.b16 %v4023, %v4021
        %v4142 = vpack.c.b16 %v4024, %v4022
        %v4143 = vpack.c.b16 %v4027, %v4025
        %v4144 = vpack.c.b16 %v4028, %v4026
        %v4145 = vpack.c.b16 %v4031, %v4029
        %v4146 = vpack.c.b16 %v4032, %v4030
        %v4147 = vpack.c.b16 %v4035, %v4033
        %v4148 = vpack.c.b16 %v4036, %v4034
        %v4149 = vpack.c.b16 %v4039, %v4037
        %v4150 = vpack.c.b16 %v4040, %v4038
        %v4151 = vpack.c.b16 %v4043, %v4041
        %v4152 = vpack.c.b16 %v4044, %v4042
        %v4153 = vpack.c.b16 %v4047, %v4045
        %v4154 = vpack.c.b16 %v4048, %v4046
        %v4155 = vpack.c.b16 %v4051, %v4049
        %v4156 = vpack.c.b16 %v4052, %v4050
        %v4157 = vpack.c.b16 %v4055, %v4053
        %v4158 = vpack.c.b16 %v4056, %v4054
        %v4159 = vpack.c.b16 %v4059, %v4057
        %v4160 = vpack.c.b16 %v4060, %v4058
        %v4161 = vpack.c.b16 %v4063, %v4061
        %v4162 = vpack.c.b16 %v4064, %v4062
        %v4163 = vpack.c.b16 %v4067, %v4065
        %v4164 = vpack.c.b16 %v4068, %v4066
        %v4165 = vpack.c.b16 %v4071, %v4069
        %v4166 = vpack.c.b16 %v4072, %v4070
        %v4167 = vpack.c.b16 %v4075, %v4073
        %v4168 = vpack.c.b16 %v4076, %v4074
        %v4169 = vpack.c.b16 %v4079, %v4077
        %v4170 = vpack.c.b16 %v4080, %v4078
        %v4171 = vpack.c.b16 %v4083, %v4081
        %v4172 = vpack.c.b16 %v4084, %v4082
        %v4173 = vpack.c.b16 %v4087, %v4085
        %v4174 = vpack.c.b16 %v4088, %v4086
        %v4175 = vpack.c.b16 %v4091, %v4089
        %v4176 = vpack.c.b16 %v4092, %v4090
        %v4177 = vpack.c.b16 %v4095, %v4093
        %v4178 = vpack.c.b16 %v4096, %v4094
        %v4179 = vpack.c.b16 %v4099, %v4097
        %v4180 = vpack.c.b16 %v4100, %v4098
        %v4181 = vpack.c.b16 %v4103, %v4101
        %v4182 = vpack.c.b16 %v4104, %v4102
        %v4183 = vpack.c.b16 %v4107, %v4105
        %v4184 = vpack.c.b16 %v4108, %v4106
        %v4185 = vpack.c.b16 %v4111, %v4109
        %v4186 = vpack.c.b16 %v4112, %v4110
        %v4187 = vpack.c.b16 %v4115, %v4113
        %v4188 = vpack.c.b16 %v4116, %v4114
        %v4189 = vpack.c.b16 %v4119, %v4117
        %v4190 = vpack.c.b16 %v4120, %v4118
        %v4191 = vpack.c.b16 %v4123, %v4121
        %v4192 = vpack.c.b16 %v4124, %v4122
        %v4193 = vpack.c.b16 %v4127, %v4125
        %v4194 = vpack.c.b16 %v4128, %v4126
        %v4195 = vpack.c.b16 %v4131, %v4129
        %v4196 = vpack.c.b16 %v4132, %v4130
        %4261 = vmatprep.subr.bf16.mxu0 %v4134
        %4262 = vmatpush1.bf16.msra.mxu0 %v4133
        %4263 = vmatprep.subr.bf16.mxu0 %v4136
        %4264 = vmatpush1.bf16.msra.mxu0 %v4135
        %4265 = vmatprep.subr.bf16.mxu0 %v4138
        %4266 = vmatpush1.bf16.msra.mxu0 %v4137
        %4267 = vmatprep.subr.bf16.mxu0 %v4140
        %4268 = vmatpush1.bf16.msra.mxu0 %v4139
        %4269 = vmatprep.subr.bf16.mxu0 %v4142
        %4270 = vmatpush1.bf16.msra.mxu0 %v4141
        %4271 = vmatprep.subr.bf16.mxu0 %v4144
        %4272 = vmatpush1.bf16.msra.mxu0 %v4143
        %4273 = vmatprep.subr.bf16.mxu0 %v4146
        %4274 = vmatpush1.bf16.msra.mxu0 %v4145
        %4275 = vmatprep.subr.bf16.mxu0 %v4148
        %4276 = vmatpush1.bf16.msra.mxu0 %v4147
        %4277 = vmatprep.subr.bf16.mxu0 %v4150
        %4278 = vmatpush1.bf16.msra.mxu0 %v4149
        %4279 = vmatprep.subr.bf16.mxu0 %v4152
        %4280 = vmatpush1.bf16.msra.mxu0 %v4151
        %4281 = vmatprep.subr.bf16.mxu0 %v4154
        %4282 = vmatpush1.bf16.msra.mxu0 %v4153
        %4283 = vmatprep.subr.bf16.mxu0 %v4156
        %4284 = vmatpush1.bf16.msra.mxu0 %v4155
        %4285 = vmatprep.subr.bf16.mxu0 %v4158
        %4286 = vmatpush1.bf16.msra.mxu0 %v4157
        %4287 = vmatprep.subr.bf16.mxu0 %v4160
        %4288 = vmatpush1.bf16.msra.mxu0 %v4159
        %4289 = vmatprep.subr.bf16.mxu0 %v4162
        %4290 = vmatpush1.bf16.msra.mxu0 %v4161
        %4291 = vmatprep.subr.bf16.mxu0 %v4164
        %4292 = vmatpush1.bf16.msra.mxu0 %v4163
        %4293 = vmatprep.mubr.bf16.mxu0 %v3802
        %4294 = vmatmul.mubr.bf16.gmra.mrb[0].mxu0 %v3801
        %v4295 = vpop.f32.mrb[0].mxu0
        %v4296 = vadd.f32 %v3934, %v4295
        %v4297 = vpop.f32.mrb[0].mxu0
        %v4298 = vadd.f32 %v3938, %v4297
        %v4299 = vpop.f32.mrb[0].mxu0
        %v4300 = vadd.f32 %v3934, %v4299
        %v4301 = vpop.f32.mrb[0].mxu0
        %v4302 = vadd.f32 %v3938, %v4301
        %4303 = vmatprep.mubr.bf16.mxu0 %v3806
        %4304 = vmatmul.mubr.bf16.gmra.mrb[0].mxu0 %v3805
        %v4305 = vpop.f32.mrb[0].mxu0
        %v4306 = vadd.f32 %v3934, %v4305
        %v4307 = vpop.f32.mrb[0].mxu0
        %v4308 = vadd.f32 %v3938, %v4307
        %v4309 = vpop.f32.mrb[0].mxu0
        %v4310 = vadd.f32 %v3934, %v4309
        %v4311 = vpop.f32.mrb[0].mxu0
        %v4312 = vadd.f32 %v3938, %v4311
        %4313 = vmatprep.mubr.bf16.mxu0 %v3810
        %4314 = vmatmul.mubr.bf16.gmra.mrb[0].mxu0 %v3809
        %v4315 = vpop.f32.mrb[0].mxu0
        %v4316 = vadd.f32 %v3934, %v4315
        %v4317 = vpop.f32.mrb[0].mxu0
        %v4318 = vadd.f32 %v3938, %v4317
        %v4319 = vpop.f32.mrb[0].mxu0
        %v4320 = vadd.f32 %v3934, %v4319
        %v4321 = vpop.f32.mrb[0].mxu0
        %v4322 = vadd.f32 %v3938, %v4321
        %4323 = vmatprep.mubr.bf16.mxu0 %v3814
        %4324 = vmatmul.mubr.bf16.gmra.mrb[0].mxu0 %v3813
        %v4325 = vpop.f32.mrb[0].mxu0
        %v4326 = vadd.f32 %v3934, %v4325
        %v4327 = vpop.f32.mrb[0].mxu0
        %v4328 = vadd.f32 %v3938, %v4327
        %v4329 = vpop.f32.mrb[0].mxu0
        %v4330 = vadd.f32 %v3934, %v4329
        %v4331 = vpop.f32.mrb[0].mxu0
        %v4332 = vadd.f32 %v3938, %v4331
        %4333 = vmatprep.mubr.bf16.mxu0 %v3818
        %4334 = vmatmul.mubr.bf16.gmra.mrb[0].mxu0 %v3817
        %v4335 = vpop.f32.mrb[0].mxu0
        %v4336 = vadd.f32 %v3934, %v4335
        %v4337 = vpop.f32.mrb[0].mxu0
        %v4338 = vadd.f32 %v3938, %v4337
        %v4339 = vpop.f32.mrb[0].mxu0
        %v4340 = vadd.f32 %v3934, %v4339
        %v4341 = vpop.f32.mrb[0].mxu0
        %v4342 = vadd.f32 %v3938, %v4341
        %4343 = vmatprep.mubr.bf16.mxu0 %v3822
        %4344 = vmatmul.mubr.bf16.gmra.mrb[0].mxu0 %v3821
        %v4345 = vpop.f32.mrb[0].mxu0
        %v4346 = vadd.f32 %v3934, %v4345
        %v4347 = vpop.f32.mrb[0].mxu0
        %v4348 = vadd.f32 %v3938, %v4347
        %v4349 = vpop.f32.mrb[0].mxu0
        %v4350 = vadd.f32 %v3934, %v4349
        %v4351 = vpop.f32.mrb[0].mxu0
        %v4352 = vadd.f32 %v3938, %v4351
        %4353 = vmatprep.mubr.bf16.mxu0 %v3826
        %4354 = vmatmul.mubr.bf16.gmra.mrb[0].mxu0 %v3825
        %v4355 = vpop.f32.mrb[0].mxu0
        %v4356 = vadd.f32 %v3934, %v4355
        %v4357 = vpop.f32.mrb[0].mxu0
        %v4358 = vadd.f32 %v3938, %v4357
        %v4359 = vpop.f32.mrb[0].mxu0
        %v4360 = vadd.f32 %v3934, %v4359
        %v4361 = vpop.f32.mrb[0].mxu0
        %v4362 = vadd.f32 %v3938, %v4361
        %4363 = vmatprep.mubr.bf16.mxu0 %v3830
        %4364 = vmatmul.mubr.bf16.gmra.mrb[0].mxu0 %v3829
        %v4365 = vpop.f32.mrb[0].mxu0
        %v4366 = vadd.f32 %v3934, %v4365
        %v4367 = vpop.f32.mrb[0].mxu0
        %v4368 = vadd.f32 %v3938, %v4367
        %v4369 = vpop.f32.mrb[0].mxu0
        %v4370 = vadd.f32 %v3934, %v4369
        %v4371 = vpop.f32.mrb[0].mxu0
        %v4372 = vadd.f32 %v3938, %v4371
        %4373 = vmatprep.mubr.bf16.mxu0 %v3834
        %4374 = vmatmul.mubr.bf16.gmra.mrb[0].mxu0 %v3833
        %v4375 = vpop.f32.mrb[0].mxu0
        %v4376 = vadd.f32 %v3934, %v4375
        %v4377 = vpop.f32.mrb[0].mxu0
        %v4378 = vadd.f32 %v3938, %v4377
        %v4379 = vpop.f32.mrb[0].mxu0
        %v4380 = vadd.f32 %v3934, %v4379
        %v4381 = vpop.f32.mrb[0].mxu0
        %v4382 = vadd.f32 %v3938, %v4381
        %4383 = vmatprep.mubr.bf16.mxu0 %v3838
        %4384 = vmatmul.mubr.bf16.gmra.mrb[0].mxu0 %v3837
        %v4385 = vpop.f32.mrb[0].mxu0
        %v4386 = vadd.f32 %v3934, %v4385
        %v4387 = vpop.f32.mrb[0].mxu0
        %v4388 = vadd.f32 %v3938, %v4387
        %v4389 = vpop.f32.mrb[0].mxu0
        %v4390 = vadd.f32 %v3934, %v4389
        %v4391 = vpop.f32.mrb[0].mxu0
        %v4392 = vadd.f32 %v3938, %v4391
        %4393 = vmatprep.mubr.bf16.mxu0 %v3842
        %4394 = vmatmul.mubr.bf16.gmra.mrb[0].mxu0 %v3841
        %v4395 = vpop.f32.mrb[0].mxu0
        %v4396 = vadd.f32 %v3934, %v4395
        %v4397 = vpop.f32.mrb[0].mxu0
        %v4398 = vadd.f32 %v3938, %v4397
        %v4399 = vpop.f32.mrb[0].mxu0
        %v4400 = vadd.f32 %v3934, %v4399
        %v4401 = vpop.f32.mrb[0].mxu0
        %v4402 = vadd.f32 %v3938, %v4401
        %4403 = vmatprep.mubr.bf16.mxu0 %v3846
        %4404 = vmatmul.mubr.bf16.gmra.mrb[0].mxu0 %v3845
        %v4405 = vpop.f32.mrb[0].mxu0
        %v4406 = vadd.f32 %v3934, %v4405
        %v4407 = vpop.f32.mrb[0].mxu0
        %v4408 = vadd.f32 %v3938, %v4407
        %v4409 = vpop.f32.mrb[0].mxu0
        %v4410 = vadd.f32 %v3934, %v4409
        %v4411 = vpop.f32.mrb[0].mxu0
        %v4412 = vadd.f32 %v3938, %v4411
        %4413 = vmatprep.mubr.bf16.mxu0 %v3850
        %4414 = vmatmul.mubr.bf16.gmra.mrb[0].mxu0 %v3849
        %v4415 = vpop.f32.mrb[0].mxu0
        %v4416 = vadd.f32 %v3934, %v4415
        %v4417 = vpop.f32.mrb[0].mxu0
        %v4418 = vadd.f32 %v3938, %v4417
        %v4419 = vpop.f32.mrb[0].mxu0
        %v4420 = vadd.f32 %v3934, %v4419
        %v4421 = vpop.f32.mrb[0].mxu0
        %v4422 = vadd.f32 %v3938, %v4421
        %4423 = vmatprep.mubr.bf16.mxu0 %v3854
        %4424 = vmatmul.mubr.bf16.gmra.mrb[0].mxu0 %v3853
        %v4425 = vpop.f32.mrb[0].mxu0
        %v4426 = vadd.f32 %v3934, %v4425
        %v4427 = vpop.f32.mrb[0].mxu0
        %v4428 = vadd.f32 %v3938, %v4427
        %v4429 = vpop.f32.mrb[0].mxu0
        %v4430 = vadd.f32 %v3934, %v4429
        %v4431 = vpop.f32.mrb[0].mxu0
        %v4432 = vadd.f32 %v3938, %v4431
        %4433 = vmatprep.mubr.bf16.mxu0 %v3858
        %4434 = vmatmul.mubr.bf16.gmra.mrb[0].mxu0 %v3857
        %v4435 = vpop.f32.mrb[0].mxu0
        %v4436 = vadd.f32 %v3934, %v4435
        %v4437 = vpop.f32.mrb[0].mxu0
        %v4438 = vadd.f32 %v3938, %v4437
        %v4439 = vpop.f32.mrb[0].mxu0
        %v4440 = vadd.f32 %v3934, %v4439
        %v4441 = vpop.f32.mrb[0].mxu0
        %v4442 = vadd.f32 %v3938, %v4441
        %4443 = vmatprep.mubr.bf16.mxu0 %v3862
        %4444 = vmatmul.mubr.bf16.gmra.mrb[0].mxu0 %v3861
        %v4445 = vpop.f32.mrb[0].mxu0
        %v4446 = vadd.f32 %v3934, %v4445
        %v4447 = vpop.f32.mrb[0].mxu0
        %v4448 = vadd.f32 %v3938, %v4447
        %v4449 = vpop.f32.mrb[0].mxu0
        %v4450 = vadd.f32 %v3934, %v4449
        %v4451 = vpop.f32.mrb[0].mxu0
        %v4452 = vadd.f32 %v3938, %v4451
        %4453 = vdwg.mxu0
        %4454 = vmatprep.subr.bf16.mxu0 %v4166
        %4455 = vmatpush1.bf16.msra.mxu0 %v4165
        %4456 = vmatprep.subr.bf16.mxu0 %v4168
        %4457 = vmatpush1.bf16.msra.mxu0 %v4167
        %4458 = vmatprep.subr.bf16.mxu0 %v4170
        %4459 = vmatpush1.bf16.msra.mxu0 %v4169
        %4460 = vmatprep.subr.bf16.mxu0 %v4172
        %4461 = vmatpush1.bf16.msra.mxu0 %v4171
        %4462 = vmatprep.subr.bf16.mxu0 %v4174
        %4463 = vmatpush1.bf16.msra.mxu0 %v4173
        %4464 = vmatprep.subr.bf16.mxu0 %v4176
        %4465 = vmatpush1.bf16.msra.mxu0 %v4175
        %4466 = vmatprep.subr.bf16.mxu0 %v4178
        %4467 = vmatpush1.bf16.msra.mxu0 %v4177
        %4468 = vmatprep.subr.bf16.mxu0 %v4180
        %4469 = vmatpush1.bf16.msra.mxu0 %v4179
        %4470 = vmatprep.subr.bf16.mxu0 %v4182
        %4471 = vmatpush1.bf16.msra.mxu0 %v4181
        %4472 = vmatprep.subr.bf16.mxu0 %v4184
        %4473 = vmatpush1.bf16.msra.mxu0 %v4183
        %4474 = vmatprep.subr.bf16.mxu0 %v4186
        %4475 = vmatpush1.bf16.msra.mxu0 %v4185
        %4476 = vmatprep.subr.bf16.mxu0 %v4188
        %4477 = vmatpush1.bf16.msra.mxu0 %v4187
        %4478 = vmatprep.subr.bf16.mxu0 %v4190
        %4479 = vmatpush1.bf16.msra.mxu0 %v4189
        %4480 = vmatprep.subr.bf16.mxu0 %v4192
        %4481 = vmatpush1.bf16.msra.mxu0 %v4191
        %4482 = vmatprep.subr.bf16.mxu0 %v4194
        %4483 = vmatpush1.bf16.msra.mxu0 %v4193
        %4484 = vmatprep.subr.bf16.mxu0 %v4196
        %4485 = vmatpush1.bf16.msra.mxu0 %v4195
        %4486 = vmatprep.mubr.bf16.mxu0 %v3804
        %4487 = vmatmul.mubr.bf16.gmra.mrb[0].mxu0 %v3803
        %v4488 = vpop.f32.mrb[0].mxu0
        %v4489 = vadd.f32 %v4296, %v4488
        %v4490 = vpop.f32.mrb[0].mxu0
        %v4491 = vadd.f32 %v4298, %v4490
        %v4492 = vpop.f32.mrb[0].mxu0
        %v4493 = vadd.f32 %v4300, %v4492
        %v4494 = vpop.f32.mrb[0].mxu0
        %v4495 = vadd.f32 %v4302, %v4494
        %4496 = vmatprep.mubr.bf16.mxu0 %v3808
        %4497 = vmatmul.mubr.bf16.gmra.mrb[0].mxu0 %v3807
        %v4498 = vpop.f32.mrb[0].mxu0
        %v4499 = vadd.f32 %v4306, %v4498
        %v4500 = vpop.f32.mrb[0].mxu0
        %v4501 = vadd.f32 %v4308, %v4500
        %v4502 = vpop.f32.mrb[0].mxu0
        %v4503 = vadd.f32 %v4310, %v4502
        %v4504 = vpop.f32.mrb[0].mxu0
        %v4505 = vadd.f32 %v4312, %v4504
        %4506 = vmatprep.mubr.bf16.mxu0 %v3812
        %4507 = vmatmul.mubr.bf16.gmra.mrb[0].mxu0 %v3811
        %v4508 = vpop.f32.mrb[0].mxu0
        %v4509 = vadd.f32 %v4316, %v4508
        %v4510 = vpop.f32.mrb[0].mxu0
        %v4511 = vadd.f32 %v4318, %v4510
        %v4512 = vpop.f32.mrb[0].mxu0
        %v4513 = vadd.f32 %v4320, %v4512
        %v4514 = vpop.f32.mrb[0].mxu0
        %v4515 = vadd.f32 %v4322, %v4514
        %4516 = vmatprep.mubr.bf16.mxu0 %v3816
        %4517 = vmatmul.mubr.bf16.gmra.mrb[0].mxu0 %v3815
        %v4518 = vpop.f32.mrb[0].mxu0
        %v4519 = vadd.f32 %v4326, %v4518
        %v4520 = vpop.f32.mrb[0].mxu0
        %v4521 = vadd.f32 %v4328, %v4520
        %v4522 = vpop.f32.mrb[0].mxu0
        %v4523 = vadd.f32 %v4330, %v4522
        %v4524 = vpop.f32.mrb[0].mxu0
        %v4525 = vadd.f32 %v4332, %v4524
        %4526 = vmatprep.mubr.bf16.mxu0 %v3820
        %4527 = vmatmul.mubr.bf16.gmra.mrb[0].mxu0 %v3819
        %v4528 = vpop.f32.mrb[0].mxu0
        %v4529 = vadd.f32 %v4336, %v4528
        %v4530 = vpop.f32.mrb[0].mxu0
        %v4531 = vadd.f32 %v4338, %v4530
        %v4532 = vpop.f32.mrb[0].mxu0
        %v4533 = vadd.f32 %v4340, %v4532
        %v4534 = vpop.f32.mrb[0].mxu0
        %v4535 = vadd.f32 %v4342, %v4534
        %4536 = vmatprep.mubr.bf16.mxu0 %v3824
        %4537 = vmatmul.mubr.bf16.gmra.mrb[0].mxu0 %v3823
        %v4538 = vpop.f32.mrb[0].mxu0
        %v4539 = vadd.f32 %v4346, %v4538
        %v4540 = vpop.f32.mrb[0].mxu0
        %v4541 = vadd.f32 %v4348, %v4540
        %v4542 = vpop.f32.mrb[0].mxu0
        %v4543 = vadd.f32 %v4350, %v4542
        %v4544 = vpop.f32.mrb[0].mxu0
        %v4545 = vadd.f32 %v4352, %v4544
        %4546 = vmatprep.mubr.bf16.mxu0 %v3828
        %4547 = vmatmul.mubr.bf16.gmra.mrb[0].mxu0 %v3827
        %v4548 = vpop.f32.mrb[0].mxu0
        %v4549 = vadd.f32 %v4356, %v4548
        %v4550 = vpop.f32.mrb[0].mxu0
        %v4551 = vadd.f32 %v4358, %v4550
        %v4552 = vpop.f32.mrb[0].mxu0
        %v4553 = vadd.f32 %v4360, %v4552
        %v4554 = vpop.f32.mrb[0].mxu0
        %v4555 = vadd.f32 %v4362, %v4554
        %4556 = vmatprep.mubr.bf16.mxu0 %v3832
        %4557 = vmatmul.mubr.bf16.gmra.mrb[0].mxu0 %v3831
        %v4558 = vpop.f32.mrb[0].mxu0
        %v4559 = vadd.f32 %v4366, %v4558
        %v4560 = vpop.f32.mrb[0].mxu0
        %v4561 = vadd.f32 %v4368, %v4560
        %v4562 = vpop.f32.mrb[0].mxu0
        %v4563 = vadd.f32 %v4370, %v4562
        %v4564 = vpop.f32.mrb[0].mxu0
        %v4565 = vadd.f32 %v4372, %v4564
        %4566 = vmatprep.mubr.bf16.mxu0 %v3836
        %4567 = vmatmul.mubr.bf16.gmra.mrb[0].mxu0 %v3835
        %v4568 = vpop.f32.mrb[0].mxu0
        %v4569 = vadd.f32 %v4376, %v4568
        %v4570 = vpop.f32.mrb[0].mxu0
        %v4571 = vadd.f32 %v4378, %v4570
        %v4572 = vpop.f32.mrb[0].mxu0
        %v4573 = vadd.f32 %v4380, %v4572
        %v4574 = vpop.f32.mrb[0].mxu0
        %v4575 = vadd.f32 %v4382, %v4574
        %4576 = vmatprep.mubr.bf16.mxu0 %v3840
        %4577 = vmatmul.mubr.bf16.gmra.mrb[0].mxu0 %v3839
        %v4578 = vpop.f32.mrb[0].mxu0
        %v4579 = vadd.f32 %v4386, %v4578
        %v4580 = vpop.f32.mrb[0].mxu0
        %v4581 = vadd.f32 %v4388, %v4580
        %v4582 = vpop.f32.mrb[0].mxu0
        %v4583 = vadd.f32 %v4390, %v4582
        %v4584 = vpop.f32.mrb[0].mxu0
        %v4585 = vadd.f32 %v4392, %v4584
        %4586 = vmatprep.mubr.bf16.mxu0 %v3844
        %4587 = vmatmul.mubr.bf16.gmra.mrb[0].mxu0 %v3843
        %v4588 = vpop.f32.mrb[0].mxu0
        %v4589 = vadd.f32 %v4396, %v4588
        %v4590 = vpop.f32.mrb[0].mxu0
        %v4591 = vadd.f32 %v4398, %v4590
        %v4592 = vpop.f32.mrb[0].mxu0
        %v4593 = vadd.f32 %v4400, %v4592
        %v4594 = vpop.f32.mrb[0].mxu0
        %v4595 = vadd.f32 %v4402, %v4594
        %4596 = vmatprep.mubr.bf16.mxu0 %v3848
        %4597 = vmatmul.mubr.bf16.gmra.mrb[0].mxu0 %v3847
        %v4598 = vpop.f32.mrb[0].mxu0
        %v4599 = vadd.f32 %v4406, %v4598
        %v4600 = vpop.f32.mrb[0].mxu0
        %v4601 = vadd.f32 %v4408, %v4600
        %v4602 = vpop.f32.mrb[0].mxu0
        %v4603 = vadd.f32 %v4410, %v4602
        %v4604 = vpop.f32.mrb[0].mxu0
        %v4605 = vadd.f32 %v4412, %v4604
        %4606 = vmatprep.mubr.bf16.mxu0 %v3852
        %4607 = vmatmul.mubr.bf16.gmra.mrb[0].mxu0 %v3851
        %v4608 = vpop.f32.mrb[0].mxu0
        %v4609 = vadd.f32 %v4416, %v4608
        %v4610 = vpop.f32.mrb[0].mxu0
        %v4611 = vadd.f32 %v4418, %v4610
        %v4612 = vpop.f32.mrb[0].mxu0
        %v4613 = vadd.f32 %v4420, %v4612
        %v4614 = vpop.f32.mrb[0].mxu0
        %v4615 = vadd.f32 %v4422, %v4614
        %4616 = vmatprep.mubr.bf16.mxu0 %v3856
        %4617 = vmatmul.mubr.bf16.gmra.mrb[0].mxu0 %v3855
        %v4618 = vpop.f32.mrb[0].mxu0
        %v4619 = vadd.f32 %v4426, %v4618
        %v4620 = vpop.f32.mrb[0].mxu0
        %v4621 = vadd.f32 %v4428, %v4620
        %v4622 = vpop.f32.mrb[0].mxu0
        %v4623 = vadd.f32 %v4430, %v4622
        %v4624 = vpop.f32.mrb[0].mxu0
        %v4625 = vadd.f32 %v4432, %v4624
        %4626 = vmatprep.mubr.bf16.mxu0 %v3860
        %4627 = vmatmul.mubr.bf16.gmra.mrb[0].mxu0 %v3859
        %v4628 = vpop.f32.mrb[0].mxu0
        %v4629 = vadd.f32 %v4436, %v4628
        %v4630 = vpop.f32.mrb[0].mxu0
        %v4631 = vadd.f32 %v4438, %v4630
        %v4632 = vpop.f32.mrb[0].mxu0
        %v4633 = vadd.f32 %v4440, %v4632
        %v4634 = vpop.f32.mrb[0].mxu0
        %v4635 = vadd.f32 %v4442, %v4634
        %4636 = vmatprep.mubr.bf16.mxu0 %v3864
        %4637 = vmatmul.mubr.bf16.gmra.mrb[0].mxu0 %v3863
        %v4638 = vpop.f32.mrb[0].mxu0
        %v4639 = vadd.f32 %v4446, %v4638
        %v4640 = vpop.f32.mrb[0].mxu0
        %v4641 = vadd.f32 %v4448, %v4640
        %v4642 = vpop.f32.mrb[0].mxu0
        %v4643 = vadd.f32 %v4450, %v4642
        %v4644 = vpop.f32.mrb[0].mxu0
        %v4645 = vadd.f32 %v4452, %v4644
        %4646 = vdwg.mxu0
        %v4647 = vmax.f32 %v4489, 0.0
        %v4648 = vmax.f32 %v4491, 0.0
        %v4649 = vmax.f32 %v4493, 0.0
        %v4650 = vmax.f32 %v4495, 0.0
        %v4651 = vmax.f32 %v4499, 0.0
        %v4652 = vmax.f32 %v4501, 0.0
        %v4653 = vmax.f32 %v4503, 0.0
        %v4654 = vmax.f32 %v4505, 0.0
        %v4655 = vmax.f32 %v4509, 0.0
        %v4656 = vmax.f32 %v4511, 0.0
        %v4657 = vmax.f32 %v4513, 0.0
        %v4658 = vmax.f32 %v4515, 0.0
        %v4659 = vmax.f32 %v4519, 0.0
        %v4660 = vmax.f32 %v4521, 0.0
        %v4661 = vmax.f32 %v4523, 0.0
        %v4662 = vmax.f32 %v4525, 0.0
        %v4663 = vmax.f32 %v4529, 0.0
        %v4664 = vmax.f32 %v4531, 0.0
        %v4665 = vmax.f32 %v4533, 0.0
        %v4666 = vmax.f32 %v4535, 0.0
        %v4667 = vmax.f32 %v4539, 0.0
        %v4668 = vmax.f32 %v4541, 0.0
        %v4669 = vmax.f32 %v4543, 0.0
        %v4670 = vmax.f32 %v4545, 0.0
        %v4671 = vmax.f32 %v4549, 0.0
        %v4672 = vmax.f32 %v4551, 0.0
        %v4673 = vmax.f32 %v4553, 0.0
        %v4674 = vmax.f32 %v4555, 0.0
        %v4675 = vmax.f32 %v4559, 0.0
        %v4676 = vmax.f32 %v4561, 0.0
        %v4677 = vmax.f32 %v4563, 0.0
        %v4678 = vmax.f32 %v4565, 0.0
        %v4679 = vmax.f32 %v4569, 0.0
        %v4680 = vmax.f32 %v4571, 0.0
        %v4681 = vmax.f32 %v4573, 0.0
        %v4682 = vmax.f32 %v4575, 0.0
        %v4683 = vmax.f32 %v4579, 0.0
        %v4684 = vmax.f32 %v4581, 0.0
        %v4685 = vmax.f32 %v4583, 0.0
        %v4686 = vmax.f32 %v4585, 0.0
        %v4687 = vmax.f32 %v4589, 0.0
        %v4688 = vmax.f32 %v4591, 0.0
        %v4689 = vmax.f32 %v4593, 0.0
        %v4690 = vmax.f32 %v4595, 0.0
        %v4691 = vmax.f32 %v4599, 0.0
        %v4692 = vmax.f32 %v4601, 0.0
        %v4693 = vmax.f32 %v4603, 0.0
        %v4694 = vmax.f32 %v4605, 0.0
        %v4695 = vmax.f32 %v4609, 0.0
        %v4696 = vmax.f32 %v4611, 0.0
        %v4697 = vmax.f32 %v4613, 0.0
        %v4698 = vmax.f32 %v4615, 0.0
        %v4699 = vmax.f32 %v4619, 0.0
        %v4700 = vmax.f32 %v4621, 0.0
        %v4701 = vmax.f32 %v4623, 0.0
        %v4702 = vmax.f32 %v4625, 0.0
        %v4703 = vmax.f32 %v4629, 0.0
        %v4704 = vmax.f32 %v4631, 0.0
        %v4705 = vmax.f32 %v4633, 0.0
        %v4706 = vmax.f32 %v4635, 0.0
        %v4707 = vmax.f32 %v4639, 0.0
        %v4708 = vmax.f32 %v4641, 0.0
        %v4709 = vmax.f32 %v4643, 0.0
        %v4710 = vmax.f32 %v4645, 0.0
        %v4711 = vpack.c.bf16 %v4649, %v4647
        %v4712 = vpack.c.bf16 %v4650, %v4648
        %v4713 = vpack.c.bf16 %v4653, %v4651
        %v4714 = vpack.c.bf16 %v4654, %v4652
        %v4715 = vpack.c.bf16 %v4657, %v4655
        %v4716 = vpack.c.bf16 %v4658, %v4656
        %v4717 = vpack.c.bf16 %v4661, %v4659
        %v4718 = vpack.c.bf16 %v4662, %v4660
        %v4719 = vpack.c.bf16 %v4665, %v4663
        %v4720 = vpack.c.bf16 %v4666, %v4664
        %v4721 = vpack.c.bf16 %v4669, %v4667
        %v4722 = vpack.c.bf16 %v4670, %v4668
        %v4723 = vpack.c.bf16 %v4673, %v4671
        %v4724 = vpack.c.bf16 %v4674, %v4672
        %v4725 = vpack.c.bf16 %v4677, %v4675
        %v4726 = vpack.c.bf16 %v4678, %v4676
        %v4727 = vpack.c.bf16 %v4681, %v4679
        %v4728 = vpack.c.bf16 %v4682, %v4680
        %v4729 = vpack.c.bf16 %v4685, %v4683
        %v4730 = vpack.c.bf16 %v4686, %v4684
        %v4731 = vpack.c.bf16 %v4689, %v4687
        %v4732 = vpack.c.bf16 %v4690, %v4688
        %v4733 = vpack.c.bf16 %v4693, %v4691
        %v4734 = vpack.c.bf16 %v4694, %v4692
        %v4735 = vpack.c.bf16 %v4697, %v4695
        %v4736 = vpack.c.bf16 %v4698, %v4696
        %v4737 = vpack.c.bf16 %v4701, %v4699
        %v4738 = vpack.c.bf16 %v4702, %v4700
        %v4739 = vpack.c.bf16 %v4705, %v4703
        %v4740 = vpack.c.bf16 %v4706, %v4704
        %v4741 = vpack.c.bf16 %v4709, %v4707
        %v4742 = vpack.c.bf16 %v4710, %v4708
        %v4743 = vld [vmem:[#allocation11] sm:$0xf]
        %v4744 = vld [vmem:[#allocation11 + $0x4] sm:$0xf]
        %v4745 = vld [vmem:[#allocation11 + $0x8] sm:$0xf]
        %v4746 = vld [vmem:[#allocation11 + $0xc] sm:$0xf]
        %v4747 = vld [vmem:[#allocation11 + $0x10] sm:$0xf]
        %v4748 = vld [vmem:[#allocation11 + $0x14] sm:$0xf]
        %v4749 = vld [vmem:[#allocation11 + $0x18] sm:$0xf]
        %v4750 = vld [vmem:[#allocation11 + $0x1c] sm:$0xf]
        %v4751 = vld [vmem:[#allocation11 + $0x20] sm:$0xf]
        %v4752 = vld [vmem:[#allocation11 + $0x24] sm:$0xf]
        %v4753 = vld [vmem:[#allocation11 + $0x28] sm:$0xf]
        %v4754 = vld [vmem:[#allocation11 + $0x2c] sm:$0xf]
        %v4755 = vld [vmem:[#allocation11 + $0x30] sm:$0xf]
        %v4756 = vld [vmem:[#allocation11 + $0x34] sm:$0xf]
        %v4757 = vld [vmem:[#allocation11 + $0x38] sm:$0xf]
        %v4758 = vld [vmem:[#allocation11 + $0x3c] sm:$0xf]
        %v4759 = vld [vmem:[#allocation11 + $0x40] sm:$0xf]
        %v4760 = vld [vmem:[#allocation11 + $0x44] sm:$0xf]
        %v4761 = vld [vmem:[#allocation11 + $0x48] sm:$0xf]
        %v4762 = vld [vmem:[#allocation11 + $0x4c] sm:$0xf]
        %v4763 = vld [vmem:[#allocation11 + $0x50] sm:$0xf]
        %v4764 = vld [vmem:[#allocation11 + $0x54] sm:$0xf]
        %v4765 = vld [vmem:[#allocation11 + $0x58] sm:$0xf]
        %v4766 = vld [vmem:[#allocation11 + $0x5c] sm:$0xf]
        %v4767 = vld [vmem:[#allocation11 + $0x60] sm:$0xf]
        %v4768 = vld [vmem:[#allocation11 + $0x64] sm:$0xf]
        %v4769 = vld [vmem:[#allocation11 + $0x68] sm:$0xf]
        %v4770 = vld [vmem:[#allocation11 + $0x6c] sm:$0xf]
        %v4771 = vld [vmem:[#allocation11 + $0x70] sm:$0xf]
        %v4772 = vld [vmem:[#allocation11 + $0x74] sm:$0xf]
        %v4773 = vld [vmem:[#allocation11 + $0x78] sm:$0xf]
        %v4774 = vld [vmem:[#allocation11 + $0x7c] sm:$0xf]
        %v4775 = vld [vmem:[#allocation13] sm:$0x1]
        %v4777 = vlaneseq
        %v4778 = vshrl.u32 %v4777, 7
        %v4779 = vsub.s32 0, %v4778
        %v4780 = vrot.slane %v4775, %v4779
        %v4814 = vunpack.c.l.b16 %v4743
        %v4815 = vunpack.c.l.b16 %v4744
        %v4816 = vunpack.c.l.b16 %v4745
        %v4817 = vunpack.c.l.b16 %v4746
        %v4818 = vunpack.c.l.b16 %v4747
        %v4819 = vunpack.c.l.b16 %v4748
        %v4820 = vunpack.c.l.b16 %v4749
        %v4821 = vunpack.c.l.b16 %v4750
        %v4822 = vunpack.c.l.b16 %v4751
        %v4823 = vunpack.c.l.b16 %v4752
        %v4824 = vunpack.c.l.b16 %v4753
        %v4825 = vunpack.c.l.b16 %v4754
        %v4826 = vunpack.c.l.b16 %v4755
        %v4827 = vunpack.c.l.b16 %v4756
        %v4828 = vunpack.c.l.b16 %v4757
        %v4829 = vunpack.c.l.b16 %v4758
        %v4830 = vunpack.c.l.b16 %v4759
        %v4831 = vunpack.c.l.b16 %v4760
        %v4832 = vunpack.c.l.b16 %v4761
        %v4833 = vunpack.c.l.b16 %v4762
        %v4834 = vunpack.c.l.b16 %v4763
        %v4835 = vunpack.c.l.b16 %v4764
        %v4836 = vunpack.c.l.b16 %v4765
        %v4837 = vunpack.c.l.b16 %v4766
        %v4838 = vunpack.c.l.b16 %v4767
        %v4839 = vunpack.c.l.b16 %v4768
        %v4840 = vunpack.c.l.b16 %v4769
        %v4841 = vunpack.c.l.b16 %v4770
        %v4842 = vunpack.c.l.b16 %v4771
        %v4843 = vunpack.c.l.b16 %v4772
        %v4844 = vunpack.c.l.b16 %v4773
        %v4845 = vunpack.c.l.b16 %v4774
        %v4846 = vpack.c.b16 %v4815, %v4814
        %v4847 = vpack.c.b16 %v4817, %v4816
        %v4848 = vpack.c.b16 %v4819, %v4818
        %v4849 = vpack.c.b16 %v4821, %v4820
        %v4850 = vpack.c.b16 %v4823, %v4822
        %v4851 = vpack.c.b16 %v4825, %v4824
        %v4852 = vpack.c.b16 %v4827, %v4826
        %v4853 = vpack.c.b16 %v4829, %v4828
        %v4854 = vpack.c.b16 %v4831, %v4830
        %v4855 = vpack.c.b16 %v4833, %v4832
        %v4856 = vpack.c.b16 %v4835, %v4834
        %v4857 = vpack.c.b16 %v4837, %v4836
        %v4858 = vpack.c.b16 %v4839, %v4838
        %v4859 = vpack.c.b16 %v4841, %v4840
        %v4860 = vpack.c.b16 %v4843, %v4842
        %v4861 = vpack.c.b16 %v4845, %v4844
        %4878 = vmatprep.subr.bf16.mxu0 0
        %4879 = vmatpush1.bf16.msra.mxu0 %v4846
        %4880 = vmatprep.subr.bf16.mxu0 0
        %4881 = vmatpush1.bf16.msra.mxu0 %v4847
        %4882 = vmatprep.subr.bf16.mxu0 0
        %4883 = vmatpush1.bf16.msra.mxu0 %v4848
        %4884 = vmatprep.subr.bf16.mxu0 0
        %4885 = vmatpush1.bf16.msra.mxu0 %v4849
        %4886 = vmatprep.subr.bf16.mxu0 0
        %4887 = vmatpush1.bf16.msra.mxu0 %v4850
        %4888 = vmatprep.subr.bf16.mxu0 0
        %4889 = vmatpush1.bf16.msra.mxu0 %v4851
        %4890 = vmatprep.subr.bf16.mxu0 0
        %4891 = vmatpush1.bf16.msra.mxu0 %v4852
        %4892 = vmatprep.subr.bf16.mxu0 0
        %4893 = vmatpush1.bf16.msra.mxu0 %v4853
        %4894 = vmatprep.subr.bf16.mxu0 0
        %4895 = vmatpush1.bf16.msra.mxu0 %v4854
        %4896 = vmatprep.subr.bf16.mxu0 0
        %4897 = vmatpush1.bf16.msra.mxu0 %v4855
        %4898 = vmatprep.subr.bf16.mxu0 0
        %4899 = vmatpush1.bf16.msra.mxu0 %v4856
        %4900 = vmatprep.subr.bf16.mxu0 0
        %4901 = vmatpush1.bf16.msra.mxu0 %v4857
        %4902 = vmatprep.subr.bf16.mxu0 0
        %4903 = vmatpush1.bf16.msra.mxu0 %v4858
        %4904 = vmatprep.subr.bf16.mxu0 0
        %4905 = vmatpush1.bf16.msra.mxu0 %v4859
        %4906 = vmatprep.subr.bf16.mxu0 0
        %4907 = vmatpush1.bf16.msra.mxu0 %v4860
        %4908 = vmatprep.subr.bf16.mxu0 0
        %4909 = vmatpush1.bf16.msra.mxu0 %v4861
        %4910 = vmatprep.mubr.bf16.mxu0 %v4712
        %4911 = vmatmul.mubr.bf16.gmra.mrb[0].mxu0 %v4711
        %v4912 = vpop.f32.mrb[0].mxu0
        %v4913 = vadd.f32 %v4780, %v4912
        %v4914 = vpop.f32.mrb[0].mxu0
        %v4915 = vpop.f32.mrb[0].mxu0
        %v4916 = vadd.f32 %v4780, %v4915
        %v4917 = vpop.f32.mrb[0].mxu0
        %4918 = vmatprep.mubr.bf16.mxu0 %v4714
        %4919 = vmatmul.mubr.bf16.gmra.mrb[0].mxu0 %v4713
        %v4920 = vpop.f32.mrb[0].mxu0
        %v4921 = vadd.f32 %v4780, %v4920
        %v4922 = vpop.f32.mrb[0].mxu0
        %v4923 = vpop.f32.mrb[0].mxu0
        %v4924 = vadd.f32 %v4780, %v4923
        %v4925 = vpop.f32.mrb[0].mxu0
        %4926 = vmatprep.mubr.bf16.mxu0 %v4716
        %4927 = vmatmul.mubr.bf16.gmra.mrb[0].mxu0 %v4715
        %v4928 = vpop.f32.mrb[0].mxu0
        %v4929 = vadd.f32 %v4780, %v4928
        %v4930 = vpop.f32.mrb[0].mxu0
        %v4931 = vpop.f32.mrb[0].mxu0
        %v4932 = vadd.f32 %v4780, %v4931
        %v4933 = vpop.f32.mrb[0].mxu0
        %4934 = vmatprep.mubr.bf16.mxu0 %v4718
        %4935 = vmatmul.mubr.bf16.gmra.mrb[0].mxu0 %v4717
        %v4936 = vpop.f32.mrb[0].mxu0
        %v4937 = vadd.f32 %v4780, %v4936
        %v4938 = vpop.f32.mrb[0].mxu0
        %v4939 = vpop.f32.mrb[0].mxu0
        %v4940 = vadd.f32 %v4780, %v4939
        %v4941 = vpop.f32.mrb[0].mxu0
        %4942 = vmatprep.mubr.bf16.mxu0 %v4720
        %4943 = vmatmul.mubr.bf16.gmra.mrb[0].mxu0 %v4719
        %v4944 = vpop.f32.mrb[0].mxu0
        %v4945 = vadd.f32 %v4780, %v4944
        %v4946 = vpop.f32.mrb[0].mxu0
        %v4947 = vpop.f32.mrb[0].mxu0
        %v4948 = vadd.f32 %v4780, %v4947
        %v4949 = vpop.f32.mrb[0].mxu0
        %4950 = vmatprep.mubr.bf16.mxu0 %v4722
        %4951 = vmatmul.mubr.bf16.gmra.mrb[0].mxu0 %v4721
        %v4952 = vpop.f32.mrb[0].mxu0
        %v4953 = vadd.f32 %v4780, %v4952
        %v4954 = vpop.f32.mrb[0].mxu0
        %v4955 = vpop.f32.mrb[0].mxu0
        %v4956 = vadd.f32 %v4780, %v4955
        %v4957 = vpop.f32.mrb[0].mxu0
        %4958 = vmatprep.mubr.bf16.mxu0 %v4724
        %4959 = vmatmul.mubr.bf16.gmra.mrb[0].mxu0 %v4723
        %v4960 = vpop.f32.mrb[0].mxu0
        %v4961 = vadd.f32 %v4780, %v4960
        %v4962 = vpop.f32.mrb[0].mxu0
        %v4963 = vpop.f32.mrb[0].mxu0
        %v4964 = vadd.f32 %v4780, %v4963
        %v4965 = vpop.f32.mrb[0].mxu0
        %4966 = vmatprep.mubr.bf16.mxu0 %v4726
        %4967 = vmatmul.mubr.bf16.gmra.mrb[0].mxu0 %v4725
        %v4968 = vpop.f32.mrb[0].mxu0
        %v4969 = vadd.f32 %v4780, %v4968
        %v4970 = vpop.f32.mrb[0].mxu0
        %v4971 = vpop.f32.mrb[0].mxu0
        %v4972 = vadd.f32 %v4780, %v4971
        %v4973 = vpop.f32.mrb[0].mxu0
        %4974 = vmatprep.mubr.bf16.mxu0 %v4728
        %4975 = vmatmul.mubr.bf16.gmra.mrb[0].mxu0 %v4727
        %v4976 = vpop.f32.mrb[0].mxu0
        %v4977 = vadd.f32 %v4780, %v4976
        %v4978 = vpop.f32.mrb[0].mxu0
        %v4979 = vpop.f32.mrb[0].mxu0
        %v4980 = vadd.f32 %v4780, %v4979
        %v4981 = vpop.f32.mrb[0].mxu0
        %4982 = vmatprep.mubr.bf16.mxu0 %v4730
        %4983 = vmatmul.mubr.bf16.gmra.mrb[0].mxu0 %v4729
        %v4984 = vpop.f32.mrb[0].mxu0
        %v4985 = vadd.f32 %v4780, %v4984
        %v4986 = vpop.f32.mrb[0].mxu0
        %v4987 = vpop.f32.mrb[0].mxu0
        %v4988 = vadd.f32 %v4780, %v4987
        %v4989 = vpop.f32.mrb[0].mxu0
        %4990 = vmatprep.mubr.bf16.mxu0 %v4732
        %4991 = vmatmul.mubr.bf16.gmra.mrb[0].mxu0 %v4731
        %v4992 = vpop.f32.mrb[0].mxu0
        %v4993 = vadd.f32 %v4780, %v4992
        %v4994 = vpop.f32.mrb[0].mxu0
        %v4995 = vpop.f32.mrb[0].mxu0
        %v4996 = vadd.f32 %v4780, %v4995
        %v4997 = vpop.f32.mrb[0].mxu0
        %4998 = vmatprep.mubr.bf16.mxu0 %v4734
        %4999 = vmatmul.mubr.bf16.gmra.mrb[0].mxu0 %v4733
        %v5000 = vpop.f32.mrb[0].mxu0
        %v5001 = vadd.f32 %v4780, %v5000
        %v5002 = vpop.f32.mrb[0].mxu0
        %v5003 = vpop.f32.mrb[0].mxu0
        %v5004 = vadd.f32 %v4780, %v5003
        %v5005 = vpop.f32.mrb[0].mxu0
        %5006 = vmatprep.mubr.bf16.mxu0 %v4736
        %5007 = vmatmul.mubr.bf16.gmra.mrb[0].mxu0 %v4735
        %v5008 = vpop.f32.mrb[0].mxu0
        %v5009 = vadd.f32 %v4780, %v5008
        %v5010 = vpop.f32.mrb[0].mxu0
        %v5011 = vpop.f32.mrb[0].mxu0
        %v5012 = vadd.f32 %v4780, %v5011
        %v5013 = vpop.f32.mrb[0].mxu0
        %5014 = vmatprep.mubr.bf16.mxu0 %v4738
        %5015 = vmatmul.mubr.bf16.gmra.mrb[0].mxu0 %v4737
        %v5016 = vpop.f32.mrb[0].mxu0
        %v5017 = vadd.f32 %v4780, %v5016
        %v5018 = vpop.f32.mrb[0].mxu0
        %v5019 = vpop.f32.mrb[0].mxu0
        %v5020 = vadd.f32 %v4780, %v5019
        %v5021 = vpop.f32.mrb[0].mxu0
        %5022 = vmatprep.mubr.bf16.mxu0 %v4740
        %5023 = vmatmul.mubr.bf16.gmra.mrb[0].mxu0 %v4739
        %v5024 = vpop.f32.mrb[0].mxu0
        %v5025 = vadd.f32 %v4780, %v5024
        %v5026 = vpop.f32.mrb[0].mxu0
        %v5027 = vpop.f32.mrb[0].mxu0
        %v5028 = vadd.f32 %v4780, %v5027
        %v5029 = vpop.f32.mrb[0].mxu0
        %5030 = vmatprep.mubr.bf16.mxu0 %v4742
        %5031 = vmatmul.mubr.bf16.gmra.mrb[0].mxu0 %v4741
        %v5032 = vpop.f32.mrb[0].mxu0
        %v5033 = vadd.f32 %v4780, %v5032
        %v5034 = vpop.f32.mrb[0].mxu0
        %v5035 = vpop.f32.mrb[0].mxu0
        %v5036 = vadd.f32 %v4780, %v5035
        %v5037 = vpop.f32.mrb[0].mxu0
        %5038 = vdwg.mxu0
        %v5039 = vmax.f32 %v4913, 0.0
        %v5040 = vmax.f32 %v4916, 0.0
        %v5041 = vmax.f32 %v4921, 0.0
        %v5042 = vmax.f32 %v4924, 0.0
        %v5043 = vmax.f32 %v4929, 0.0
        %v5044 = vmax.f32 %v4932, 0.0
        %v5045 = vmax.f32 %v4937, 0.0
        %v5046 = vmax.f32 %v4940, 0.0
        %v5047 = vmax.f32 %v4945, 0.0
        %v5048 = vmax.f32 %v4948, 0.0
        %v5049 = vmax.f32 %v4953, 0.0
        %v5050 = vmax.f32 %v4956, 0.0
        %v5051 = vmax.f32 %v4961, 0.0
        %v5052 = vmax.f32 %v4964, 0.0
        %v5053 = vmax.f32 %v4969, 0.0
        %v5054 = vmax.f32 %v4972, 0.0
        %v5055 = vmax.f32 %v4977, 0.0
        %v5056 = vmax.f32 %v4980, 0.0
        %v5057 = vmax.f32 %v4985, 0.0
        %v5058 = vmax.f32 %v4988, 0.0
        %v5059 = vmax.f32 %v4993, 0.0
        %v5060 = vmax.f32 %v4996, 0.0
        %v5061 = vmax.f32 %v5001, 0.0
        %v5062 = vmax.f32 %v5004, 0.0
        %v5063 = vmax.f32 %v5009, 0.0
        %v5064 = vmax.f32 %v5012, 0.0
        %v5065 = vmax.f32 %v5017, 0.0
        %v5066 = vmax.f32 %v5020, 0.0
        %v5067 = vmax.f32 %v5025, 0.0
        %v5068 = vmax.f32 %v5028, 0.0
        %v5069 = vmax.f32 %v5033, 0.0
        %v5070 = vmax.f32 %v5036, 0.0
        %v5071 = vpack.c.bf16 %v5040, %v5039
        %v5072 = vpack.c.bf16 %v5042, %v5041
        %v5073 = vpack.c.bf16 %v5044, %v5043
        %v5074 = vpack.c.bf16 %v5046, %v5045
        %v5075 = vpack.c.bf16 %v5048, %v5047
        %v5076 = vpack.c.bf16 %v5050, %v5049
        %v5077 = vpack.c.bf16 %v5052, %v5051
        %v5078 = vpack.c.bf16 %v5054, %v5053
        %v5079 = vpack.c.bf16 %v5056, %v5055
        %v5080 = vpack.c.bf16 %v5058, %v5057
        %v5081 = vpack.c.bf16 %v5060, %v5059
        %v5082 = vpack.c.bf16 %v5062, %v5061
        %v5083 = vpack.c.bf16 %v5064, %v5063
        %v5084 = vpack.c.bf16 %v5066, %v5065
        %v5085 = vpack.c.bf16 %v5068, %v5067
        %v5086 = vpack.c.bf16 %v5070, %v5069
        %v5087 = vld [vmem:[%s7] sm:$0xf]
        %v5088 = vld [vmem:[%s7 + $0x4] sm:$0xf]
        %v5089 = vld [vmem:[%s7 + $0x8] sm:$0xf]
        %v5090 = vld [vmem:[%s7 + $0xc] sm:$0xf]
        %v5091 = vld [vmem:[%s7 + $0x10] sm:$0xf]
        %v5092 = vld [vmem:[%s7 + $0x14] sm:$0xf]
        %v5093 = vld [vmem:[%s7 + $0x18] sm:$0xf]
        %v5094 = vld [vmem:[%s7 + $0x1c] sm:$0xf]
        %v5095 = vld [vmem:[%s7 + $0x20] sm:$0xf]
        %v5096 = vld [vmem:[%s7 + $0x24] sm:$0xf]
        %v5097 = vld [vmem:[%s7 + $0x28] sm:$0xf]
        %v5098 = vld [vmem:[%s7 + $0x2c] sm:$0xf]
        %v5099 = vld [vmem:[%s7 + $0x30] sm:$0xf]
        %v5100 = vld [vmem:[%s7 + $0x34] sm:$0xf]
        %v5101 = vld [vmem:[%s7 + $0x38] sm:$0xf]
        %v5102 = vld [vmem:[%s7 + $0x3c] sm:$0xf]
        %v5103 = vld [vmem:[#allocation14] sm:$0x1]
        %v5105 = vlaneseq
        %v5106 = vshrl.u32 %v5105, 7
        %v5107 = vsub.s32 0, %v5106
        %v5108 = vrot.slane %v5103, %v5107
        %v5126 = vunpack.c.l.b16 %v5087
        %v5127 = vunpack.c.l.b16 %v5088
        %v5128 = vunpack.c.l.b16 %v5089
        %v5129 = vunpack.c.l.b16 %v5090
        %v5130 = vunpack.c.l.b16 %v5091
        %v5131 = vunpack.c.l.b16 %v5092
        %v5132 = vunpack.c.l.b16 %v5093
        %v5133 = vunpack.c.l.b16 %v5094
        %v5134 = vunpack.c.l.b16 %v5095
        %v5135 = vunpack.c.l.b16 %v5096
        %v5136 = vunpack.c.l.b16 %v5097
        %v5137 = vunpack.c.l.b16 %v5098
        %v5138 = vunpack.c.l.b16 %v5099
        %v5139 = vunpack.c.l.b16 %v5100
        %v5140 = vunpack.c.l.b16 %v5101
        %v5141 = vunpack.c.l.b16 %v5102
        %v5142 = vpack.c.b16 %v5127, %v5126
        %v5143 = vpack.c.b16 %v5129, %v5128
        %v5144 = vpack.c.b16 %v5131, %v5130
        %v5145 = vpack.c.b16 %v5133, %v5132
        %v5146 = vpack.c.b16 %v5135, %v5134
        %v5147 = vpack.c.b16 %v5137, %v5136
        %v5148 = vpack.c.b16 %v5139, %v5138
        %v5149 = vpack.c.b16 %v5141, %v5140
        %5158 = vmatprep.subr.bf16.mxu0 0
        %5159 = vmatpush1.bf16.msra.mxu0 %v5142
        %5160 = vmatprep.subr.bf16.mxu0 0
        %5161 = vmatpush1.bf16.msra.mxu0 %v5143
        %5162 = vmatprep.subr.bf16.mxu0 0
        %5163 = vmatpush1.bf16.msra.mxu0 %v5144
        %5164 = vmatprep.subr.bf16.mxu0 0
        %5165 = vmatpush1.bf16.msra.mxu0 %v5145
        %5166 = vmatprep.subr.bf16.mxu0 0
        %5167 = vmatpush1.bf16.msra.mxu0 %v5146
        %5168 = vmatprep.subr.bf16.mxu0 0
        %5169 = vmatpush1.bf16.msra.mxu0 %v5147
        %5170 = vmatprep.subr.bf16.mxu0 0
        %5171 = vmatpush1.bf16.msra.mxu0 %v5148
        %5172 = vmatprep.subr.bf16.mxu0 0
        %5173 = vmatpush1.bf16.msra.mxu0 %v5149
        %5174 = vmatprep.subr.bf16.mxu0 0
        %5175 = vmatpush1.bf16.msra.mxu0 0
        %5176 = vmatprep.subr.bf16.mxu0 0
        %5177 = vmatpush1.bf16.msra.mxu0 0
        %5178 = vmatprep.subr.bf16.mxu0 0
        %5179 = vmatpush1.bf16.msra.mxu0 0
        %5180 = vmatprep.subr.bf16.mxu0 0
        %5181 = vmatpush1.bf16.msra.mxu0 0
        %5182 = vmatprep.subr.bf16.mxu0 0
        %5183 = vmatpush1.bf16.msra.mxu0 0
        %5184 = vmatprep.subr.bf16.mxu0 0
        %5185 = vmatpush1.bf16.msra.mxu0 0
        %5186 = vmatprep.subr.bf16.mxu0 0
        %5187 = vmatpush1.bf16.msra.mxu0 0
        %5188 = vmatprep.subr.bf16.mxu0 0
        %5189 = vmatpush1.bf16.msra.mxu0 0
        %5190 = vmatprep.mubr.bf16.mxu0 0
        %5191 = vmatmul.mubr.bf16.gmra.mrb[0].mxu0 %v5071
        %v5192 = vpop.f32.mrb[0].mxu0
        %v5193 = vadd.f32 %v5108, %v5192
        %v5194 = vpop.f32.mrb[0].mxu0
        %v5195 = vpop.f32.mrb[0].mxu0
        %v5196 = vadd.f32 %v5108, %v5195
        %v5197 = vpop.f32.mrb[0].mxu0
        %5198 = vmatprep.mubr.bf16.mxu0 0
        %5199 = vmatmul.mubr.bf16.gmra.mrb[0].mxu0 %v5072
        %v5200 = vpop.f32.mrb[0].mxu0
        %v5201 = vadd.f32 %v5108, %v5200
        %v5202 = vpop.f32.mrb[0].mxu0
        %v5203 = vpop.f32.mrb[0].mxu0
        %v5204 = vadd.f32 %v5108, %v5203
        %v5205 = vpop.f32.mrb[0].mxu0
        %5206 = vmatprep.mubr.bf16.mxu0 0
        %5207 = vmatmul.mubr.bf16.gmra.mrb[0].mxu0 %v5073
        %v5208 = vpop.f32.mrb[0].mxu0
        %v5209 = vadd.f32 %v5108, %v5208
        %v5210 = vpop.f32.mrb[0].mxu0
        %v5211 = vpop.f32.mrb[0].mxu0
        %v5212 = vadd.f32 %v5108, %v5211
        %v5213 = vpop.f32.mrb[0].mxu0
        %5214 = vmatprep.mubr.bf16.mxu0 0
        %5215 = vmatmul.mubr.bf16.gmra.mrb[0].mxu0 %v5074
        %v5216 = vpop.f32.mrb[0].mxu0
        %v5217 = vadd.f32 %v5108, %v5216
        %v5218 = vpop.f32.mrb[0].mxu0
        %v5219 = vpop.f32.mrb[0].mxu0
        %v5220 = vadd.f32 %v5108, %v5219
        %v5221 = vpop.f32.mrb[0].mxu0
        %5222 = vmatprep.mubr.bf16.mxu0 0
        %5223 = vmatmul.mubr.bf16.gmra.mrb[0].mxu0 %v5075
        %v5224 = vpop.f32.mrb[0].mxu0
        %v5225 = vadd.f32 %v5108, %v5224
        %v5226 = vpop.f32.mrb[0].mxu0
        %v5227 = vpop.f32.mrb[0].mxu0
        %v5228 = vadd.f32 %v5108, %v5227
        %v5229 = vpop.f32.mrb[0].mxu0
        %5230 = vmatprep.mubr.bf16.mxu0 0
        %5231 = vmatmul.mubr.bf16.gmra.mrb[0].mxu0 %v5076
        %v5232 = vpop.f32.mrb[0].mxu0
        %v5233 = vadd.f32 %v5108, %v5232
        %v5234 = vpop.f32.mrb[0].mxu0
        %v5235 = vpop.f32.mrb[0].mxu0
        %v5236 = vadd.f32 %v5108, %v5235
        %v5237 = vpop.f32.mrb[0].mxu0
        %5238 = vmatprep.mubr.bf16.mxu0 0
        %5239 = vmatmul.mubr.bf16.gmra.mrb[0].mxu0 %v5077
        %v5240 = vpop.f32.mrb[0].mxu0
        %v5241 = vadd.f32 %v5108, %v5240
        %v5242 = vpop.f32.mrb[0].mxu0
        %v5243 = vpop.f32.mrb[0].mxu0
        %v5244 = vadd.f32 %v5108, %v5243
        %v5245 = vpop.f32.mrb[0].mxu0
        %5246 = vmatprep.mubr.bf16.mxu0 0
        %5247 = vmatmul.mubr.bf16.gmra.mrb[0].mxu0 %v5078
        %v5248 = vpop.f32.mrb[0].mxu0
        %v5249 = vadd.f32 %v5108, %v5248
        %v5250 = vpop.f32.mrb[0].mxu0
        %v5251 = vpop.f32.mrb[0].mxu0
        %v5252 = vadd.f32 %v5108, %v5251
        %v5253 = vpop.f32.mrb[0].mxu0
        %5254 = vmatprep.mubr.bf16.mxu0 0
        %5255 = vmatmul.mubr.bf16.gmra.mrb[0].mxu0 %v5079
        %v5256 = vpop.f32.mrb[0].mxu0
        %v5257 = vadd.f32 %v5108, %v5256
        %v5258 = vpop.f32.mrb[0].mxu0
        %v5259 = vpop.f32.mrb[0].mxu0
        %v5260 = vadd.f32 %v5108, %v5259
        %v5261 = vpop.f32.mrb[0].mxu0
        %5262 = vmatprep.mubr.bf16.mxu0 0
        %5263 = vmatmul.mubr.bf16.gmra.mrb[0].mxu0 %v5080
        %v5264 = vpop.f32.mrb[0].mxu0
        %v5265 = vadd.f32 %v5108, %v5264
        %v5266 = vpop.f32.mrb[0].mxu0
        %v5267 = vpop.f32.mrb[0].mxu0
        %v5268 = vadd.f32 %v5108, %v5267
        %v5269 = vpop.f32.mrb[0].mxu0
        %5270 = vmatprep.mubr.bf16.mxu0 0
        %5271 = vmatmul.mubr.bf16.gmra.mrb[0].mxu0 %v5081
        %v5272 = vpop.f32.mrb[0].mxu0
        %v5273 = vadd.f32 %v5108, %v5272
        %v5274 = vpop.f32.mrb[0].mxu0
        %v5275 = vpop.f32.mrb[0].mxu0
        %v5276 = vadd.f32 %v5108, %v5275
        %v5277 = vpop.f32.mrb[0].mxu0
        %5278 = vmatprep.mubr.bf16.mxu0 0
        %5279 = vmatmul.mubr.bf16.gmra.mrb[0].mxu0 %v5082
        %v5280 = vpop.f32.mrb[0].mxu0
        %v5281 = vadd.f32 %v5108, %v5280
        %v5282 = vpop.f32.mrb[0].mxu0
        %v5283 = vpop.f32.mrb[0].mxu0
        %v5284 = vadd.f32 %v5108, %v5283
        %v5285 = vpop.f32.mrb[0].mxu0
        %5286 = vmatprep.mubr.bf16.mxu0 0
        %5287 = vmatmul.mubr.bf16.gmra.mrb[0].mxu0 %v5083
        %v5288 = vpop.f32.mrb[0].mxu0
        %v5289 = vadd.f32 %v5108, %v5288
        %v5290 = vpop.f32.mrb[0].mxu0
        %v5291 = vpop.f32.mrb[0].mxu0
        %v5292 = vadd.f32 %v5108, %v5291
        %v5293 = vpop.f32.mrb[0].mxu0
        %5294 = vmatprep.mubr.bf16.mxu0 0
        %5295 = vmatmul.mubr.bf16.gmra.mrb[0].mxu0 %v5084
        %v5296 = vpop.f32.mrb[0].mxu0
        %v5297 = vadd.f32 %v5108, %v5296
        %v5298 = vpop.f32.mrb[0].mxu0
        %v5299 = vpop.f32.mrb[0].mxu0
        %v5300 = vadd.f32 %v5108, %v5299
        %v5301 = vpop.f32.mrb[0].mxu0
        %5302 = vmatprep.mubr.bf16.mxu0 0
        %5303 = vmatmul.mubr.bf16.gmra.mrb[0].mxu0 %v5085
        %v5304 = vpop.f32.mrb[0].mxu0
        %v5305 = vadd.f32 %v5108, %v5304
        %v5306 = vpop.f32.mrb[0].mxu0
        %v5307 = vpop.f32.mrb[0].mxu0
        %v5308 = vadd.f32 %v5108, %v5307
        %v5309 = vpop.f32.mrb[0].mxu0
        %5310 = vmatprep.mubr.bf16.mxu0 0
        %5311 = vmatmul.mubr.bf16.gmra.mrb[0].mxu0 %v5086
        %v5312 = vpop.f32.mrb[0].mxu0
        %v5313 = vadd.f32 %v5108, %v5312
        %v5314 = vpop.f32.mrb[0].mxu0
        %v5315 = vpop.f32.mrb[0].mxu0
        %v5316 = vadd.f32 %v5108, %v5315
        %v5317 = vpop.f32.mrb[0].mxu0
        %5318 = vdwg.mxu0
        %v5319 = vmax.f32 %v5193, 0.0
        %v5320 = vmax.f32 %v5196, 0.0
        %v5321 = vmax.f32 %v5201, 0.0
        %v5322 = vmax.f32 %v5204, 0.0
        %v5323 = vmax.f32 %v5209, 0.0
        %v5324 = vmax.f32 %v5212, 0.0
        %v5325 = vmax.f32 %v5217, 0.0
        %v5326 = vmax.f32 %v5220, 0.0
        %v5327 = vmax.f32 %v5225, 0.0
        %v5328 = vmax.f32 %v5228, 0.0
        %v5329 = vmax.f32 %v5233, 0.0
        %v5330 = vmax.f32 %v5236, 0.0
        %v5331 = vmax.f32 %v5241, 0.0
        %v5332 = vmax.f32 %v5244, 0.0
        %v5333 = vmax.f32 %v5249, 0.0
        %v5334 = vmax.f32 %v5252, 0.0
        %v5335 = vmax.f32 %v5257, 0.0
        %v5336 = vmax.f32 %v5260, 0.0
        %v5337 = vmax.f32 %v5265, 0.0
        %v5338 = vmax.f32 %v5268, 0.0
        %v5339 = vmax.f32 %v5273, 0.0
        %v5340 = vmax.f32 %v5276, 0.0
        %v5341 = vmax.f32 %v5281, 0.0
        %v5342 = vmax.f32 %v5284, 0.0
        %v5343 = vmax.f32 %v5289, 0.0
        %v5344 = vmax.f32 %v5292, 0.0
        %v5345 = vmax.f32 %v5297, 0.0
        %v5346 = vmax.f32 %v5300, 0.0
        %v5347 = vmax.f32 %v5305, 0.0
        %v5348 = vmax.f32 %v5308, 0.0
        %v5349 = vmax.f32 %v5313, 0.0
        %v5350 = vmax.f32 %v5316, 0.0
        %v5351 = vpack.c.bf16 %v5320, %v5319
        %v5352 = vpack.c.bf16 %v5322, %v5321
        %v5353 = vpack.c.bf16 %v5324, %v5323
        %v5354 = vpack.c.bf16 %v5326, %v5325
        %v5355 = vpack.c.bf16 %v5328, %v5327
        %v5356 = vpack.c.bf16 %v5330, %v5329
        %v5357 = vpack.c.bf16 %v5332, %v5331
        %v5358 = vpack.c.bf16 %v5334, %v5333
        %v5359 = vpack.c.bf16 %v5336, %v5335
        %v5360 = vpack.c.bf16 %v5338, %v5337
        %v5361 = vpack.c.bf16 %v5340, %v5339
        %v5362 = vpack.c.bf16 %v5342, %v5341
        %v5363 = vpack.c.bf16 %v5344, %v5343
        %v5364 = vpack.c.bf16 %v5346, %v5345
        %v5365 = vpack.c.bf16 %v5348, %v5347
        %v5366 = vpack.c.bf16 %v5350, %v5349
        %v5367 = vld [vmem:[#allocation16] sm:$0xf]
        %v5368 = vld [vmem:[#allocation16 + $0x4] sm:$0xf]
        %v5369 = vld [vmem:[#allocation16 + $0x8] sm:$0xf]
        %v5370 = vld [vmem:[#allocation16 + $0xc] sm:$0xf]
        %v5371 = vld [vmem:[#allocation16 + $0x10] sm:$0xf]
        %v5372 = vld [vmem:[#allocation16 + $0x14] sm:$0xf]
        %v5373 = vld [vmem:[#allocation16 + $0x18] sm:$0xf]
        %v5374 = vld [vmem:[#allocation16 + $0x1c] sm:$0xf]
        %v5375 = vld [vmem:[#allocation17] sm:$0x1]
        %v5377 = vlaneseq
        %v5378 = vshrl.u32 %v5377, 7
        %v5379 = vsub.s32 0, %v5378
        %v5380 = vrot.slane %v5375, %v5379
        %v5390 = vunpack.c.l.b16 %v5367
        %v5391 = vunpack.c.l.b16 %v5368
        %v5392 = vunpack.c.l.b16 %v5369
        %v5393 = vunpack.c.l.b16 %v5370
        %v5394 = vunpack.c.l.b16 %v5371
        %v5395 = vunpack.c.l.b16 %v5372
        %v5396 = vunpack.c.l.b16 %v5373
        %v5397 = vunpack.c.l.b16 %v5374
        %v5398 = vpack.c.b16 %v5391, %v5390
        %v5399 = vpack.c.b16 %v5393, %v5392
        %v5400 = vpack.c.b16 %v5395, %v5394
        %v5401 = vpack.c.b16 %v5397, %v5396
        %vm5406 = vcmask 523264
        %v5408 = vsel %vm5406, %v5351, 0
        %v5411 = vsel %vm5406, %v5352, 0
        %v5414 = vsel %vm5406, %v5353, 0
        %v5417 = vsel %vm5406, %v5354, 0
        %v5420 = vsel %vm5406, %v5355, 0
        %v5423 = vsel %vm5406, %v5356, 0
        %v5426 = vsel %vm5406, %v5357, 0
        %v5429 = vsel %vm5406, %v5358, 0
        %v5432 = vsel %vm5406, %v5359, 0
        %v5435 = vsel %vm5406, %v5360, 0
        %v5438 = vsel %vm5406, %v5361, 0
        %v5441 = vsel %vm5406, %v5362, 0
        %v5444 = vsel %vm5406, %v5363, 0
        %v5447 = vsel %vm5406, %v5364, 0
        %v5450 = vsel %vm5406, %v5365, 0
        %v5453 = vsel %vm5406, %v5366, 0
        %5455 = vmatprep.subr.bf16.mxu0 0
        %5456 = vmatpush1.bf16.msra.mxu0 %v5398
        %5457 = vmatprep.subr.bf16.mxu0 0
        %5458 = vmatpush1.bf16.msra.mxu0 %v5399
        %5459 = vmatprep.subr.bf16.mxu0 0
        %5460 = vmatpush1.bf16.msra.mxu0 %v5400
        %5461 = vmatprep.subr.bf16.mxu0 0
        %5462 = vmatpush1.bf16.msra.mxu0 %v5401
        %5463 = vmatprep.subr.bf16.mxu0 0
        %5464 = vmatpush1.bf16.msra.mxu0 0
        %5465 = vmatprep.subr.bf16.mxu0 0
        %5466 = vmatpush1.bf16.msra.mxu0 0
        %5467 = vmatprep.subr.bf16.mxu0 0
        %5468 = vmatpush1.bf16.msra.mxu0 0
        %5469 = vmatprep.subr.bf16.mxu0 0
        %5470 = vmatpush1.bf16.msra.mxu0 0
        %5471 = vmatprep.subr.bf16.mxu0 0
        %5472 = vmatpush1.bf16.msra.mxu0 0
        %5473 = vmatprep.subr.bf16.mxu0 0
        %5474 = vmatpush1.bf16.msra.mxu0 0
        %5475 = vmatprep.subr.bf16.mxu0 0
        %5476 = vmatpush1.bf16.msra.mxu0 0
        %5477 = vmatprep.subr.bf16.mxu0 0
        %5478 = vmatpush1.bf16.msra.mxu0 0
        %5479 = vmatprep.subr.bf16.mxu0 0
        %5480 = vmatpush1.bf16.msra.mxu0 0
        %5481 = vmatprep.subr.bf16.mxu0 0
        %5482 = vmatpush1.bf16.msra.mxu0 0
        %5483 = vmatprep.subr.bf16.mxu0 0
        %5484 = vmatpush1.bf16.msra.mxu0 0
        %5485 = vmatprep.subr.bf16.mxu0 0
        %5486 = vmatpush1.bf16.msra.mxu0 0
        %5487 = vmatprep.mubr.bf16.mxu0 0
        %5488 = vmatmul.mubr.bf16.gmra.mrb[0].mxu0 %v5408
        %v5489 = vpop.f32.mrb[0].mxu0
        %v5490 = vadd.f32 %v5380, %v5489
        %v5491 = vpop.f32.mrb[0].mxu0
        %v5492 = vpop.f32.mrb[0].mxu0
        %v5493 = vadd.f32 %v5380, %v5492
        %v5494 = vpop.f32.mrb[0].mxu0
        %5495 = vmatprep.mubr.bf16.mxu0 0
        %5496 = vmatmul.mubr.bf16.gmra.mrb[0].mxu0 %v5411
        %v5497 = vpop.f32.mrb[0].mxu0
        %v5498 = vadd.f32 %v5380, %v5497
        %v5499 = vpop.f32.mrb[0].mxu0
        %v5500 = vpop.f32.mrb[0].mxu0
        %v5501 = vadd.f32 %v5380, %v5500
        %v5502 = vpop.f32.mrb[0].mxu0
        %5503 = vmatprep.mubr.bf16.mxu0 0
        %5504 = vmatmul.mubr.bf16.gmra.mrb[0].mxu0 %v5414
        %v5505 = vpop.f32.mrb[0].mxu0
        %v5506 = vadd.f32 %v5380, %v5505
        %v5507 = vpop.f32.mrb[0].mxu0
        %v5508 = vpop.f32.mrb[0].mxu0
        %v5509 = vadd.f32 %v5380, %v5508
        %v5510 = vpop.f32.mrb[0].mxu0
        %5511 = vmatprep.mubr.bf16.mxu0 0
        %5512 = vmatmul.mubr.bf16.gmra.mrb[0].mxu0 %v5417
        %v5513 = vpop.f32.mrb[0].mxu0
        %v5514 = vadd.f32 %v5380, %v5513
        %v5515 = vpop.f32.mrb[0].mxu0
        %v5516 = vpop.f32.mrb[0].mxu0
        %v5517 = vadd.f32 %v5380, %v5516
        %v5518 = vpop.f32.mrb[0].mxu0
        %5519 = vmatprep.mubr.bf16.mxu0 0
        %5520 = vmatmul.mubr.bf16.gmra.mrb[0].mxu0 %v5420
        %v5521 = vpop.f32.mrb[0].mxu0
        %v5522 = vadd.f32 %v5380, %v5521
        %v5523 = vpop.f32.mrb[0].mxu0
        %v5524 = vpop.f32.mrb[0].mxu0
        %v5525 = vadd.f32 %v5380, %v5524
        %v5526 = vpop.f32.mrb[0].mxu0
        %5527 = vmatprep.mubr.bf16.mxu0 0
        %5528 = vmatmul.mubr.bf16.gmra.mrb[0].mxu0 %v5423
        %v5529 = vpop.f32.mrb[0].mxu0
        %v5530 = vadd.f32 %v5380, %v5529
        %v5531 = vpop.f32.mrb[0].mxu0
        %v5532 = vpop.f32.mrb[0].mxu0
        %v5533 = vadd.f32 %v5380, %v5532
        %v5534 = vpop.f32.mrb[0].mxu0
        %5535 = vmatprep.mubr.bf16.mxu0 0
        %5536 = vmatmul.mubr.bf16.gmra.mrb[0].mxu0 %v5426
        %v5537 = vpop.f32.mrb[0].mxu0
        %v5538 = vadd.f32 %v5380, %v5537
        %v5539 = vpop.f32.mrb[0].mxu0
        %v5540 = vpop.f32.mrb[0].mxu0
        %v5541 = vadd.f32 %v5380, %v5540
        %v5542 = vpop.f32.mrb[0].mxu0
        %5543 = vmatprep.mubr.bf16.mxu0 0
        %5544 = vmatmul.mubr.bf16.gmra.mrb[0].mxu0 %v5429
        %v5545 = vpop.f32.mrb[0].mxu0
        %v5546 = vadd.f32 %v5380, %v5545
        %v5547 = vpop.f32.mrb[0].mxu0
        %v5548 = vpop.f32.mrb[0].mxu0
        %v5549 = vadd.f32 %v5380, %v5548
        %v5550 = vpop.f32.mrb[0].mxu0
        %5551 = vmatprep.mubr.bf16.mxu0 0
        %5552 = vmatmul.mubr.bf16.gmra.mrb[0].mxu0 %v5432
        %v5553 = vpop.f32.mrb[0].mxu0
        %v5554 = vadd.f32 %v5380, %v5553
        %v5555 = vpop.f32.mrb[0].mxu0
        %v5556 = vpop.f32.mrb[0].mxu0
        %v5557 = vadd.f32 %v5380, %v5556
        %v5558 = vpop.f32.mrb[0].mxu0
        %5559 = vmatprep.mubr.bf16.mxu0 0
        %5560 = vmatmul.mubr.bf16.gmra.mrb[0].mxu0 %v5435
        %v5561 = vpop.f32.mrb[0].mxu0
        %v5562 = vadd.f32 %v5380, %v5561
        %v5563 = vpop.f32.mrb[0].mxu0
        %v5564 = vpop.f32.mrb[0].mxu0
        %v5565 = vadd.f32 %v5380, %v5564
        %v5566 = vpop.f32.mrb[0].mxu0
        %5567 = vmatprep.mubr.bf16.mxu0 0
        %5568 = vmatmul.mubr.bf16.gmra.mrb[0].mxu0 %v5438
        %v5569 = vpop.f32.mrb[0].mxu0
        %v5570 = vadd.f32 %v5380, %v5569
        %v5571 = vpop.f32.mrb[0].mxu0
        %v5572 = vpop.f32.mrb[0].mxu0
        %v5573 = vadd.f32 %v5380, %v5572
        %v5574 = vpop.f32.mrb[0].mxu0
        %5575 = vmatprep.mubr.bf16.mxu0 0
        %5576 = vmatmul.mubr.bf16.gmra.mrb[0].mxu0 %v5441
        %v5577 = vpop.f32.mrb[0].mxu0
        %v5578 = vadd.f32 %v5380, %v5577
        %v5579 = vpop.f32.mrb[0].mxu0
        %v5580 = vpop.f32.mrb[0].mxu0
        %v5581 = vadd.f32 %v5380, %v5580
        %v5582 = vpop.f32.mrb[0].mxu0
        %5583 = vmatprep.mubr.bf16.mxu0 0
        %5584 = vmatmul.mubr.bf16.gmra.mrb[0].mxu0 %v5444
        %v5585 = vpop.f32.mrb[0].mxu0
        %v5586 = vadd.f32 %v5380, %v5585
        %v5587 = vpop.f32.mrb[0].mxu0
        %v5588 = vpop.f32.mrb[0].mxu0
        %v5589 = vadd.f32 %v5380, %v5588
        %v5590 = vpop.f32.mrb[0].mxu0
        %5591 = vmatprep.mubr.bf16.mxu0 0
        %5592 = vmatmul.mubr.bf16.gmra.mrb[0].mxu0 %v5447
        %v5593 = vpop.f32.mrb[0].mxu0
        %v5594 = vadd.f32 %v5380, %v5593
        %v5595 = vpop.f32.mrb[0].mxu0
        %v5596 = vpop.f32.mrb[0].mxu0
        %v5597 = vadd.f32 %v5380, %v5596
        %v5598 = vpop.f32.mrb[0].mxu0
        %5599 = vmatprep.mubr.bf16.mxu0 0
        %5600 = vmatmul.mubr.bf16.gmra.mrb[0].mxu0 %v5450
        %v5601 = vpop.f32.mrb[0].mxu0
        %v5602 = vadd.f32 %v5380, %v5601
        %v5603 = vpop.f32.mrb[0].mxu0
        %v5604 = vpop.f32.mrb[0].mxu0
        %v5605 = vadd.f32 %v5380, %v5604
        %v5606 = vpop.f32.mrb[0].mxu0
        %5607 = vmatprep.mubr.bf16.mxu0 0
        %5608 = vmatmul.mubr.bf16.gmra.mrb[0].mxu0 %v5453
        %v5609 = vpop.f32.mrb[0].mxu0
        %v5610 = vadd.f32 %v5380, %v5609
        %v5611 = vpop.f32.mrb[0].mxu0
        %v5612 = vpop.f32.mrb[0].mxu0
        %v5613 = vadd.f32 %v5380, %v5612
        %v5614 = vpop.f32.mrb[0].mxu0
        %5615 = vdwg.mxu0
        %5616 = vst [vmem:[%s533] sm:$0xff] %v5490
        %5617 = vst [vmem:[%s533 + $0x8] sm:$0xff] %v5493
        %5618 = vst [vmem:[%s533 + $0x10] sm:$0xff] %v5498
        %5619 = vst [vmem:[%s533 + $0x18] sm:$0xff] %v5501
        %5620 = vst [vmem:[%s533 + $0x20] sm:$0xff] %v5506
        %5621 = vst [vmem:[%s533 + $0x28] sm:$0xff] %v5509
        %5622 = vst [vmem:[%s533 + $0x30] sm:$0xff] %v5514
        %5623 = vst [vmem:[%s533 + $0x38] sm:$0xff] %v5517
        %5624 = vst [vmem:[%s533 + $0x40] sm:$0xff] %v5522
        %5625 = vst [vmem:[%s533 + $0x48] sm:$0xff] %v5525
        %5626 = vst [vmem:[%s533 + $0x50] sm:$0xff] %v5530
        %5627 = vst [vmem:[%s533 + $0x58] sm:$0xff] %v5533
        %5628 = vst [vmem:[%s533 + $0x60] sm:$0xff] %v5538
        %5629 = vst [vmem:[%s533 + $0x68] sm:$0xff] %v5541
        %5630 = vst [vmem:[%s533 + $0x70] sm:$0xff] %v5546
        %5631 = vst [vmem:[%s533 + $0x78] sm:$0xff] %v5549
        %5632 = vst [vmem:[%s533 + $0x80] sm:$0xff] %v5554
        %5633 = vst [vmem:[%s533 + $0x88] sm:$0xff] %v5557
        %5634 = vst [vmem:[%s533 + $0x90] sm:$0xff] %v5562
        %5635 = vst [vmem:[%s533 + $0x98] sm:$0xff] %v5565
        %5636 = vst [vmem:[%s533 + $0xa0] sm:$0xff] %v5570
        %5637 = vst [vmem:[%s533 + $0xa8] sm:$0xff] %v5573
        %5638 = vst [vmem:[%s533 + $0xb0] sm:$0xff] %v5578
        %5639 = vst [vmem:[%s533 + $0xb8] sm:$0xff] %v5581
        %5640 = vst [vmem:[%s533 + $0xc0] sm:$0xff] %v5586
        %5641 = vst [vmem:[%s533 + $0xc8] sm:$0xff] %v5589
        %5642 = vst [vmem:[%s533 + $0xd0] sm:$0xff] %v5594
        %5643 = vst [vmem:[%s533 + $0xd8] sm:$0xff] %v5597
        %5644 = vst [vmem:[%s533 + $0xe0] sm:$0xff] %v5602
        %5645 = vst [vmem:[%s533 + $0xe8] sm:$0xff] %v5605
        %5646 = vst [vmem:[%s533 + $0xf0] sm:$0xff] %v5610
        %5647 = vst [vmem:[%s533 + $0xf8] sm:$0xff] %v5613
        %s5648 = sand.u32 %s277, 1
        %s5649 = scalar_lea.sflag [#allocation4], %s5648
        %s5650 = sand.u32 %s277, 1
        %s5651 = smul.addr %s5650, 256
        %s5652 = scalar_lea.vmem [#allocation19], %s5651
        // Predicated region
        $region105: #{tpu_custom_call.1} parent=63 // pred_check
          %p5653 = pneg %p287
        $region106: #{tpu_custom_call.1} parent=63 // pred_check_branch
          %5655 = sbr.rel (%p5653) target = $region108
        $region107: #{tpu_custom_call.1} parent=63 // pred_region
          %s5656 = smul.u32 32, %s33
          %s5657 = ssub.s32 38, %s5656
          %p5658 = scmp.lt.s32.totalorder %s5657, 32
          %s5659 = scalar_select %p5658, %s5657, 32
          %s5660 = smul.u32 128, %s5659
          %s5662 = ssub.s32 4096, %s5660
          %5663 = vsyncadd %s5649, %s5662
          %p5664 = scmp.ne.s32.totalorder 0, %s5660
          %s5665 = smul.addr %s5656, 128
          %s5666 = scalar_lea.hbm %s11, %s5665
          %s5667 = smul.u32 8, %s5659
          %s5668 = sshll.u32 %s5652, 4
          %s5669 = int_to_ptr.vmem [resolvable:$true] %s5668
          %s5670 = sshll.u32 %s5667, 4
          %5674 = dma.vmem_to_hbm [thread:$0]  (%p5664), %s5669, %s5670, %s5666, %s5649, 128, 128, 8
        $region108: #{tpu_custom_call.1} parent=63 // pred_fallthru
          _
      $region64: #{tpu_custom_call.1} parent=5 // pred_fallthru
        _
      %p5675 = scmp.le.s32.totalorder 2, %s28
      // Predicated region
      $region109: #{tpu_custom_call.1} parent=5 // pred_check
        %p5676 = pneg %p5675
      $region110: #{tpu_custom_call.1} parent=5 // pred_check_branch
        %5678 = sbr.rel (%p5676) target = $region112
      $region111: #{tpu_custom_call.1} parent=5 // pred_region
        %s5679 = ssub.s32 %s28, 2
        // Predicated region
        $region113: #{tpu_custom_call.1} parent=111 // pred_check
          %p5680 = pneg %p293
        $region114: #{tpu_custom_call.1} parent=111 // pred_check_branch
          %5682 = sbr.rel (%p5680) target = $region116
        $region115: #{tpu_custom_call.1} parent=111 // pred_region
          %s5683 = sand.u32 %s278, 1
          %s5684 = scalar_lea.sflag [#allocation4], %s5683
          %s5685 = sand.u32 %s278, 1
          %s5686 = smul.addr %s5685, 256
          %s5687 = scalar_lea.vmem [#allocation19], %s5686
          %5688 = dma.done %s5684, 4096
        $region116: #{tpu_custom_call.1} parent=111 // pred_fallthru
          _
      $region112: #{tpu_custom_call.1} parent=5 // pred_fallthru
        _
    $region6: #{tpu_custom_call.1} parent=1 // loop_footer
      %s32 = sadd.s32 1, %s28
    $region7: #{tpu_custom_call.1} parent=1 // loop_footer_branch
      %27 = sbr.rel target = $region3
    $region8: #{tpu_custom_call.1} parent=1 // loop_exit
      _
    %5689 = vsyncpa [#allocation3], 1
    %s5690 = scalar_lea.sflag [#allocation3], 1
    %5691 = vsyncpa %s5690, 1
    %5692 = vsyncpa [#allocation6], 1
    %5693 = vsyncpa [#allocation9], 1
    %5694 = vsyncpa [#allocation12], 1
    %5695 = vsyncpa [#allocation15], 1
    %5696 = vsyncpa [#allocation18], 1
    %5697 = vsyncpa [#allocation4], 1
    %s5698 = scalar_lea.sflag [#allocation4], 1
    %5699 = vsyncpa %s5698, 1

</llo_original>
